<compile_context>
chip_gen: v7x
topology: tpu7x:2x2x1
jax: 0.10.0
libtpu: 0.0.40
codegen_flags: <defaults>
</compile_context>

<pallas_src>
import functools

import jax
import jax.numpy as jnp
from jax.experimental import pallas as pl
from jax.experimental.pallas import tpu as pltpu

_LN_EPS = 1e-5          # PyTorch nn.LayerNorm default
_INV_SQRT2 = 0.7071067811865476


def _layer_norm(x, gamma, beta):
    mu = jnp.mean(x, axis=-1, keepdims=True)
    xc = x - mu
    var = jnp.mean(xc * xc, axis=-1, keepdims=True)
    return xc * jax.lax.rsqrt(var + _LN_EPS) * gamma + beta


def _erf(x):
    # Abramowitz & Stegun 7.1.26 (max abs err 1.5e-7).  Keeps nn.GELU()'s exact
    # erf semantics without relying on an erf lowering inside Mosaic.
    a1, a2, a3, a4, a5 = (0.254829592, -0.284496736, 1.421413741,
                          -1.453152027, 1.061405429)
    p = 0.3275911
    ax = jnp.abs(x)
    t = 1.0 / (1.0 + p * ax)
    poly = ((((a5 * t + a4) * t + a3) * t + a2) * t + a1) * t
    y = 1.0 - poly * jnp.exp(-ax * ax)
    return jnp.where(x < 0.0, -y, y)


def _gelu_exact(x):
    return 0.5 * x * (1.0 + _erf(x * _INV_SQRT2))


def _transformer_kernel(*refs, heads, dim_head, depth, rel_pe, compute_dtype):
    if rel_pe:
        (x_ref, pe_ref,
         ln1g, ln1b, wqkv, wo, bo, ln2g, ln2b, fw1, fb1, fw2, fb2,
         o_ref) = refs
    else:
        (x_ref,
         ln1g, ln1b, wqkv, wo, bo, ln2g, ln2b, fw1, fb1, fw2, fb2,
         o_ref) = refs
        pe_ref = None

    inner = heads * dim_head
    cdt = compute_dtype
    approx_recip = (cdt != jnp.float32)       # exact divide on the f32 path

    # Residual stream lives in registers across the whole layer loop (f32).
    x = x_ref[0].astype(jnp.float32)                          # (N, D)
    pe = pe_ref[0] if rel_pe else None                        # (N, N), pre-scaled

    for l in range(depth):                                    # static layer loop
        # ---------------- PreNorm + Attention + residual ----------------------
        xn = _layer_norm(x, ln1g[l], ln1b[l]).astype(cdt)     # (N, D)
        # One fused lane-dense QKV matmul; softmax scale folded into the Q cols.
        qkv = jnp.dot(xn, wqkv[l], preferred_element_type=cdt)  # (N, 3*inner)

        ctx_heads = []
        for h in range(heads):                                # static head loop
            lo = h * dim_head
            qh = qkv[:, lo:lo + dim_head]                     # (N, Dh)
            kh = qkv[:, inner + lo:inner + lo + dim_head]
            vh = qkv[:, 2 * inner + lo:2 * inner + lo + dim_head]
            s = jnp.dot(qh, kh.T, preferred_element_type=jnp.float32)  # (N, N) f32
            if rel_pe:
                s = s + pe                                    # pe already scaled
            s = s - jnp.max(s, axis=-1, keepdims=True)        # f32 softmax
            p = jnp.exp(s)
            denom = jnp.sum(p, axis=-1, keepdims=True)
            attn = p * pl.reciprocal(denom, approx=approx_recip)
            ctx_heads.append(jnp.dot(attn.astype(cdt), vh,
                                     preferred_element_type=cdt))      # (N, Dh)

        # 'h n d -> n (h d)' head merge + single output projection.
        ctx = jnp.concatenate(ctx_heads, axis=-1)             # (N, inner)
        proj = jnp.dot(ctx, wo[l], preferred_element_type=jnp.float32)  # (N, D)
        x = x + proj + bo[l]

        # ---------------- PreNorm + FeedForward + residual --------------------
        xn2 = _layer_norm(x, ln2g[l], ln2b[l]).astype(cdt)
        h1 = jnp.dot(xn2, fw1[l], preferred_element_type=jnp.float32) + fb1[l]
        h1 = _gelu_exact(h1)                                  # exact (erf) GELU, f32
        ff = jnp.dot(h1.astype(cdt), fw2[l],
                     preferred_element_type=jnp.float32) + fb2[l]
        x = x + ff

    o_ref[0] = x.astype(o_ref.dtype)


def transformer_pallas(x, centroid_delta, params, *, heads, dim_head,
                       rel_pe=False, compute_dtype=jnp.float32):
    B, N, D = x.shape
    depth = params['w_qkv'].shape[0]
    mlp = params['ff_w1'].shape[-1]
    inner = heads * dim_head
    scale = dim_head ** (-0.5)
    cdt = compute_dtype

    # ---- weight repacking (free XLA-side plumbing) ---------------------------
    # Fold the softmax scale into the Q columns of the fused QKV weight:
    # (q@k^T + pe)*scale == (scale*q)@k^T + scale*pe.
    col_scale = jnp.concatenate([
        jnp.full((inner,), scale, params['w_qkv'].dtype),
        jnp.ones((2 * inner,), params['w_qkv'].dtype)])
    wqkv = (params['w_qkv'] * col_scale[None, None, :]).astype(cdt)   # (depth, D, 3*inner)
    wo = params['w_out'].astype(cdt)                                  # (depth, inner, D)
    bo = params['b_out'].reshape(depth, 1, D)
    ln1g = params['ln1_g'].reshape(depth, 1, D)
    ln1b = params['ln1_b'].reshape(depth, 1, D)
    ln2g = params['ln2_g'].reshape(depth, 1, D)
    ln2b = params['ln2_b'].reshape(depth, 1, D)
    fw1 = params['ff_w1'].astype(cdt)                                 # (depth, D, mlp)
    fb1 = params['ff_b1'].reshape(depth, 1, mlp)
    fw2 = params['ff_w2'].astype(cdt)                                 # (depth, mlp, D)
    fb2 = params['ff_b2'].reshape(depth, 1, D)

    inputs = [x]
    in_specs = [pl.BlockSpec((1, N, D), lambda b: (b, 0, 0))]

    if rel_pe:
        # Relative positional bias: 1x1-conv MLP over centroid deltas, pre-scaled
        # so the kernel only adds it.
        # TODO(synk): the tiny 3->64->1 conv MLP stays in the XLA wrapper; an
        # in-kernel version needs an (N*N)<->(N,N) relayout Mosaic reshapes dislike.
        hpe = jnp.einsum('oc,bcxy->boxy', params['pe_w1'], centroid_delta) \
            + params['pe_b1'][None, :, None, None]
        hpe = jnp.maximum(hpe, 0.0)
        pe = jnp.einsum('oc,bcxy->boxy', params['pe_w2'], hpe) \
            + params['pe_b2'][None, :, None, None]                    # (B,1,N,N)
        pe = (pe[:, 0] * scale).astype(jnp.float32)                   # (B,N,N)
        inputs.append(pe)
        in_specs.append(pl.BlockSpec((1, N, N), lambda b: (b, 0, 0)))

    # Whole (depth, ...) weight stacks with constant index maps: DMA'd once,
    # VMEM-resident for every batch grid step.
    weight_arrays = [ln1g, ln1b, wqkv, wo, bo, ln2g, ln2b, fw1, fb1, fw2, fb2]
    for arr in weight_arrays:
        nd = arr.ndim
        in_specs.append(pl.BlockSpec(tuple(arr.shape),
                                     lambda b, _nd=nd: (0,) * _nd))
    inputs.extend(weight_arrays)

    kernel = functools.partial(_transformer_kernel, heads=heads,
                               dim_head=dim_head, depth=depth,
                               rel_pe=rel_pe, compute_dtype=cdt)

    return pl.pallas_call(
        kernel,
        out_shape=jax.ShapeDtypeStruct((B, N, D), x.dtype),
        grid_spec=pltpu.PrefetchScalarGridSpec(
            num_scalar_prefetch=0,
            grid=(B,),
            in_specs=in_specs,
            out_specs=pl.BlockSpec((1, N, D), lambda b: (b, 0, 0)),
        ),
        compiler_params=pltpu.CompilerParams(
            dimension_semantics=("parallel",)),
    )(*inputs)


def transformer_reference(x, centroid_delta, params, *, heads, dim_head, rel_pe=False):
    """Plain-JAX reference mirroring the PyTorch Transformer forward."""
    B, N, D = x.shape
    depth = params['w_qkv'].shape[0]
    inner = heads * dim_head
    scale = dim_head ** (-0.5)

    if rel_pe:
        h = jnp.einsum('oc,bcxy->boxy', params['pe_w1'], centroid_delta) \
            + params['pe_b1'][None, :, None, None]
        h = jnp.maximum(h, 0.0)
        pe = jnp.einsum('oc,bcxy->boxy', params['pe_w2'], h) \
            + params['pe_b2'][None, :, None, None]                    # (B,1,N,N)
    else:
        pe = 0.0

    def ln(t, g, b):
        mu = t.mean(-1, keepdims=True)
        tc = t - mu
        var = (tc * tc).mean(-1, keepdims=True)
        return tc / jnp.sqrt(var + _LN_EPS) * g + b

    for l in range(depth):
        xn = ln(x, params['ln1_g'][l], params['ln1_b'][l])
        qkv = xn @ params['w_qkv'][l]
        q, k, v = jnp.split(qkv, 3, axis=-1)
        to_heads = lambda t: t.reshape(B, N, heads, dim_head).transpose(0, 2, 1, 3)
        q, k, v = map(to_heads, (q, k, v))
        dots = (jnp.einsum('bhnd,bhmd->bhnm', q, k) + pe) * scale
        attn = jax.nn.softmax(dots, axis=-1)
        out = jnp.einsum('bhnm,bhmd->bhnd', attn, v)
        out = out.transpose(0, 2, 1, 3).reshape(B, N, inner)
        x = x + out @ params['w_out'][l] + params['b_out'][l]
        xn2 = ln(x, params['ln2_g'][l], params['ln2_b'][l])
        hmid = jax.nn.gelu(xn2 @ params['ff_w1'][l] + params['ff_b1'][l],
                           approximate=False)
        x = x + hmid @ params['ff_w2'][l] + params['ff_b2'][l]
    return x


if __name__ == "__main__":
    # Small shapes consistent with the module: dim=32, heads=4, dim_head=8,
    # mlp_dim=64, depth=3, seq=8, batch=2.
    B, N, D = 2, 8, 32
    HEADS, DIM_HEAD = 4, 8
    MLP, DEPTH = 64, 3
    INNER = HEADS * DIM_HEAD

    key = jax.random.PRNGKey(0)
    ks = jax.random.split(key, 16)

    x = jax.random.normal(ks[0], (B, N, D), dtype=jnp.float32)
    centroid_delta = jax.random.normal(ks[1], (B, 3, N, N), dtype=jnp.float32)

    params = {
        'ln1_g': 1.0 + 0.1 * jax.random.normal(ks[2], (DEPTH, D), jnp.float32),
        'ln1_b': 0.1 * jax.random.normal(ks[3], (DEPTH, D), jnp.float32),
        'w_qkv': 0.05 * jax.random.normal(ks[4], (DEPTH, D, 3 * INNER), jnp.float32),
        'w_out': 0.05 * jax.random.normal(ks[5], (DEPTH, INNER, D), jnp.float32),
        'b_out': 0.02 * jax.random.normal(ks[6], (DEPTH, D), jnp.float32),
        'ln2_g': 1.0 + 0.1 * jax.random.normal(ks[7], (DEPTH, D), jnp.float32),
        'ln2_b': 0.1 * jax.random.normal(ks[8], (DEPTH, D), jnp.float32),
        'ff_w1': 0.05 * jax.random.normal(ks[9], (DEPTH, D, MLP), jnp.float32),
        'ff_b1': 0.02 * jax.random.normal(ks[10], (DEPTH, MLP), jnp.float32),
        'ff_w2': 0.05 * jax.random.normal(ks[11], (DEPTH, MLP, D), jnp.float32),
        'ff_b2': 0.02 * jax.random.normal(ks[12], (DEPTH, D), jnp.float32),
        # rel_pe 1x1-conv MLP weights (stored as (out_ch, in_ch))
        'pe_w1': 0.2 * jax.random.normal(ks[13], (64, 3), jnp.float32),
        'pe_b1': 0.1 * jax.random.normal(ks[14], (64,), jnp.float32),
        'pe_w2': 0.2 * jax.random.normal(ks[15], (1, 64), jnp.float32),
        'pe_b2': jnp.zeros((1,), jnp.float32),
    }

    # f32 path: both rel_pe specializations, tight tolerance.
    for rel_pe in (False, True):
        y = transformer_pallas(x, centroid_delta, params, heads=HEADS,
                               dim_head=DIM_HEAD, rel_pe=rel_pe)
        y = jax.block_until_ready(y)
        y_ref = transformer_reference(x, centroid_delta, params, heads=HEADS,
                                      dim_head=DIM_HEAD, rel_pe=rel_pe)
        assert y.shape == (B, N, D)
        assert jnp.allclose(y, y_ref, atol=1e-4, rtol=1e-4), \
            f"f32 mismatch vs reference (rel_pe={rel_pe})"

    # bf16 MXU-operand path (f32 softmax / LayerNorm / residual); looser tolerance.
    # TODO(synk): on v5e prefer compute_dtype=f32 — no bf16 VPU/EUP, MXU unsaturated.
    y_bf16 = transformer_pallas(x, centroid_delta, params, heads=HEADS,
                                dim_head=DIM_HEAD, rel_pe=False,
                                compute_dtype=jnp.bfloat16)
    y_bf16 = jax.block_until_ready(y_bf16)
    y_ref = transformer_reference(x, centroid_delta, params, heads=HEADS,
                                  dim_head=DIM_HEAD, rel_pe=False)
    assert jnp.allclose(y_bf16.astype(jnp.float32), y_ref, atol=2e-2, rtol=2e-2), \
        "bf16 mismatch vs reference"

    print("KERNEL_OK")
</pallas_src>

<mosaic_0001>
module attributes {stable_mosaic.version = 11 : i64} {
  func.func @_transformer_kernel(%arg0: i32, %arg1: memref<1x8x32xf32, #tpu.memory_space<vmem>>, %arg2: memref<3x1x32xf32, #tpu.memory_space<vmem>>, %arg3: memref<3x1x32xf32, #tpu.memory_space<vmem>>, %arg4: memref<3x32x96xf32, #tpu.memory_space<vmem>>, %arg5: memref<3x32x32xf32, #tpu.memory_space<vmem>>, %arg6: memref<3x1x32xf32, #tpu.memory_space<vmem>>, %arg7: memref<3x1x32xf32, #tpu.memory_space<vmem>>, %arg8: memref<3x1x32xf32, #tpu.memory_space<vmem>>, %arg9: memref<3x32x64xf32, #tpu.memory_space<vmem>>, %arg10: memref<3x1x64xf32, #tpu.memory_space<vmem>>, %arg11: memref<3x64x32xf32, #tpu.memory_space<vmem>>, %arg12: memref<3x1x32xf32, #tpu.memory_space<vmem>>, %arg13: memref<1x8x32xf32, #tpu.memory_space<vmem>>) attributes {dimension_semantics = [#tpu.dimension_semantics<parallel>], iteration_bounds = array<i64: 2>, scalar_prefetch = 0 : i64, scratch_operands = 0 : i64, tpu.core_type = #tpu.core_type<tc>, window_params = [{transform_indices = @transform_0, window_bounds = array<i64: 1, 8, 32>}, {pipeline_mode = #tpu.pipeline_mode<synchronous>, transform_indices = @transform_1, window_bounds = array<i64: 3, 1, 32>}, {pipeline_mode = #tpu.pipeline_mode<synchronous>, transform_indices = @transform_2, window_bounds = array<i64: 3, 1, 32>}, {pipeline_mode = #tpu.pipeline_mode<synchronous>, transform_indices = @transform_3, window_bounds = array<i64: 3, 32, 96>}, {pipeline_mode = #tpu.pipeline_mode<synchronous>, transform_indices = @transform_4, window_bounds = array<i64: 3, 32, 32>}, {pipeline_mode = #tpu.pipeline_mode<synchronous>, transform_indices = @transform_5, window_bounds = array<i64: 3, 1, 32>}, {pipeline_mode = #tpu.pipeline_mode<synchronous>, transform_indices = @transform_6, window_bounds = array<i64: 3, 1, 32>}, {pipeline_mode = #tpu.pipeline_mode<synchronous>, transform_indices = @transform_7, window_bounds = array<i64: 3, 1, 32>}, {pipeline_mode = #tpu.pipeline_mode<synchronous>, transform_indices = @transform_8, window_bounds = array<i64: 3, 32, 64>}, {pipeline_mode = #tpu.pipeline_mode<synchronous>, transform_indices = @transform_9, window_bounds = array<i64: 3, 1, 64>}, {pipeline_mode = #tpu.pipeline_mode<synchronous>, transform_indices = @transform_10, window_bounds = array<i64: 3, 64, 32>}, {pipeline_mode = #tpu.pipeline_mode<synchronous>, transform_indices = @transform_11, window_bounds = array<i64: 3, 1, 32>}, {transform_indices = @transform_12, window_bounds = array<i64: 1, 8, 32>}]} {
    %c0 = arith.constant 0 : index
    %c0_0 = arith.constant 0 : index
    %c0_1 = arith.constant 0 : index
    %0 = vector.load %arg1[%c0, %c0_0, %c0_1] : memref<1x8x32xf32, #tpu.memory_space<vmem>>, vector<1x8x32xf32>
    %1 = vector.shape_cast %0 : vector<1x8x32xf32> to vector<8x32xf32>
    %c0_2 = arith.constant 0 : index
    %c0_3 = arith.constant 0 : index
    %c0_4 = arith.constant 0 : index
    %2 = vector.load %arg2[%c0_2, %c0_3, %c0_4] : memref<3x1x32xf32, #tpu.memory_space<vmem>>, vector<1x1x32xf32>
    %3 = vector.shape_cast %2 : vector<1x1x32xf32> to vector<1x32xf32>
    %c0_5 = arith.constant 0 : index
    %c0_6 = arith.constant 0 : index
    %c0_7 = arith.constant 0 : index
    %4 = vector.load %arg3[%c0_5, %c0_6, %c0_7] : memref<3x1x32xf32, #tpu.memory_space<vmem>>, vector<1x1x32xf32>
    %5 = vector.shape_cast %4 : vector<1x1x32xf32> to vector<1x32xf32>
    %cst = arith.constant dense<0.000000e+00> : vector<8xf32>
    %6 = vector.multi_reduction <add>, %1, %cst [1] : vector<8x32xf32> to vector<8xf32>
    %7 = vector.shape_cast %6 : vector<8xf32> to vector<8x1xf32>
    %cst_8 = arith.constant 3.200000e+01 : f32
    %8 = vector.broadcast %cst_8 : f32 to vector<8x1xf32>
    %9 = arith.divf %7, %8 : vector<8x1xf32>
    %10 = vector.broadcast %9 : vector<8x1xf32> to vector<8x32xf32>
    %11 = arith.subf %1, %10 : vector<8x32xf32>
    %12 = arith.mulf %11, %11 : vector<8x32xf32>
    %cst_9 = arith.constant dense<0.000000e+00> : vector<8xf32>
    %13 = vector.multi_reduction <add>, %12, %cst_9 [1] : vector<8x32xf32> to vector<8xf32>
    %14 = vector.shape_cast %13 : vector<8xf32> to vector<8x1xf32>
    %cst_10 = arith.constant 3.200000e+01 : f32
    %15 = vector.broadcast %cst_10 : f32 to vector<8x1xf32>
    %16 = arith.divf %14, %15 : vector<8x1xf32>
    %cst_11 = arith.constant 9.99999974E-6 : f32
    %17 = vector.broadcast %cst_11 : f32 to vector<8x1xf32>
    %18 = arith.addf %16, %17 : vector<8x1xf32>
    %19 = math.rsqrt %18 : vector<8x1xf32>
    %20 = vector.broadcast %19 : vector<8x1xf32> to vector<8x32xf32>
    %21 = arith.mulf %11, %20 : vector<8x32xf32>
    %22 = vector.broadcast %3 : vector<1x32xf32> to vector<8x32xf32>
    %23 = arith.mulf %21, %22 : vector<8x32xf32>
    %24 = vector.broadcast %5 : vector<1x32xf32> to vector<8x32xf32>
    %25 = arith.addf %23, %24 : vector<8x32xf32>
    %c0_12 = arith.constant 0 : index
    %c0_13 = arith.constant 0 : index
    %c0_14 = arith.constant 0 : index
    %26 = vector.load %arg4[%c0_12, %c0_13, %c0_14] : memref<3x32x96xf32, #tpu.memory_space<vmem>>, vector<1x32x96xf32>
    %27 = vector.shape_cast %26 : vector<1x32x96xf32> to vector<32x96xf32>
    %cst_15 = arith.constant dense<0.000000e+00> : vector<8x96xf32>
    %28 = tpu.matmul %25, %27, %cst_15 {dimension_numbers = #tpu.dot_dimension_numbers<[1], [0], [0], [1], [0, 0, 1, 1], [], []>} : vector<8x32xf32>, vector<32x96xf32>, vector<8x96xf32> -> vector<8x96xf32>
    %29 = vector.extract_strided_slice %28 {offsets = [0, 0], sizes = [8, 8], strides = [1, 1]} : vector<8x96xf32> to vector<8x8xf32>
    %30 = vector.extract_strided_slice %28 {offsets = [0, 32], sizes = [8, 8], strides = [1, 1]} : vector<8x96xf32> to vector<8x8xf32>
    %31 = vector.extract_strided_slice %28 {offsets = [0, 64], sizes = [8, 8], strides = [1, 1]} : vector<8x96xf32> to vector<8x8xf32>
    %32 = tpu.transpose %30, [1, 0] : vector<8x8xf32> -> vector<8x8xf32>
    %cst_16 = arith.constant dense<0.000000e+00> : vector<8x8xf32>
    %33 = tpu.matmul %29, %32, %cst_16 {dimension_numbers = #tpu.dot_dimension_numbers<[1], [0], [0], [1], [0, 0, 1, 1], [], []>} : vector<8x8xf32>, vector<8x8xf32>, vector<8x8xf32> -> vector<8x8xf32>
    %cst_17 = arith.constant dense<0xFF800000> : vector<8xf32>
    %34 = vector.multi_reduction <maximumf>, %33, %cst_17 [1] : vector<8x8xf32> to vector<8xf32>
    %35 = vector.shape_cast %34 : vector<8xf32> to vector<8x1xf32>
    %36 = vector.broadcast %35 : vector<8x1xf32> to vector<8x8xf32>
    %37 = arith.subf %33, %36 : vector<8x8xf32>
    %38 = math.exp %37 : vector<8x8xf32>
    %cst_18 = arith.constant dense<0.000000e+00> : vector<8xf32>
    %39 = vector.multi_reduction <add>, %38, %cst_18 [1] : vector<8x8xf32> to vector<8xf32>
    %40 = vector.shape_cast %39 : vector<8xf32> to vector<8x1xf32>
    %41 = tpu.reciprocal %40 : vector<8x1xf32> -> vector<8x1xf32>
    %42 = vector.broadcast %41 : vector<8x1xf32> to vector<8x8xf32>
    %43 = arith.mulf %38, %42 : vector<8x8xf32>
    %cst_19 = arith.constant dense<0.000000e+00> : vector<8x8xf32>
    %44 = tpu.matmul %43, %31, %cst_19 {dimension_numbers = #tpu.dot_dimension_numbers<[1], [0], [0], [1], [0, 0, 1, 1], [], []>} : vector<8x8xf32>, vector<8x8xf32>, vector<8x8xf32> -> vector<8x8xf32>
    %45 = vector.extract_strided_slice %28 {offsets = [0, 8], sizes = [8, 8], strides = [1, 1]} : vector<8x96xf32> to vector<8x8xf32>
    %46 = vector.extract_strided_slice %28 {offsets = [0, 40], sizes = [8, 8], strides = [1, 1]} : vector<8x96xf32> to vector<8x8xf32>
    %47 = vector.extract_strided_slice %28 {offsets = [0, 72], sizes = [8, 8], strides = [1, 1]} : vector<8x96xf32> to vector<8x8xf32>
    %48 = tpu.transpose %46, [1, 0] : vector<8x8xf32> -> vector<8x8xf32>
    %cst_20 = arith.constant dense<0.000000e+00> : vector<8x8xf32>
    %49 = tpu.matmul %45, %48, %cst_20 {dimension_numbers = #tpu.dot_dimension_numbers<[1], [0], [0], [1], [0, 0, 1, 1], [], []>} : vector<8x8xf32>, vector<8x8xf32>, vector<8x8xf32> -> vector<8x8xf32>
    %cst_21 = arith.constant dense<0xFF800000> : vector<8xf32>
    %50 = vector.multi_reduction <maximumf>, %49, %cst_21 [1] : vector<8x8xf32> to vector<8xf32>
    %51 = vector.shape_cast %50 : vector<8xf32> to vector<8x1xf32>
    %52 = vector.broadcast %51 : vector<8x1xf32> to vector<8x8xf32>
    %53 = arith.subf %49, %52 : vector<8x8xf32>
    %54 = math.exp %53 : vector<8x8xf32>
    %cst_22 = arith.constant dense<0.000000e+00> : vector<8xf32>
    %55 = vector.multi_reduction <add>, %54, %cst_22 [1] : vector<8x8xf32> to vector<8xf32>
    %56 = vector.shape_cast %55 : vector<8xf32> to vector<8x1xf32>
    %57 = tpu.reciprocal %56 : vector<8x1xf32> -> vector<8x1xf32>
    %58 = vector.broadcast %57 : vector<8x1xf32> to vector<8x8xf32>
    %59 = arith.mulf %54, %58 : vector<8x8xf32>
    %cst_23 = arith.constant dense<0.000000e+00> : vector<8x8xf32>
    %60 = tpu.matmul %59, %47, %cst_23 {dimension_numbers = #tpu.dot_dimension_numbers<[1], [0], [0], [1], [0, 0, 1, 1], [], []>} : vector<8x8xf32>, vector<8x8xf32>, vector<8x8xf32> -> vector<8x8xf32>
    %61 = vector.extract_strided_slice %28 {offsets = [0, 16], sizes = [8, 8], strides = [1, 1]} : vector<8x96xf32> to vector<8x8xf32>
    %62 = vector.extract_strided_slice %28 {offsets = [0, 48], sizes = [8, 8], strides = [1, 1]} : vector<8x96xf32> to vector<8x8xf32>
    %63 = vector.extract_strided_slice %28 {offsets = [0, 80], sizes = [8, 8], strides = [1, 1]} : vector<8x96xf32> to vector<8x8xf32>
    %64 = tpu.transpose %62, [1, 0] : vector<8x8xf32> -> vector<8x8xf32>
    %cst_24 = arith.constant dense<0.000000e+00> : vector<8x8xf32>
    %65 = tpu.matmul %61, %64, %cst_24 {dimension_numbers = #tpu.dot_dimension_numbers<[1], [0], [0], [1], [0, 0, 1, 1], [], []>} : vector<8x8xf32>, vector<8x8xf32>, vector<8x8xf32> -> vector<8x8xf32>
    %cst_25 = arith.constant dense<0xFF800000> : vector<8xf32>
    %66 = vector.multi_reduction <maximumf>, %65, %cst_25 [1] : vector<8x8xf32> to vector<8xf32>
    %67 = vector.shape_cast %66 : vector<8xf32> to vector<8x1xf32>
    %68 = vector.broadcast %67 : vector<8x1xf32> to vector<8x8xf32>
    %69 = arith.subf %65, %68 : vector<8x8xf32>
    %70 = math.exp %69 : vector<8x8xf32>
    %cst_26 = arith.constant dense<0.000000e+00> : vector<8xf32>
    %71 = vector.multi_reduction <add>, %70, %cst_26 [1] : vector<8x8xf32> to vector<8xf32>
    %72 = vector.shape_cast %71 : vector<8xf32> to vector<8x1xf32>
    %73 = tpu.reciprocal %72 : vector<8x1xf32> -> vector<8x1xf32>
    %74 = vector.broadcast %73 : vector<8x1xf32> to vector<8x8xf32>
    %75 = arith.mulf %70, %74 : vector<8x8xf32>
    %cst_27 = arith.constant dense<0.000000e+00> : vector<8x8xf32>
    %76 = tpu.matmul %75, %63, %cst_27 {dimension_numbers = #tpu.dot_dimension_numbers<[1], [0], [0], [1], [0, 0, 1, 1], [], []>} : vector<8x8xf32>, vector<8x8xf32>, vector<8x8xf32> -> vector<8x8xf32>
    %77 = vector.extract_strided_slice %28 {offsets = [0, 24], sizes = [8, 8], strides = [1, 1]} : vector<8x96xf32> to vector<8x8xf32>
    %78 = vector.extract_strided_slice %28 {offsets = [0, 56], sizes = [8, 8], strides = [1, 1]} : vector<8x96xf32> to vector<8x8xf32>
    %79 = vector.extract_strided_slice %28 {offsets = [0, 88], sizes = [8, 8], strides = [1, 1]} : vector<8x96xf32> to vector<8x8xf32>
    %80 = tpu.transpose %78, [1, 0] : vector<8x8xf32> -> vector<8x8xf32>
    %cst_28 = arith.constant dense<0.000000e+00> : vector<8x8xf32>
    %81 = tpu.matmul %77, %80, %cst_28 {dimension_numbers = #tpu.dot_dimension_numbers<[1], [0], [0], [1], [0, 0, 1, 1], [], []>} : vector<8x8xf32>, vector<8x8xf32>, vector<8x8xf32> -> vector<8x8xf32>
    %cst_29 = arith.constant dense<0xFF800000> : vector<8xf32>
    %82 = vector.multi_reduction <maximumf>, %81, %cst_29 [1] : vector<8x8xf32> to vector<8xf32>
    %83 = vector.shape_cast %82 : vector<8xf32> to vector<8x1xf32>
    %84 = vector.broadcast %83 : vector<8x1xf32> to vector<8x8xf32>
    %85 = arith.subf %81, %84 : vector<8x8xf32>
    %86 = math.exp %85 : vector<8x8xf32>
    %cst_30 = arith.constant dense<0.000000e+00> : vector<8xf32>
    %87 = vector.multi_reduction <add>, %86, %cst_30 [1] : vector<8x8xf32> to vector<8xf32>
    %88 = vector.shape_cast %87 : vector<8xf32> to vector<8x1xf32>
    %89 = tpu.reciprocal %88 : vector<8x1xf32> -> vector<8x1xf32>
    %90 = vector.broadcast %89 : vector<8x1xf32> to vector<8x8xf32>
    %91 = arith.mulf %86, %90 : vector<8x8xf32>
    %cst_31 = arith.constant dense<0.000000e+00> : vector<8x8xf32>
    %92 = tpu.matmul %91, %79, %cst_31 {dimension_numbers = #tpu.dot_dimension_numbers<[1], [0], [0], [1], [0, 0, 1, 1], [], []>} : vector<8x8xf32>, vector<8x8xf32>, vector<8x8xf32> -> vector<8x8xf32>
    %93 = tpu.concatenate %44, %60, %76, %92 in 1 : vector<8x8xf32>, vector<8x8xf32>, vector<8x8xf32>, vector<8x8xf32> -> vector<8x32xf32>
    %c0_32 = arith.constant 0 : index
    %c0_33 = arith.constant 0 : index
    %c0_34 = arith.constant 0 : index
    %94 = vector.load %arg5[%c0_32, %c0_33, %c0_34] : memref<3x32x32xf32, #tpu.memory_space<vmem>>, vector<1x32x32xf32>
    %95 = vector.shape_cast %94 : vector<1x32x32xf32> to vector<32x32xf32>
    %cst_35 = arith.constant dense<0.000000e+00> : vector<8x32xf32>
    %96 = tpu.matmul %93, %95, %cst_35 {dimension_numbers = #tpu.dot_dimension_numbers<[1], [0], [0], [1], [0, 0, 1, 1], [], []>} : vector<8x32xf32>, vector<32x32xf32>, vector<8x32xf32> -> vector<8x32xf32>
    %97 = arith.addf %1, %96 : vector<8x32xf32>
    %c0_36 = arith.constant 0 : index
    %c0_37 = arith.constant 0 : index
    %c0_38 = arith.constant 0 : index
    %98 = vector.load %arg6[%c0_36, %c0_37, %c0_38] : memref<3x1x32xf32, #tpu.memory_space<vmem>>, vector<1x1x32xf32>
    %99 = vector.shape_cast %98 : vector<1x1x32xf32> to vector<1x32xf32>
    %100 = vector.broadcast %99 : vector<1x32xf32> to vector<8x32xf32>
    %101 = arith.addf %97, %100 : vector<8x32xf32>
    %c0_39 = arith.constant 0 : index
    %c0_40 = arith.constant 0 : index
    %c0_41 = arith.constant 0 : index
    %102 = vector.load %arg7[%c0_39, %c0_40, %c0_41] : memref<3x1x32xf32, #tpu.memory_space<vmem>>, vector<1x1x32xf32>
    %103 = vector.shape_cast %102 : vector<1x1x32xf32> to vector<1x32xf32>
    %c0_42 = arith.constant 0 : index
    %c0_43 = arith.constant 0 : index
    %c0_44 = arith.constant 0 : index
    %104 = vector.load %arg8[%c0_42, %c0_43, %c0_44] : memref<3x1x32xf32, #tpu.memory_space<vmem>>, vector<1x1x32xf32>
    %105 = vector.shape_cast %104 : vector<1x1x32xf32> to vector<1x32xf32>
    %cst_45 = arith.constant dense<0.000000e+00> : vector<8xf32>
    %106 = vector.multi_reduction <add>, %101, %cst_45 [1] : vector<8x32xf32> to vector<8xf32>
    %107 = vector.shape_cast %106 : vector<8xf32> to vector<8x1xf32>
    %cst_46 = arith.constant 3.200000e+01 : f32
    %108 = vector.broadcast %cst_46 : f32 to vector<8x1xf32>
    %109 = arith.divf %107, %108 : vector<8x1xf32>
    %110 = vector.broadcast %109 : vector<8x1xf32> to vector<8x32xf32>
    %111 = arith.subf %101, %110 : vector<8x32xf32>
    %112 = arith.mulf %111, %111 : vector<8x32xf32>
    %cst_47 = arith.constant dense<0.000000e+00> : vector<8xf32>
    %113 = vector.multi_reduction <add>, %112, %cst_47 [1] : vector<8x32xf32> to vector<8xf32>
    %114 = vector.shape_cast %113 : vector<8xf32> to vector<8x1xf32>
    %cst_48 = arith.constant 3.200000e+01 : f32
    %115 = vector.broadcast %cst_48 : f32 to vector<8x1xf32>
    %116 = arith.divf %114, %115 : vector<8x1xf32>
    %cst_49 = arith.constant 9.99999974E-6 : f32
    %117 = vector.broadcast %cst_49 : f32 to vector<8x1xf32>
    %118 = arith.addf %116, %117 : vector<8x1xf32>
    %119 = math.rsqrt %118 : vector<8x1xf32>
    %120 = vector.broadcast %119 : vector<8x1xf32> to vector<8x32xf32>
    %121 = arith.mulf %111, %120 : vector<8x32xf32>
    %122 = vector.broadcast %103 : vector<1x32xf32> to vector<8x32xf32>
    %123 = arith.mulf %121, %122 : vector<8x32xf32>
    %124 = vector.broadcast %105 : vector<1x32xf32> to vector<8x32xf32>
    %125 = arith.addf %123, %124 : vector<8x32xf32>
    %c0_50 = arith.constant 0 : index
    %c0_51 = arith.constant 0 : index
    %c0_52 = arith.constant 0 : index
    %126 = vector.load %arg9[%c0_50, %c0_51, %c0_52] : memref<3x32x64xf32, #tpu.memory_space<vmem>>, vector<1x32x64xf32>
    %127 = vector.shape_cast %126 : vector<1x32x64xf32> to vector<32x64xf32>
    %cst_53 = arith.constant dense<0.000000e+00> : vector<8x64xf32>
    %128 = tpu.matmul %125, %127, %cst_53 {dimension_numbers = #tpu.dot_dimension_numbers<[1], [0], [0], [1], [0, 0, 1, 1], [], []>} : vector<8x32xf32>, vector<32x64xf32>, vector<8x64xf32> -> vector<8x64xf32>
    %c0_54 = arith.constant 0 : index
    %c0_55 = arith.constant 0 : index
    %c0_56 = arith.constant 0 : index
    %129 = vector.load %arg10[%c0_54, %c0_55, %c0_56] : memref<3x1x64xf32, #tpu.memory_space<vmem>>, vector<1x1x64xf32>
    %130 = vector.shape_cast %129 : vector<1x1x64xf32> to vector<1x64xf32>
    %131 = vector.broadcast %130 : vector<1x64xf32> to vector<8x64xf32>
    %132 = arith.addf %128, %131 : vector<8x64xf32>
    %cst_57 = arith.constant 5.000000e-01 : f32
    %133 = vector.broadcast %cst_57 : f32 to vector<8x64xf32>
    %134 = arith.mulf %133, %132 : vector<8x64xf32>
    %cst_58 = arith.constant 0.707106769 : f32
    %135 = vector.broadcast %cst_58 : f32 to vector<8x64xf32>
    %136 = arith.mulf %132, %135 : vector<8x64xf32>
    %137 = math.absf %136 : vector<8x64xf32>
    %cst_59 = arith.constant 0.327591091 : f32
    %138 = vector.broadcast %cst_59 : f32 to vector<8x64xf32>
    %139 = arith.mulf %138, %137 : vector<8x64xf32>
    %cst_60 = arith.constant 1.000000e+00 : f32
    %140 = vector.broadcast %cst_60 : f32 to vector<8x64xf32>
    %141 = arith.addf %140, %139 : vector<8x64xf32>
    %cst_61 = arith.constant 1.000000e+00 : f32
    %142 = vector.broadcast %cst_61 : f32 to vector<8x64xf32>
    %143 = arith.divf %142, %141 : vector<8x64xf32>
    %cst_62 = arith.constant 1.06140542 : f32
    %144 = vector.broadcast %cst_62 : f32 to vector<8x64xf32>
    %145 = arith.mulf %144, %143 : vector<8x64xf32>
    %cst_63 = arith.constant -1.45315206 : f32
    %146 = vector.broadcast %cst_63 : f32 to vector<8x64xf32>
    %147 = arith.addf %145, %146 : vector<8x64xf32>
    %148 = arith.mulf %147, %143 : vector<8x64xf32>
    %cst_64 = arith.constant 1.42141378 : f32
    %149 = vector.broadcast %cst_64 : f32 to vector<8x64xf32>
    %150 = arith.addf %148, %149 : vector<8x64xf32>
    %151 = arith.mulf %150, %143 : vector<8x64xf32>
    %cst_65 = arith.constant -0.284496725 : f32
    %152 = vector.broadcast %cst_65 : f32 to vector<8x64xf32>
    %153 = arith.addf %151, %152 : vector<8x64xf32>
    %154 = arith.mulf %153, %143 : vector<8x64xf32>
    %cst_66 = arith.constant 0.254829586 : f32
    %155 = vector.broadcast %cst_66 : f32 to vector<8x64xf32>
    %156 = arith.addf %154, %155 : vector<8x64xf32>
    %157 = arith.mulf %156, %143 : vector<8x64xf32>
    %cst_67 = arith.constant 0.000000e+00 : f32
    %158 = vector.broadcast %cst_67 : f32 to vector<8x64xf32>
    %159 = arith.subf %158, %137 : vector<8x64xf32>
    %160 = arith.mulf %159, %137 : vector<8x64xf32>
    %161 = math.exp %160 : vector<8x64xf32>
    %162 = arith.mulf %157, %161 : vector<8x64xf32>
    %cst_68 = arith.constant 1.000000e+00 : f32
    %163 = vector.broadcast %cst_68 : f32 to vector<8x64xf32>
    %164 = arith.subf %163, %162 : vector<8x64xf32>
    %cst_69 = arith.constant 0.000000e+00 : f32
    %165 = vector.broadcast %cst_69 : f32 to vector<8x64xf32>
    %166 = arith.cmpf olt, %136, %165 : vector<8x64xf32>
    %cst_70 = arith.constant 0.000000e+00 : f32
    %167 = vector.broadcast %cst_70 : f32 to vector<8x64xf32>
    %168 = arith.subf %167, %164 : vector<8x64xf32>
    %169 = arith.select %166, %168, %164 : vector<8x64xi1>, vector<8x64xf32>
    %cst_71 = arith.constant 1.000000e+00 : f32
    %170 = vector.broadcast %cst_71 : f32 to vector<8x64xf32>
    %171 = arith.addf %170, %169 : vector<8x64xf32>
    %172 = arith.mulf %134, %171 : vector<8x64xf32>
    %c0_72 = arith.constant 0 : index
    %c0_73 = arith.constant 0 : index
    %c0_74 = arith.constant 0 : index
    %173 = vector.load %arg11[%c0_72, %c0_73, %c0_74] : memref<3x64x32xf32, #tpu.memory_space<vmem>>, vector<1x64x32xf32>
    %174 = vector.shape_cast %173 : vector<1x64x32xf32> to vector<64x32xf32>
    %cst_75 = arith.constant dense<0.000000e+00> : vector<8x32xf32>
    %175 = tpu.matmul %172, %174, %cst_75 {dimension_numbers = #tpu.dot_dimension_numbers<[1], [0], [0], [1], [0, 0, 1, 1], [], []>} : vector<8x64xf32>, vector<64x32xf32>, vector<8x32xf32> -> vector<8x32xf32>
    %c0_76 = arith.constant 0 : index
    %c0_77 = arith.constant 0 : index
    %c0_78 = arith.constant 0 : index
    %176 = vector.load %arg12[%c0_76, %c0_77, %c0_78] : memref<3x1x32xf32, #tpu.memory_space<vmem>>, vector<1x1x32xf32>
    %177 = vector.shape_cast %176 : vector<1x1x32xf32> to vector<1x32xf32>
    %178 = vector.broadcast %177 : vector<1x32xf32> to vector<8x32xf32>
    %179 = arith.addf %175, %178 : vector<8x32xf32>
    %180 = arith.addf %101, %179 : vector<8x32xf32>
    %c1 = arith.constant 1 : index
    %c0_79 = arith.constant 0 : index
    %c0_80 = arith.constant 0 : index
    %181 = vector.load %arg2[%c1, %c0_79, %c0_80] : memref<3x1x32xf32, #tpu.memory_space<vmem>>, vector<1x1x32xf32>
    %182 = vector.shape_cast %181 : vector<1x1x32xf32> to vector<1x32xf32>
    %c1_81 = arith.constant 1 : index
    %c0_82 = arith.constant 0 : index
    %c0_83 = arith.constant 0 : index
    %183 = vector.load %arg3[%c1_81, %c0_82, %c0_83] : memref<3x1x32xf32, #tpu.memory_space<vmem>>, vector<1x1x32xf32>
    %184 = vector.shape_cast %183 : vector<1x1x32xf32> to vector<1x32xf32>
    %cst_84 = arith.constant dense<0.000000e+00> : vector<8xf32>
    %185 = vector.multi_reduction <add>, %180, %cst_84 [1] : vector<8x32xf32> to vector<8xf32>
    %186 = vector.shape_cast %185 : vector<8xf32> to vector<8x1xf32>
    %cst_85 = arith.constant 3.200000e+01 : f32
    %187 = vector.broadcast %cst_85 : f32 to vector<8x1xf32>
    %188 = arith.divf %186, %187 : vector<8x1xf32>
    %189 = vector.broadcast %188 : vector<8x1xf32> to vector<8x32xf32>
    %190 = arith.subf %180, %189 : vector<8x32xf32>
    %191 = arith.mulf %190, %190 : vector<8x32xf32>
    %cst_86 = arith.constant dense<0.000000e+00> : vector<8xf32>
    %192 = vector.multi_reduction <add>, %191, %cst_86 [1] : vector<8x32xf32> to vector<8xf32>
    %193 = vector.shape_cast %192 : vector<8xf32> to vector<8x1xf32>
    %cst_87 = arith.constant 3.200000e+01 : f32
    %194 = vector.broadcast %cst_87 : f32 to vector<8x1xf32>
    %195 = arith.divf %193, %194 : vector<8x1xf32>
    %cst_88 = arith.constant 9.99999974E-6 : f32
    %196 = vector.broadcast %cst_88 : f32 to vector<8x1xf32>
    %197 = arith.addf %195, %196 : vector<8x1xf32>
    %198 = math.rsqrt %197 : vector<8x1xf32>
    %199 = vector.broadcast %198 : vector<8x1xf32> to vector<8x32xf32>
    %200 = arith.mulf %190, %199 : vector<8x32xf32>
    %201 = vector.broadcast %182 : vector<1x32xf32> to vector<8x32xf32>
    %202 = arith.mulf %200, %201 : vector<8x32xf32>
    %203 = vector.broadcast %184 : vector<1x32xf32> to vector<8x32xf32>
    %204 = arith.addf %202, %203 : vector<8x32xf32>
    %c1_89 = arith.constant 1 : index
    %c0_90 = arith.constant 0 : index
    %c0_91 = arith.constant 0 : index
    %205 = vector.load %arg4[%c1_89, %c0_90, %c0_91] : memref<3x32x96xf32, #tpu.memory_space<vmem>>, vector<1x32x96xf32>
    %206 = vector.shape_cast %205 : vector<1x32x96xf32> to vector<32x96xf32>
    %cst_92 = arith.constant dense<0.000000e+00> : vector<8x96xf32>
    %207 = tpu.matmul %204, %206, %cst_92 {dimension_numbers = #tpu.dot_dimension_numbers<[1], [0], [0], [1], [0, 0, 1, 1], [], []>} : vector<8x32xf32>, vector<32x96xf32>, vector<8x96xf32> -> vector<8x96xf32>
    %208 = vector.extract_strided_slice %207 {offsets = [0, 0], sizes = [8, 8], strides = [1, 1]} : vector<8x96xf32> to vector<8x8xf32>
    %209 = vector.extract_strided_slice %207 {offsets = [0, 32], sizes = [8, 8], strides = [1, 1]} : vector<8x96xf32> to vector<8x8xf32>
    %210 = vector.extract_strided_slice %207 {offsets = [0, 64], sizes = [8, 8], strides = [1, 1]} : vector<8x96xf32> to vector<8x8xf32>
    %211 = tpu.transpose %209, [1, 0] : vector<8x8xf32> -> vector<8x8xf32>
    %cst_93 = arith.constant dense<0.000000e+00> : vector<8x8xf32>
    %212 = tpu.matmul %208, %211, %cst_93 {dimension_numbers = #tpu.dot_dimension_numbers<[1], [0], [0], [1], [0, 0, 1, 1], [], []>} : vector<8x8xf32>, vector<8x8xf32>, vector<8x8xf32> -> vector<8x8xf32>
    %cst_94 = arith.constant dense<0xFF800000> : vector<8xf32>
    %213 = vector.multi_reduction <maximumf>, %212, %cst_94 [1] : vector<8x8xf32> to vector<8xf32>
    %214 = vector.shape_cast %213 : vector<8xf32> to vector<8x1xf32>
    %215 = vector.broadcast %214 : vector<8x1xf32> to vector<8x8xf32>
    %216 = arith.subf %212, %215 : vector<8x8xf32>
    %217 = math.exp %216 : vector<8x8xf32>
    %cst_95 = arith.constant dense<0.000000e+00> : vector<8xf32>
    %218 = vector.multi_reduction <add>, %217, %cst_95 [1] : vector<8x8xf32> to vector<8xf32>
    %219 = vector.shape_cast %218 : vector<8xf32> to vector<8x1xf32>
    %220 = tpu.reciprocal %219 : vector<8x1xf32> -> vector<8x1xf32>
    %221 = vector.broadcast %220 : vector<8x1xf32> to vector<8x8xf32>
    %222 = arith.mulf %217, %221 : vector<8x8xf32>
    %cst_96 = arith.constant dense<0.000000e+00> : vector<8x8xf32>
    %223 = tpu.matmul %222, %210, %cst_96 {dimension_numbers = #tpu.dot_dimension_numbers<[1], [0], [0], [1], [0, 0, 1, 1], [], []>} : vector<8x8xf32>, vector<8x8xf32>, vector<8x8xf32> -> vector<8x8xf32>
    %224 = vector.extract_strided_slice %207 {offsets = [0, 8], sizes = [8, 8], strides = [1, 1]} : vector<8x96xf32> to vector<8x8xf32>
    %225 = vector.extract_strided_slice %207 {offsets = [0, 40], sizes = [8, 8], strides = [1, 1]} : vector<8x96xf32> to vector<8x8xf32>
    %226 = vector.extract_strided_slice %207 {offsets = [0, 72], sizes = [8, 8], strides = [1, 1]} : vector<8x96xf32> to vector<8x8xf32>
    %227 = tpu.transpose %225, [1, 0] : vector<8x8xf32> -> vector<8x8xf32>
    %cst_97 = arith.constant dense<0.000000e+00> : vector<8x8xf32>
    %228 = tpu.matmul %224, %227, %cst_97 {dimension_numbers = #tpu.dot_dimension_numbers<[1], [0], [0], [1], [0, 0, 1, 1], [], []>} : vector<8x8xf32>, vector<8x8xf32>, vector<8x8xf32> -> vector<8x8xf32>
    %cst_98 = arith.constant dense<0xFF800000> : vector<8xf32>
    %229 = vector.multi_reduction <maximumf>, %228, %cst_98 [1] : vector<8x8xf32> to vector<8xf32>
    %230 = vector.shape_cast %229 : vector<8xf32> to vector<8x1xf32>
    %231 = vector.broadcast %230 : vector<8x1xf32> to vector<8x8xf32>
    %232 = arith.subf %228, %231 : vector<8x8xf32>
    %233 = math.exp %232 : vector<8x8xf32>
    %cst_99 = arith.constant dense<0.000000e+00> : vector<8xf32>
    %234 = vector.multi_reduction <add>, %233, %cst_99 [1] : vector<8x8xf32> to vector<8xf32>
    %235 = vector.shape_cast %234 : vector<8xf32> to vector<8x1xf32>
    %236 = tpu.reciprocal %235 : vector<8x1xf32> -> vector<8x1xf32>
    %237 = vector.broadcast %236 : vector<8x1xf32> to vector<8x8xf32>
    %238 = arith.mulf %233, %237 : vector<8x8xf32>
    %cst_100 = arith.constant dense<0.000000e+00> : vector<8x8xf32>
    %239 = tpu.matmul %238, %226, %cst_100 {dimension_numbers = #tpu.dot_dimension_numbers<[1], [0], [0], [1], [0, 0, 1, 1], [], []>} : vector<8x8xf32>, vector<8x8xf32>, vector<8x8xf32> -> vector<8x8xf32>
    %240 = vector.extract_strided_slice %207 {offsets = [0, 16], sizes = [8, 8], strides = [1, 1]} : vector<8x96xf32> to vector<8x8xf32>
    %241 = vector.extract_strided_slice %207 {offsets = [0, 48], sizes = [8, 8], strides = [1, 1]} : vector<8x96xf32> to vector<8x8xf32>
    %242 = vector.extract_strided_slice %207 {offsets = [0, 80], sizes = [8, 8], strides = [1, 1]} : vector<8x96xf32> to vector<8x8xf32>
    %243 = tpu.transpose %241, [1, 0] : vector<8x8xf32> -> vector<8x8xf32>
    %cst_101 = arith.constant dense<0.000000e+00> : vector<8x8xf32>
    %244 = tpu.matmul %240, %243, %cst_101 {dimension_numbers = #tpu.dot_dimension_numbers<[1], [0], [0], [1], [0, 0, 1, 1], [], []>} : vector<8x8xf32>, vector<8x8xf32>, vector<8x8xf32> -> vector<8x8xf32>
    %cst_102 = arith.constant dense<0xFF800000> : vector<8xf32>
    %245 = vector.multi_reduction <maximumf>, %244, %cst_102 [1] : vector<8x8xf32> to vector<8xf32>
    %246 = vector.shape_cast %245 : vector<8xf32> to vector<8x1xf32>
    %247 = vector.broadcast %246 : vector<8x1xf32> to vector<8x8xf32>
    %248 = arith.subf %244, %247 : vector<8x8xf32>
    %249 = math.exp %248 : vector<8x8xf32>
    %cst_103 = arith.constant dense<0.000000e+00> : vector<8xf32>
    %250 = vector.multi_reduction <add>, %249, %cst_103 [1] : vector<8x8xf32> to vector<8xf32>
    %251 = vector.shape_cast %250 : vector<8xf32> to vector<8x1xf32>
    %252 = tpu.reciprocal %251 : vector<8x1xf32> -> vector<8x1xf32>
    %253 = vector.broadcast %252 : vector<8x1xf32> to vector<8x8xf32>
    %254 = arith.mulf %249, %253 : vector<8x8xf32>
    %cst_104 = arith.constant dense<0.000000e+00> : vector<8x8xf32>
    %255 = tpu.matmul %254, %242, %cst_104 {dimension_numbers = #tpu.dot_dimension_numbers<[1], [0], [0], [1], [0, 0, 1, 1], [], []>} : vector<8x8xf32>, vector<8x8xf32>, vector<8x8xf32> -> vector<8x8xf32>
    %256 = vector.extract_strided_slice %207 {offsets = [0, 24], sizes = [8, 8], strides = [1, 1]} : vector<8x96xf32> to vector<8x8xf32>
    %257 = vector.extract_strided_slice %207 {offsets = [0, 56], sizes = [8, 8], strides = [1, 1]} : vector<8x96xf32> to vector<8x8xf32>
    %258 = vector.extract_strided_slice %207 {offsets = [0, 88], sizes = [8, 8], strides = [1, 1]} : vector<8x96xf32> to vector<8x8xf32>
    %259 = tpu.transpose %257, [1, 0] : vector<8x8xf32> -> vector<8x8xf32>
    %cst_105 = arith.constant dense<0.000000e+00> : vector<8x8xf32>
    %260 = tpu.matmul %256, %259, %cst_105 {dimension_numbers = #tpu.dot_dimension_numbers<[1], [0], [0], [1], [0, 0, 1, 1], [], []>} : vector<8x8xf32>, vector<8x8xf32>, vector<8x8xf32> -> vector<8x8xf32>
    %cst_106 = arith.constant dense<0xFF800000> : vector<8xf32>
    %261 = vector.multi_reduction <maximumf>, %260, %cst_106 [1] : vector<8x8xf32> to vector<8xf32>
    %262 = vector.shape_cast %261 : vector<8xf32> to vector<8x1xf32>
    %263 = vector.broadcast %262 : vector<8x1xf32> to vector<8x8xf32>
    %264 = arith.subf %260, %263 : vector<8x8xf32>
    %265 = math.exp %264 : vector<8x8xf32>
    %cst_107 = arith.constant dense<0.000000e+00> : vector<8xf32>
    %266 = vector.multi_reduction <add>, %265, %cst_107 [1] : vector<8x8xf32> to vector<8xf32>
    %267 = vector.shape_cast %266 : vector<8xf32> to vector<8x1xf32>
    %268 = tpu.reciprocal %267 : vector<8x1xf32> -> vector<8x1xf32>
    %269 = vector.broadcast %268 : vector<8x1xf32> to vector<8x8xf32>
    %270 = arith.mulf %265, %269 : vector<8x8xf32>
    %cst_108 = arith.constant dense<0.000000e+00> : vector<8x8xf32>
    %271 = tpu.matmul %270, %258, %cst_108 {dimension_numbers = #tpu.dot_dimension_numbers<[1], [0], [0], [1], [0, 0, 1, 1], [], []>} : vector<8x8xf32>, vector<8x8xf32>, vector<8x8xf32> -> vector<8x8xf32>
    %272 = tpu.concatenate %223, %239, %255, %271 in 1 : vector<8x8xf32>, vector<8x8xf32>, vector<8x8xf32>, vector<8x8xf32> -> vector<8x32xf32>
    %c1_109 = arith.constant 1 : index
    %c0_110 = arith.constant 0 : index
    %c0_111 = arith.constant 0 : index
    %273 = vector.load %arg5[%c1_109, %c0_110, %c0_111] : memref<3x32x32xf32, #tpu.memory_space<vmem>>, vector<1x32x32xf32>
    %274 = vector.shape_cast %273 : vector<1x32x32xf32> to vector<32x32xf32>
    %cst_112 = arith.constant dense<0.000000e+00> : vector<8x32xf32>
    %275 = tpu.matmul %272, %274, %cst_112 {dimension_numbers = #tpu.dot_dimension_numbers<[1], [0], [0], [1], [0, 0, 1, 1], [], []>} : vector<8x32xf32>, vector<32x32xf32>, vector<8x32xf32> -> vector<8x32xf32>
    %276 = arith.addf %180, %275 : vector<8x32xf32>
    %c1_113 = arith.constant 1 : index
    %c0_114 = arith.constant 0 : index
    %c0_115 = arith.constant 0 : index
    %277 = vector.load %arg6[%c1_113, %c0_114, %c0_115] : memref<3x1x32xf32, #tpu.memory_space<vmem>>, vector<1x1x32xf32>
    %278 = vector.shape_cast %277 : vector<1x1x32xf32> to vector<1x32xf32>
    %279 = vector.broadcast %278 : vector<1x32xf32> to vector<8x32xf32>
    %280 = arith.addf %276, %279 : vector<8x32xf32>
    %c1_116 = arith.constant 1 : index
    %c0_117 = arith.constant 0 : index
    %c0_118 = arith.constant 0 : index
    %281 = vector.load %arg7[%c1_116, %c0_117, %c0_118] : memref<3x1x32xf32, #tpu.memory_space<vmem>>, vector<1x1x32xf32>
    %282 = vector.shape_cast %281 : vector<1x1x32xf32> to vector<1x32xf32>
    %c1_119 = arith.constant 1 : index
    %c0_120 = arith.constant 0 : index
    %c0_121 = arith.constant 0 : index
    %283 = vector.load %arg8[%c1_119, %c0_120, %c0_121] : memref<3x1x32xf32, #tpu.memory_space<vmem>>, vector<1x1x32xf32>
    %284 = vector.shape_cast %283 : vector<1x1x32xf32> to vector<1x32xf32>
    %cst_122 = arith.constant dense<0.000000e+00> : vector<8xf32>
    %285 = vector.multi_reduction <add>, %280, %cst_122 [1] : vector<8x32xf32> to vector<8xf32>
    %286 = vector.shape_cast %285 : vector<8xf32> to vector<8x1xf32>
    %cst_123 = arith.constant 3.200000e+01 : f32
    %287 = vector.broadcast %cst_123 : f32 to vector<8x1xf32>
    %288 = arith.divf %286, %287 : vector<8x1xf32>
    %289 = vector.broadcast %288 : vector<8x1xf32> to vector<8x32xf32>
    %290 = arith.subf %280, %289 : vector<8x32xf32>
    %291 = arith.mulf %290, %290 : vector<8x32xf32>
    %cst_124 = arith.constant dense<0.000000e+00> : vector<8xf32>
    %292 = vector.multi_reduction <add>, %291, %cst_124 [1] : vector<8x32xf32> to vector<8xf32>
    %293 = vector.shape_cast %292 : vector<8xf32> to vector<8x1xf32>
    %cst_125 = arith.constant 3.200000e+01 : f32
    %294 = vector.broadcast %cst_125 : f32 to vector<8x1xf32>
    %295 = arith.divf %293, %294 : vector<8x1xf32>
    %cst_126 = arith.constant 9.99999974E-6 : f32
    %296 = vector.broadcast %cst_126 : f32 to vector<8x1xf32>
    %297 = arith.addf %295, %296 : vector<8x1xf32>
    %298 = math.rsqrt %297 : vector<8x1xf32>
    %299 = vector.broadcast %298 : vector<8x1xf32> to vector<8x32xf32>
    %300 = arith.mulf %290, %299 : vector<8x32xf32>
    %301 = vector.broadcast %282 : vector<1x32xf32> to vector<8x32xf32>
    %302 = arith.mulf %300, %301 : vector<8x32xf32>
    %303 = vector.broadcast %284 : vector<1x32xf32> to vector<8x32xf32>
    %304 = arith.addf %302, %303 : vector<8x32xf32>
    %c1_127 = arith.constant 1 : index
    %c0_128 = arith.constant 0 : index
    %c0_129 = arith.constant 0 : index
    %305 = vector.load %arg9[%c1_127, %c0_128, %c0_129] : memref<3x32x64xf32, #tpu.memory_space<vmem>>, vector<1x32x64xf32>
    %306 = vector.shape_cast %305 : vector<1x32x64xf32> to vector<32x64xf32>
    %cst_130 = arith.constant dense<0.000000e+00> : vector<8x64xf32>
    %307 = tpu.matmul %304, %306, %cst_130 {dimension_numbers = #tpu.dot_dimension_numbers<[1], [0], [0], [1], [0, 0, 1, 1], [], []>} : vector<8x32xf32>, vector<32x64xf32>, vector<8x64xf32> -> vector<8x64xf32>
    %c1_131 = arith.constant 1 : index
    %c0_132 = arith.constant 0 : index
    %c0_133 = arith.constant 0 : index
    %308 = vector.load %arg10[%c1_131, %c0_132, %c0_133] : memref<3x1x64xf32, #tpu.memory_space<vmem>>, vector<1x1x64xf32>
    %309 = vector.shape_cast %308 : vector<1x1x64xf32> to vector<1x64xf32>
    %310 = vector.broadcast %309 : vector<1x64xf32> to vector<8x64xf32>
    %311 = arith.addf %307, %310 : vector<8x64xf32>
    %cst_134 = arith.constant 5.000000e-01 : f32
    %312 = vector.broadcast %cst_134 : f32 to vector<8x64xf32>
    %313 = arith.mulf %312, %311 : vector<8x64xf32>
    %cst_135 = arith.constant 0.707106769 : f32
    %314 = vector.broadcast %cst_135 : f32 to vector<8x64xf32>
    %315 = arith.mulf %311, %314 : vector<8x64xf32>
    %316 = math.absf %315 : vector<8x64xf32>
    %cst_136 = arith.constant 0.327591091 : f32
    %317 = vector.broadcast %cst_136 : f32 to vector<8x64xf32>
    %318 = arith.mulf %317, %316 : vector<8x64xf32>
    %cst_137 = arith.constant 1.000000e+00 : f32
    %319 = vector.broadcast %cst_137 : f32 to vector<8x64xf32>
    %320 = arith.addf %319, %318 : vector<8x64xf32>
    %cst_138 = arith.constant 1.000000e+00 : f32
    %321 = vector.broadcast %cst_138 : f32 to vector<8x64xf32>
    %322 = arith.divf %321, %320 : vector<8x64xf32>
    %cst_139 = arith.constant 1.06140542 : f32
    %323 = vector.broadcast %cst_139 : f32 to vector<8x64xf32>
    %324 = arith.mulf %323, %322 : vector<8x64xf32>
    %cst_140 = arith.constant -1.45315206 : f32
    %325 = vector.broadcast %cst_140 : f32 to vector<8x64xf32>
    %326 = arith.addf %324, %325 : vector<8x64xf32>
    %327 = arith.mulf %326, %322 : vector<8x64xf32>
    %cst_141 = arith.constant 1.42141378 : f32
    %328 = vector.broadcast %cst_141 : f32 to vector<8x64xf32>
    %329 = arith.addf %327, %328 : vector<8x64xf32>
    %330 = arith.mulf %329, %322 : vector<8x64xf32>
    %cst_142 = arith.constant -0.284496725 : f32
    %331 = vector.broadcast %cst_142 : f32 to vector<8x64xf32>
    %332 = arith.addf %330, %331 : vector<8x64xf32>
    %333 = arith.mulf %332, %322 : vector<8x64xf32>
    %cst_143 = arith.constant 0.254829586 : f32
    %334 = vector.broadcast %cst_143 : f32 to vector<8x64xf32>
    %335 = arith.addf %333, %334 : vector<8x64xf32>
    %336 = arith.mulf %335, %322 : vector<8x64xf32>
    %cst_144 = arith.constant 0.000000e+00 : f32
    %337 = vector.broadcast %cst_144 : f32 to vector<8x64xf32>
    %338 = arith.subf %337, %316 : vector<8x64xf32>
    %339 = arith.mulf %338, %316 : vector<8x64xf32>
    %340 = math.exp %339 : vector<8x64xf32>
    %341 = arith.mulf %336, %340 : vector<8x64xf32>
    %cst_145 = arith.constant 1.000000e+00 : f32
    %342 = vector.broadcast %cst_145 : f32 to vector<8x64xf32>
    %343 = arith.subf %342, %341 : vector<8x64xf32>
    %cst_146 = arith.constant 0.000000e+00 : f32
    %344 = vector.broadcast %cst_146 : f32 to vector<8x64xf32>
    %345 = arith.cmpf olt, %315, %344 : vector<8x64xf32>
    %cst_147 = arith.constant 0.000000e+00 : f32
    %346 = vector.broadcast %cst_147 : f32 to vector<8x64xf32>
    %347 = arith.subf %346, %343 : vector<8x64xf32>
    %348 = arith.select %345, %347, %343 : vector<8x64xi1>, vector<8x64xf32>
    %cst_148 = arith.constant 1.000000e+00 : f32
    %349 = vector.broadcast %cst_148 : f32 to vector<8x64xf32>
    %350 = arith.addf %349, %348 : vector<8x64xf32>
    %351 = arith.mulf %313, %350 : vector<8x64xf32>
    %c1_149 = arith.constant 1 : index
    %c0_150 = arith.constant 0 : index
    %c0_151 = arith.constant 0 : index
    %352 = vector.load %arg11[%c1_149, %c0_150, %c0_151] : memref<3x64x32xf32, #tpu.memory_space<vmem>>, vector<1x64x32xf32>
    %353 = vector.shape_cast %352 : vector<1x64x32xf32> to vector<64x32xf32>
    %cst_152 = arith.constant dense<0.000000e+00> : vector<8x32xf32>
    %354 = tpu.matmul %351, %353, %cst_152 {dimension_numbers = #tpu.dot_dimension_numbers<[1], [0], [0], [1], [0, 0, 1, 1], [], []>} : vector<8x64xf32>, vector<64x32xf32>, vector<8x32xf32> -> vector<8x32xf32>
    %c1_153 = arith.constant 1 : index
    %c0_154 = arith.constant 0 : index
    %c0_155 = arith.constant 0 : index
    %355 = vector.load %arg12[%c1_153, %c0_154, %c0_155] : memref<3x1x32xf32, #tpu.memory_space<vmem>>, vector<1x1x32xf32>
    %356 = vector.shape_cast %355 : vector<1x1x32xf32> to vector<1x32xf32>
    %357 = vector.broadcast %356 : vector<1x32xf32> to vector<8x32xf32>
    %358 = arith.addf %354, %357 : vector<8x32xf32>
    %359 = arith.addf %280, %358 : vector<8x32xf32>
    %c2 = arith.constant 2 : index
    %c0_156 = arith.constant 0 : index
    %c0_157 = arith.constant 0 : index
    %360 = vector.load %arg2[%c2, %c0_156, %c0_157] : memref<3x1x32xf32, #tpu.memory_space<vmem>>, vector<1x1x32xf32>
    %361 = vector.shape_cast %360 : vector<1x1x32xf32> to vector<1x32xf32>
    %c2_158 = arith.constant 2 : index
    %c0_159 = arith.constant 0 : index
    %c0_160 = arith.constant 0 : index
    %362 = vector.load %arg3[%c2_158, %c0_159, %c0_160] : memref<3x1x32xf32, #tpu.memory_space<vmem>>, vector<1x1x32xf32>
    %363 = vector.shape_cast %362 : vector<1x1x32xf32> to vector<1x32xf32>
    %cst_161 = arith.constant dense<0.000000e+00> : vector<8xf32>
    %364 = vector.multi_reduction <add>, %359, %cst_161 [1] : vector<8x32xf32> to vector<8xf32>
    %365 = vector.shape_cast %364 : vector<8xf32> to vector<8x1xf32>
    %cst_162 = arith.constant 3.200000e+01 : f32
    %366 = vector.broadcast %cst_162 : f32 to vector<8x1xf32>
    %367 = arith.divf %365, %366 : vector<8x1xf32>
    %368 = vector.broadcast %367 : vector<8x1xf32> to vector<8x32xf32>
    %369 = arith.subf %359, %368 : vector<8x32xf32>
    %370 = arith.mulf %369, %369 : vector<8x32xf32>
    %cst_163 = arith.constant dense<0.000000e+00> : vector<8xf32>
    %371 = vector.multi_reduction <add>, %370, %cst_163 [1] : vector<8x32xf32> to vector<8xf32>
    %372 = vector.shape_cast %371 : vector<8xf32> to vector<8x1xf32>
    %cst_164 = arith.constant 3.200000e+01 : f32
    %373 = vector.broadcast %cst_164 : f32 to vector<8x1xf32>
    %374 = arith.divf %372, %373 : vector<8x1xf32>
    %cst_165 = arith.constant 9.99999974E-6 : f32
    %375 = vector.broadcast %cst_165 : f32 to vector<8x1xf32>
    %376 = arith.addf %374, %375 : vector<8x1xf32>
    %377 = math.rsqrt %376 : vector<8x1xf32>
    %378 = vector.broadcast %377 : vector<8x1xf32> to vector<8x32xf32>
    %379 = arith.mulf %369, %378 : vector<8x32xf32>
    %380 = vector.broadcast %361 : vector<1x32xf32> to vector<8x32xf32>
    %381 = arith.mulf %379, %380 : vector<8x32xf32>
    %382 = vector.broadcast %363 : vector<1x32xf32> to vector<8x32xf32>
    %383 = arith.addf %381, %382 : vector<8x32xf32>
    %c2_166 = arith.constant 2 : index
    %c0_167 = arith.constant 0 : index
    %c0_168 = arith.constant 0 : index
    %384 = vector.load %arg4[%c2_166, %c0_167, %c0_168] : memref<3x32x96xf32, #tpu.memory_space<vmem>>, vector<1x32x96xf32>
    %385 = vector.shape_cast %384 : vector<1x32x96xf32> to vector<32x96xf32>
    %cst_169 = arith.constant dense<0.000000e+00> : vector<8x96xf32>
    %386 = tpu.matmul %383, %385, %cst_169 {dimension_numbers = #tpu.dot_dimension_numbers<[1], [0], [0], [1], [0, 0, 1, 1], [], []>} : vector<8x32xf32>, vector<32x96xf32>, vector<8x96xf32> -> vector<8x96xf32>
    %387 = vector.extract_strided_slice %386 {offsets = [0, 0], sizes = [8, 8], strides = [1, 1]} : vector<8x96xf32> to vector<8x8xf32>
    %388 = vector.extract_strided_slice %386 {offsets = [0, 32], sizes = [8, 8], strides = [1, 1]} : vector<8x96xf32> to vector<8x8xf32>
    %389 = vector.extract_strided_slice %386 {offsets = [0, 64], sizes = [8, 8], strides = [1, 1]} : vector<8x96xf32> to vector<8x8xf32>
    %390 = tpu.transpose %388, [1, 0] : vector<8x8xf32> -> vector<8x8xf32>
    %cst_170 = arith.constant dense<0.000000e+00> : vector<8x8xf32>
    %391 = tpu.matmul %387, %390, %cst_170 {dimension_numbers = #tpu.dot_dimension_numbers<[1], [0], [0], [1], [0, 0, 1, 1], [], []>} : vector<8x8xf32>, vector<8x8xf32>, vector<8x8xf32> -> vector<8x8xf32>
    %cst_171 = arith.constant dense<0xFF800000> : vector<8xf32>
    %392 = vector.multi_reduction <maximumf>, %391, %cst_171 [1] : vector<8x8xf32> to vector<8xf32>
    %393 = vector.shape_cast %392 : vector<8xf32> to vector<8x1xf32>
    %394 = vector.broadcast %393 : vector<8x1xf32> to vector<8x8xf32>
    %395 = arith.subf %391, %394 : vector<8x8xf32>
    %396 = math.exp %395 : vector<8x8xf32>
    %cst_172 = arith.constant dense<0.000000e+00> : vector<8xf32>
    %397 = vector.multi_reduction <add>, %396, %cst_172 [1] : vector<8x8xf32> to vector<8xf32>
    %398 = vector.shape_cast %397 : vector<8xf32> to vector<8x1xf32>
    %399 = tpu.reciprocal %398 : vector<8x1xf32> -> vector<8x1xf32>
    %400 = vector.broadcast %399 : vector<8x1xf32> to vector<8x8xf32>
    %401 = arith.mulf %396, %400 : vector<8x8xf32>
    %cst_173 = arith.constant dense<0.000000e+00> : vector<8x8xf32>
    %402 = tpu.matmul %401, %389, %cst_173 {dimension_numbers = #tpu.dot_dimension_numbers<[1], [0], [0], [1], [0, 0, 1, 1], [], []>} : vector<8x8xf32>, vector<8x8xf32>, vector<8x8xf32> -> vector<8x8xf32>
    %403 = vector.extract_strided_slice %386 {offsets = [0, 8], sizes = [8, 8], strides = [1, 1]} : vector<8x96xf32> to vector<8x8xf32>
    %404 = vector.extract_strided_slice %386 {offsets = [0, 40], sizes = [8, 8], strides = [1, 1]} : vector<8x96xf32> to vector<8x8xf32>
    %405 = vector.extract_strided_slice %386 {offsets = [0, 72], sizes = [8, 8], strides = [1, 1]} : vector<8x96xf32> to vector<8x8xf32>
    %406 = tpu.transpose %404, [1, 0] : vector<8x8xf32> -> vector<8x8xf32>
    %cst_174 = arith.constant dense<0.000000e+00> : vector<8x8xf32>
    %407 = tpu.matmul %403, %406, %cst_174 {dimension_numbers = #tpu.dot_dimension_numbers<[1], [0], [0], [1], [0, 0, 1, 1], [], []>} : vector<8x8xf32>, vector<8x8xf32>, vector<8x8xf32> -> vector<8x8xf32>
    %cst_175 = arith.constant dense<0xFF800000> : vector<8xf32>
    %408 = vector.multi_reduction <maximumf>, %407, %cst_175 [1] : vector<8x8xf32> to vector<8xf32>
    %409 = vector.shape_cast %408 : vector<8xf32> to vector<8x1xf32>
    %410 = vector.broadcast %409 : vector<8x1xf32> to vector<8x8xf32>
    %411 = arith.subf %407, %410 : vector<8x8xf32>
    %412 = math.exp %411 : vector<8x8xf32>
    %cst_176 = arith.constant dense<0.000000e+00> : vector<8xf32>
    %413 = vector.multi_reduction <add>, %412, %cst_176 [1] : vector<8x8xf32> to vector<8xf32>
    %414 = vector.shape_cast %413 : vector<8xf32> to vector<8x1xf32>
    %415 = tpu.reciprocal %414 : vector<8x1xf32> -> vector<8x1xf32>
    %416 = vector.broadcast %415 : vector<8x1xf32> to vector<8x8xf32>
    %417 = arith.mulf %412, %416 : vector<8x8xf32>
    %cst_177 = arith.constant dense<0.000000e+00> : vector<8x8xf32>
    %418 = tpu.matmul %417, %405, %cst_177 {dimension_numbers = #tpu.dot_dimension_numbers<[1], [0], [0], [1], [0, 0, 1, 1], [], []>} : vector<8x8xf32>, vector<8x8xf32>, vector<8x8xf32> -> vector<8x8xf32>
    %419 = vector.extract_strided_slice %386 {offsets = [0, 16], sizes = [8, 8], strides = [1, 1]} : vector<8x96xf32> to vector<8x8xf32>
    %420 = vector.extract_strided_slice %386 {offsets = [0, 48], sizes = [8, 8], strides = [1, 1]} : vector<8x96xf32> to vector<8x8xf32>
    %421 = vector.extract_strided_slice %386 {offsets = [0, 80], sizes = [8, 8], strides = [1, 1]} : vector<8x96xf32> to vector<8x8xf32>
    %422 = tpu.transpose %420, [1, 0] : vector<8x8xf32> -> vector<8x8xf32>
    %cst_178 = arith.constant dense<0.000000e+00> : vector<8x8xf32>
    %423 = tpu.matmul %419, %422, %cst_178 {dimension_numbers = #tpu.dot_dimension_numbers<[1], [0], [0], [1], [0, 0, 1, 1], [], []>} : vector<8x8xf32>, vector<8x8xf32>, vector<8x8xf32> -> vector<8x8xf32>
    %cst_179 = arith.constant dense<0xFF800000> : vector<8xf32>
    %424 = vector.multi_reduction <maximumf>, %423, %cst_179 [1] : vector<8x8xf32> to vector<8xf32>
    %425 = vector.shape_cast %424 : vector<8xf32> to vector<8x1xf32>
    %426 = vector.broadcast %425 : vector<8x1xf32> to vector<8x8xf32>
    %427 = arith.subf %423, %426 : vector<8x8xf32>
    %428 = math.exp %427 : vector<8x8xf32>
    %cst_180 = arith.constant dense<0.000000e+00> : vector<8xf32>
    %429 = vector.multi_reduction <add>, %428, %cst_180 [1] : vector<8x8xf32> to vector<8xf32>
    %430 = vector.shape_cast %429 : vector<8xf32> to vector<8x1xf32>
    %431 = tpu.reciprocal %430 : vector<8x1xf32> -> vector<8x1xf32>
    %432 = vector.broadcast %431 : vector<8x1xf32> to vector<8x8xf32>
    %433 = arith.mulf %428, %432 : vector<8x8xf32>
    %cst_181 = arith.constant dense<0.000000e+00> : vector<8x8xf32>
    %434 = tpu.matmul %433, %421, %cst_181 {dimension_numbers = #tpu.dot_dimension_numbers<[1], [0], [0], [1], [0, 0, 1, 1], [], []>} : vector<8x8xf32>, vector<8x8xf32>, vector<8x8xf32> -> vector<8x8xf32>
    %435 = vector.extract_strided_slice %386 {offsets = [0, 24], sizes = [8, 8], strides = [1, 1]} : vector<8x96xf32> to vector<8x8xf32>
    %436 = vector.extract_strided_slice %386 {offsets = [0, 56], sizes = [8, 8], strides = [1, 1]} : vector<8x96xf32> to vector<8x8xf32>
    %437 = vector.extract_strided_slice %386 {offsets = [0, 88], sizes = [8, 8], strides = [1, 1]} : vector<8x96xf32> to vector<8x8xf32>
    %438 = tpu.transpose %436, [1, 0] : vector<8x8xf32> -> vector<8x8xf32>
    %cst_182 = arith.constant dense<0.000000e+00> : vector<8x8xf32>
    %439 = tpu.matmul %435, %438, %cst_182 {dimension_numbers = #tpu.dot_dimension_numbers<[1], [0], [0], [1], [0, 0, 1, 1], [], []>} : vector<8x8xf32>, vector<8x8xf32>, vector<8x8xf32> -> vector<8x8xf32>
    %cst_183 = arith.constant dense<0xFF800000> : vector<8xf32>
    %440 = vector.multi_reduction <maximumf>, %439, %cst_183 [1] : vector<8x8xf32> to vector<8xf32>
    %441 = vector.shape_cast %440 : vector<8xf32> to vector<8x1xf32>
    %442 = vector.broadcast %441 : vector<8x1xf32> to vector<8x8xf32>
    %443 = arith.subf %439, %442 : vector<8x8xf32>
    %444 = math.exp %443 : vector<8x8xf32>
    %cst_184 = arith.constant dense<0.000000e+00> : vector<8xf32>
    %445 = vector.multi_reduction <add>, %444, %cst_184 [1] : vector<8x8xf32> to vector<8xf32>
    %446 = vector.shape_cast %445 : vector<8xf32> to vector<8x1xf32>
    %447 = tpu.reciprocal %446 : vector<8x1xf32> -> vector<8x1xf32>
    %448 = vector.broadcast %447 : vector<8x1xf32> to vector<8x8xf32>
    %449 = arith.mulf %444, %448 : vector<8x8xf32>
    %cst_185 = arith.constant dense<0.000000e+00> : vector<8x8xf32>
    %450 = tpu.matmul %449, %437, %cst_185 {dimension_numbers = #tpu.dot_dimension_numbers<[1], [0], [0], [1], [0, 0, 1, 1], [], []>} : vector<8x8xf32>, vector<8x8xf32>, vector<8x8xf32> -> vector<8x8xf32>
    %451 = tpu.concatenate %402, %418, %434, %450 in 1 : vector<8x8xf32>, vector<8x8xf32>, vector<8x8xf32>, vector<8x8xf32> -> vector<8x32xf32>
    %c2_186 = arith.constant 2 : index
    %c0_187 = arith.constant 0 : index
    %c0_188 = arith.constant 0 : index
    %452 = vector.load %arg5[%c2_186, %c0_187, %c0_188] : memref<3x32x32xf32, #tpu.memory_space<vmem>>, vector<1x32x32xf32>
    %453 = vector.shape_cast %452 : vector<1x32x32xf32> to vector<32x32xf32>
    %cst_189 = arith.constant dense<0.000000e+00> : vector<8x32xf32>
    %454 = tpu.matmul %451, %453, %cst_189 {dimension_numbers = #tpu.dot_dimension_numbers<[1], [0], [0], [1], [0, 0, 1, 1], [], []>} : vector<8x32xf32>, vector<32x32xf32>, vector<8x32xf32> -> vector<8x32xf32>
    %455 = arith.addf %359, %454 : vector<8x32xf32>
    %c2_190 = arith.constant 2 : index
    %c0_191 = arith.constant 0 : index
    %c0_192 = arith.constant 0 : index
    %456 = vector.load %arg6[%c2_190, %c0_191, %c0_192] : memref<3x1x32xf32, #tpu.memory_space<vmem>>, vector<1x1x32xf32>
    %457 = vector.shape_cast %456 : vector<1x1x32xf32> to vector<1x32xf32>
    %458 = vector.broadcast %457 : vector<1x32xf32> to vector<8x32xf32>
    %459 = arith.addf %455, %458 : vector<8x32xf32>
    %c2_193 = arith.constant 2 : index
    %c0_194 = arith.constant 0 : index
    %c0_195 = arith.constant 0 : index
    %460 = vector.load %arg7[%c2_193, %c0_194, %c0_195] : memref<3x1x32xf32, #tpu.memory_space<vmem>>, vector<1x1x32xf32>
    %461 = vector.shape_cast %460 : vector<1x1x32xf32> to vector<1x32xf32>
    %c2_196 = arith.constant 2 : index
    %c0_197 = arith.constant 0 : index
    %c0_198 = arith.constant 0 : index
    %462 = vector.load %arg8[%c2_196, %c0_197, %c0_198] : memref<3x1x32xf32, #tpu.memory_space<vmem>>, vector<1x1x32xf32>
    %463 = vector.shape_cast %462 : vector<1x1x32xf32> to vector<1x32xf32>
    %cst_199 = arith.constant dense<0.000000e+00> : vector<8xf32>
    %464 = vector.multi_reduction <add>, %459, %cst_199 [1] : vector<8x32xf32> to vector<8xf32>
    %465 = vector.shape_cast %464 : vector<8xf32> to vector<8x1xf32>
    %cst_200 = arith.constant 3.200000e+01 : f32
    %466 = vector.broadcast %cst_200 : f32 to vector<8x1xf32>
    %467 = arith.divf %465, %466 : vector<8x1xf32>
    %468 = vector.broadcast %467 : vector<8x1xf32> to vector<8x32xf32>
    %469 = arith.subf %459, %468 : vector<8x32xf32>
    %470 = arith.mulf %469, %469 : vector<8x32xf32>
    %cst_201 = arith.constant dense<0.000000e+00> : vector<8xf32>
    %471 = vector.multi_reduction <add>, %470, %cst_201 [1] : vector<8x32xf32> to vector<8xf32>
    %472 = vector.shape_cast %471 : vector<8xf32> to vector<8x1xf32>
    %cst_202 = arith.constant 3.200000e+01 : f32
    %473 = vector.broadcast %cst_202 : f32 to vector<8x1xf32>
    %474 = arith.divf %472, %473 : vector<8x1xf32>
    %cst_203 = arith.constant 9.99999974E-6 : f32
    %475 = vector.broadcast %cst_203 : f32 to vector<8x1xf32>
    %476 = arith.addf %474, %475 : vector<8x1xf32>
    %477 = math.rsqrt %476 : vector<8x1xf32>
    %478 = vector.broadcast %477 : vector<8x1xf32> to vector<8x32xf32>
    %479 = arith.mulf %469, %478 : vector<8x32xf32>
    %480 = vector.broadcast %461 : vector<1x32xf32> to vector<8x32xf32>
    %481 = arith.mulf %479, %480 : vector<8x32xf32>
    %482 = vector.broadcast %463 : vector<1x32xf32> to vector<8x32xf32>
    %483 = arith.addf %481, %482 : vector<8x32xf32>
    %c2_204 = arith.constant 2 : index
    %c0_205 = arith.constant 0 : index
    %c0_206 = arith.constant 0 : index
    %484 = vector.load %arg9[%c2_204, %c0_205, %c0_206] : memref<3x32x64xf32, #tpu.memory_space<vmem>>, vector<1x32x64xf32>
    %485 = vector.shape_cast %484 : vector<1x32x64xf32> to vector<32x64xf32>
    %cst_207 = arith.constant dense<0.000000e+00> : vector<8x64xf32>
    %486 = tpu.matmul %483, %485, %cst_207 {dimension_numbers = #tpu.dot_dimension_numbers<[1], [0], [0], [1], [0, 0, 1, 1], [], []>} : vector<8x32xf32>, vector<32x64xf32>, vector<8x64xf32> -> vector<8x64xf32>
    %c2_208 = arith.constant 2 : index
    %c0_209 = arith.constant 0 : index
    %c0_210 = arith.constant 0 : index
    %487 = vector.load %arg10[%c2_208, %c0_209, %c0_210] : memref<3x1x64xf32, #tpu.memory_space<vmem>>, vector<1x1x64xf32>
    %488 = vector.shape_cast %487 : vector<1x1x64xf32> to vector<1x64xf32>
    %489 = vector.broadcast %488 : vector<1x64xf32> to vector<8x64xf32>
    %490 = arith.addf %486, %489 : vector<8x64xf32>
    %cst_211 = arith.constant 5.000000e-01 : f32
    %491 = vector.broadcast %cst_211 : f32 to vector<8x64xf32>
    %492 = arith.mulf %491, %490 : vector<8x64xf32>
    %cst_212 = arith.constant 0.707106769 : f32
    %493 = vector.broadcast %cst_212 : f32 to vector<8x64xf32>
    %494 = arith.mulf %490, %493 : vector<8x64xf32>
    %495 = math.absf %494 : vector<8x64xf32>
    %cst_213 = arith.constant 0.327591091 : f32
    %496 = vector.broadcast %cst_213 : f32 to vector<8x64xf32>
    %497 = arith.mulf %496, %495 : vector<8x64xf32>
    %cst_214 = arith.constant 1.000000e+00 : f32
    %498 = vector.broadcast %cst_214 : f32 to vector<8x64xf32>
    %499 = arith.addf %498, %497 : vector<8x64xf32>
    %cst_215 = arith.constant 1.000000e+00 : f32
    %500 = vector.broadcast %cst_215 : f32 to vector<8x64xf32>
    %501 = arith.divf %500, %499 : vector<8x64xf32>
    %cst_216 = arith.constant 1.06140542 : f32
    %502 = vector.broadcast %cst_216 : f32 to vector<8x64xf32>
    %503 = arith.mulf %502, %501 : vector<8x64xf32>
    %cst_217 = arith.constant -1.45315206 : f32
    %504 = vector.broadcast %cst_217 : f32 to vector<8x64xf32>
    %505 = arith.addf %503, %504 : vector<8x64xf32>
    %506 = arith.mulf %505, %501 : vector<8x64xf32>
    %cst_218 = arith.constant 1.42141378 : f32
    %507 = vector.broadcast %cst_218 : f32 to vector<8x64xf32>
    %508 = arith.addf %506, %507 : vector<8x64xf32>
    %509 = arith.mulf %508, %501 : vector<8x64xf32>
    %cst_219 = arith.constant -0.284496725 : f32
    %510 = vector.broadcast %cst_219 : f32 to vector<8x64xf32>
    %511 = arith.addf %509, %510 : vector<8x64xf32>
    %512 = arith.mulf %511, %501 : vector<8x64xf32>
    %cst_220 = arith.constant 0.254829586 : f32
    %513 = vector.broadcast %cst_220 : f32 to vector<8x64xf32>
    %514 = arith.addf %512, %513 : vector<8x64xf32>
    %515 = arith.mulf %514, %501 : vector<8x64xf32>
    %cst_221 = arith.constant 0.000000e+00 : f32
    %516 = vector.broadcast %cst_221 : f32 to vector<8x64xf32>
    %517 = arith.subf %516, %495 : vector<8x64xf32>
    %518 = arith.mulf %517, %495 : vector<8x64xf32>
    %519 = math.exp %518 : vector<8x64xf32>
    %520 = arith.mulf %515, %519 : vector<8x64xf32>
    %cst_222 = arith.constant 1.000000e+00 : f32
    %521 = vector.broadcast %cst_222 : f32 to vector<8x64xf32>
    %522 = arith.subf %521, %520 : vector<8x64xf32>
    %cst_223 = arith.constant 0.000000e+00 : f32
    %523 = vector.broadcast %cst_223 : f32 to vector<8x64xf32>
    %524 = arith.cmpf olt, %494, %523 : vector<8x64xf32>
    %cst_224 = arith.constant 0.000000e+00 : f32
    %525 = vector.broadcast %cst_224 : f32 to vector<8x64xf32>
    %526 = arith.subf %525, %522 : vector<8x64xf32>
    %527 = arith.select %524, %526, %522 : vector<8x64xi1>, vector<8x64xf32>
    %cst_225 = arith.constant 1.000000e+00 : f32
    %528 = vector.broadcast %cst_225 : f32 to vector<8x64xf32>
    %529 = arith.addf %528, %527 : vector<8x64xf32>
    %530 = arith.mulf %492, %529 : vector<8x64xf32>
    %c2_226 = arith.constant 2 : index
    %c0_227 = arith.constant 0 : index
    %c0_228 = arith.constant 0 : index
    %531 = vector.load %arg11[%c2_226, %c0_227, %c0_228] : memref<3x64x32xf32, #tpu.memory_space<vmem>>, vector<1x64x32xf32>
    %532 = vector.shape_cast %531 : vector<1x64x32xf32> to vector<64x32xf32>
    %cst_229 = arith.constant dense<0.000000e+00> : vector<8x32xf32>
    %533 = tpu.matmul %530, %532, %cst_229 {dimension_numbers = #tpu.dot_dimension_numbers<[1], [0], [0], [1], [0, 0, 1, 1], [], []>} : vector<8x64xf32>, vector<64x32xf32>, vector<8x32xf32> -> vector<8x32xf32>
    %c2_230 = arith.constant 2 : index
    %c0_231 = arith.constant 0 : index
    %c0_232 = arith.constant 0 : index
    %534 = vector.load %arg12[%c2_230, %c0_231, %c0_232] : memref<3x1x32xf32, #tpu.memory_space<vmem>>, vector<1x1x32xf32>
    %535 = vector.shape_cast %534 : vector<1x1x32xf32> to vector<1x32xf32>
    %536 = vector.broadcast %535 : vector<1x32xf32> to vector<8x32xf32>
    %537 = arith.addf %533, %536 : vector<8x32xf32>
    %538 = arith.addf %459, %537 : vector<8x32xf32>
    %c0_233 = arith.constant 0 : index
    %c0_234 = arith.constant 0 : index
    %c0_235 = arith.constant 0 : index
    %539 = vector.load %arg13[%c0_233, %c0_234, %c0_235] : memref<1x8x32xf32, #tpu.memory_space<vmem>>, vector<1x8x32xf32>
    %540 = vector.shape_cast %539 : vector<1x8x32xf32> to vector<8x32xf32>
    %541 = vector.shape_cast %538 : vector<8x32xf32> to vector<1x8x32xf32>
    tpu.vector_store %arg13[%c0_233, %c0_234, %c0_235], %541 {strides = array<i32>} : memref<1x8x32xf32, #tpu.memory_space<vmem>>, vector<1x8x32xf32>,
    return
  }
  func.func @transform_0(%arg0: i32) -> (i32, i32, i32) {
    %c0_i32 = arith.constant 0 : i32
    %c0_i32_0 = arith.constant 0 : i32
    %c0_i32_1 = arith.constant 0 : i32
    return %arg0, %c0_i32, %c0_i32_0 : i32, i32, i32
  }
  func.func @transform_1(%arg0: i32) -> (i32, i32, i32) {
    %c0_i32 = arith.constant 0 : i32
    %c0_i32_0 = arith.constant 0 : i32
    %c0_i32_1 = arith.constant 0 : i32
    %c0_i32_2 = arith.constant 0 : i32
    return %c0_i32, %c0_i32_0, %c0_i32_1 : i32, i32, i32
  }
  func.func @transform_2(%arg0: i32) -> (i32, i32, i32) {
    %c0_i32 = arith.constant 0 : i32
    %c0_i32_0 = arith.constant 0 : i32
    %c0_i32_1 = arith.constant 0 : i32
    %c0_i32_2 = arith.constant 0 : i32
    return %c0_i32, %c0_i32_0, %c0_i32_1 : i32, i32, i32
  }
  func.func @transform_3(%arg0: i32) -> (i32, i32, i32) {
    %c0_i32 = arith.constant 0 : i32
    %c0_i32_0 = arith.constant 0 : i32
    %c0_i32_1 = arith.constant 0 : i32
    %c0_i32_2 = arith.constant 0 : i32
    return %c0_i32, %c0_i32_0, %c0_i32_1 : i32, i32, i32
  }
  func.func @transform_4(%arg0: i32) -> (i32, i32, i32) {
    %c0_i32 = arith.constant 0 : i32
    %c0_i32_0 = arith.constant 0 : i32
    %c0_i32_1 = arith.constant 0 : i32
    %c0_i32_2 = arith.constant 0 : i32
    return %c0_i32, %c0_i32_0, %c0_i32_1 : i32, i32, i32
  }
  func.func @transform_5(%arg0: i32) -> (i32, i32, i32) {
    %c0_i32 = arith.constant 0 : i32
    %c0_i32_0 = arith.constant 0 : i32
    %c0_i32_1 = arith.constant 0 : i32
    %c0_i32_2 = arith.constant 0 : i32
    return %c0_i32, %c0_i32_0, %c0_i32_1 : i32, i32, i32
  }
  func.func @transform_6(%arg0: i32) -> (i32, i32, i32) {
    %c0_i32 = arith.constant 0 : i32
    %c0_i32_0 = arith.constant 0 : i32
    %c0_i32_1 = arith.constant 0 : i32
    %c0_i32_2 = arith.constant 0 : i32
    return %c0_i32, %c0_i32_0, %c0_i32_1 : i32, i32, i32
  }
  func.func @transform_7(%arg0: i32) -> (i32, i32, i32) {
    %c0_i32 = arith.constant 0 : i32
    %c0_i32_0 = arith.constant 0 : i32
    %c0_i32_1 = arith.constant 0 : i32
    %c0_i32_2 = arith.constant 0 : i32
    return %c0_i32, %c0_i32_0, %c0_i32_1 : i32, i32, i32
  }
  func.func @transform_8(%arg0: i32) -> (i32, i32, i32) {
    %c0_i32 = arith.constant 0 : i32
    %c0_i32_0 = arith.constant 0 : i32
    %c0_i32_1 = arith.constant 0 : i32
    %c0_i32_2 = arith.constant 0 : i32
    return %c0_i32, %c0_i32_0, %c0_i32_1 : i32, i32, i32
  }
  func.func @transform_9(%arg0: i32) -> (i32, i32, i32) {
    %c0_i32 = arith.constant 0 : i32
    %c0_i32_0 = arith.constant 0 : i32
    %c0_i32_1 = arith.constant 0 : i32
    %c0_i32_2 = arith.constant 0 : i32
    return %c0_i32, %c0_i32_0, %c0_i32_1 : i32, i32, i32
  }
  func.func @transform_10(%arg0: i32) -> (i32, i32, i32) {
    %c0_i32 = arith.constant 0 : i32
    %c0_i32_0 = arith.constant 0 : i32
    %c0_i32_1 = arith.constant 0 : i32
    %c0_i32_2 = arith.constant 0 : i32
    return %c0_i32, %c0_i32_0, %c0_i32_1 : i32, i32, i32
  }
  func.func @transform_11(%arg0: i32) -> (i32, i32, i32) {
    %c0_i32 = arith.constant 0 : i32
    %c0_i32_0 = arith.constant 0 : i32
    %c0_i32_1 = arith.constant 0 : i32
    %c0_i32_2 = arith.constant 0 : i32
    return %c0_i32, %c0_i32_0, %c0_i32_1 : i32, i32, i32
  }
  func.func @transform_12(%arg0: i32) -> (i32, i32, i32) {
    %c0_i32 = arith.constant 0 : i32
    %c0_i32_0 = arith.constant 0 : i32
    %c0_i32_1 = arith.constant 0 : i32
    return %arg0, %c0_i32, %c0_i32_0 : i32, i32, i32
  }
}

</mosaic_0001>

<llo_original>
// kernel: tpu_custom_call.1
$region0: #{tpu_custom_call.1}
  #allocation0 [shape = 'u32[]', space=smem, size = 0x4, offset = 0x4, fixed_abs, tag = 'smem constant byte address 0x4 - core index']
  #allocation1 [shape = 'u32[144,128]{1,0:T(1,128)}', space=vmem, size = 0x12000, scoped, tag = 'internal scratch']
  %s0 = inlined_call_operand.hbm [shape: f32[2,8,32], index: 0, kind: input, shape index: {}]
  %s1 = inlined_call_operand.vmem [shape: f32[3,1,32], index: 1, kind: input, shape index: {}]
  %s2 = inlined_call_operand.vmem [shape: f32[3,1,32], index: 2, kind: input, shape index: {}]
  %s3 = inlined_call_operand.vmem [shape: f32[3,32,96], index: 3, kind: input, shape index: {}]
  %s4 = inlined_call_operand.vmem [shape: f32[3,32,32], index: 4, kind: input, shape index: {}]
  %s5 = inlined_call_operand.vmem [shape: f32[3,1,32], index: 5, kind: input, shape index: {}]
  %s6 = inlined_call_operand.vmem [shape: f32[3,1,32], index: 6, kind: input, shape index: {}]
  %s7 = inlined_call_operand.vmem [shape: f32[3,1,32], index: 7, kind: input, shape index: {}]
  %s8 = inlined_call_operand.vmem [shape: f32[3,32,64], index: 8, kind: input, shape index: {}]
  %s9 = inlined_call_operand.vmem [shape: f32[3,1,64], index: 9, kind: input, shape index: {}]
  %s10 = inlined_call_operand.vmem [shape: f32[3,64,32], index: 10, kind: input, shape index: {}]
  %s11 = inlined_call_operand.vmem [shape: f32[3,1,32], index: 11, kind: input, shape index: {}]
  %s12 = inlined_call_operand.hbm [shape: f32[2,8,32], index: 12, kind: output, shape index: {}]
  %s13 = sld [smem:[#allocation0]]
  $region85: #{tpu_custom_call.1} parent=0
    _
  %s15 = ssub.s32 1, %s13
  %s16 = scalar_select 0, %s15, %s13
  $region1: #{tpu_custom_call.1} parent=0
    #allocation2 [shape = 'u8[8192]{0}', space=vmem, size = 0x2000, scoped, tag = 'input window, operand 0']
    #allocation3 [shape = 's32[2]{0}', space=sflag, size = 0x8, scoped, tag = 'scoped memory for tpu_custom_call.1']
    #allocation4 [shape = 's32[2]{0}', space=sflag, size = 0x8, scoped, tag = 'scoped memory for tpu_custom_call.1']
    #allocation5 [shape = 'u8[8192]{0}', space=vmem, size = 0x2000, scoped, tag = 'output window, operand 0']
    %17 = vsyncpa [#allocation3], 0
    %s18 = scalar_lea.sflag [#allocation3], 1
    %19 = vsyncpa %s18, 0
    %20 = vsyncpa [#allocation4], 0
    %s21 = scalar_lea.sflag [#allocation4], 1
    %22 = vsyncpa %s21, 0
    loop: start=0, step=1, limit=4
    $region2: #{tpu_custom_call.1} parent=1 // loop_pre_header
      _
    $region3: #{tpu_custom_call.1} parent=1 // loop_header
      %s24 = sphi 0, %s28
      %p25 = scmp.ge.s32.totalorder %s24, 4
      %s34 = sphi 0, %s36
      %s37 = sphi 0, %s34
      %s38 = sphi 0, %s37
      %s54 = sphi 0, %s38
      %s58 = sphi 0, %s58
      %s60 = sphi 0, %s58
      %s61 = sphi 0, %s60
      %s75 = sphi 0, %s61
      %s79 = sphi 0, %s79
      %s81 = sphi 0, %s79
      %s82 = sphi 0, %s81
      %s96 = sphi 0, %s82
      %s100 = sphi 0, %s100
      %s102 = sphi 0, %s100
      %s103 = sphi 0, %s102
      %s117 = sphi 0, %s103
      %s121 = sphi 0, %s121
      %s123 = sphi 0, %s121
      %s124 = sphi 0, %s123
      %s138 = sphi 0, %s124
      %s142 = sphi 0, %s142
      %s144 = sphi 0, %s142
      %s145 = sphi 0, %s144
      %s159 = sphi 0, %s145
      %s163 = sphi 0, %s163
      %s165 = sphi 0, %s163
      %s166 = sphi 0, %s165
      %s180 = sphi 0, %s166
      %s184 = sphi 0, %s184
      %s186 = sphi 0, %s184
      %s187 = sphi 0, %s186
      %s201 = sphi 0, %s187
      %s205 = sphi 0, %s205
      %s207 = sphi 0, %s205
      %s208 = sphi 0, %s207
      %s222 = sphi 0, %s208
      %s226 = sphi 0, %s226
      %s228 = sphi 0, %s226
      %s229 = sphi 0, %s228
      %s243 = sphi 0, %s229
      %s247 = sphi 0, %s247
      %s249 = sphi 0, %s247
      %s250 = sphi 0, %s249
      %s264 = sphi 0, %s250
      %s268 = sphi 0, %s268
      %s270 = sphi 0, %s268
      %s271 = sphi 0, %s270
      %s285 = sphi 0, %s271
      %s291 = sphi 0, %s293
      %s294 = sphi 0, %s291
      %s295 = sphi 0, %s294
      %s311 = sphi 0, %s295
    $region4: #{tpu_custom_call.1} parent=1 // loop_header_branch
      %27 = sbr.rel (%p25) target = $region8
    $region5: #{tpu_custom_call.1} parent=1 // loop_body
      %s29 = ssub.s32 %s24, 1
      %s30 = ssub.s32 %s24, 2
      %s31 = sadd.s32 %s24, 1
      %s32 = ssub.s32 %s24, %s31
      %p33 = scmp.eq.s32.totalorder %s32, 0
      %s35 = sadd.s32 %s34, 1
      %s36 = scalar_select %p33, %s34, %s35
      %p39 = pneg %p33
      %p40 = scmp.eq.s32.totalorder %s24, 1
      %p41 = por %p39, %p40
      %p42 = scmp.ne.s32.totalorder %s34, %s37
      %p43 = scmp.eq.s32.totalorder %s24, 0
      %p44 = por %p42, %p43
      %p45 = scmp.ne.s32.totalorder %s34, %s37
      %p46 = scmp.eq.s32.totalorder %s29, 1
      %p47 = por %p45, %p46
      %p48 = scmp.ne.s32.totalorder %s37, %s38
      %p49 = scmp.eq.s32.totalorder %s29, 0
      %p50 = por %p48, %p49
      %p51 = scmp.ne.s32.totalorder %s37, %s38
      %p52 = scmp.eq.s32.totalorder %s30, 1
      %p53 = por %p51, %p52
      %p55 = scmp.ne.s32.totalorder %s38, %s54
      %p56 = scmp.eq.s32.totalorder %s30, 0
      %p57 = por %p55, %p56
      %s59 = sadd.s32 %s58, 1
      %p62 = scmp.eq.s32.totalorder %s24, 1
      %p63 = scmp.ne.s32.totalorder %s58, %s60
      %p64 = scmp.eq.s32.totalorder %s24, 0
      %p65 = por %p63, %p64
      %p66 = scmp.ne.s32.totalorder %s58, %s60
      %p67 = scmp.eq.s32.totalorder %s29, 1
      %p68 = por %p66, %p67
      %p69 = scmp.ne.s32.totalorder %s60, %s61
      %p70 = scmp.eq.s32.totalorder %s29, 0
      %p71 = por %p69, %p70
      %p72 = scmp.ne.s32.totalorder %s60, %s61
      %p73 = scmp.eq.s32.totalorder %s30, 1
      %p74 = por %p72, %p73
      %p76 = scmp.ne.s32.totalorder %s61, %s75
      %p77 = scmp.eq.s32.totalorder %s30, 0
      %p78 = por %p76, %p77
      %s80 = sadd.s32 %s79, 1
      %p83 = scmp.eq.s32.totalorder %s24, 1
      %p84 = scmp.ne.s32.totalorder %s79, %s81
      %p85 = scmp.eq.s32.totalorder %s24, 0
      %p86 = por %p84, %p85
      %p87 = scmp.ne.s32.totalorder %s79, %s81
      %p88 = scmp.eq.s32.totalorder %s29, 1
      %p89 = por %p87, %p88
      %p90 = scmp.ne.s32.totalorder %s81, %s82
      %p91 = scmp.eq.s32.totalorder %s29, 0
      %p92 = por %p90, %p91
      %p93 = scmp.ne.s32.totalorder %s81, %s82
      %p94 = scmp.eq.s32.totalorder %s30, 1
      %p95 = por %p93, %p94
      %p97 = scmp.ne.s32.totalorder %s82, %s96
      %p98 = scmp.eq.s32.totalorder %s30, 0
      %p99 = por %p97, %p98
      %s101 = sadd.s32 %s100, 1
      %p104 = scmp.eq.s32.totalorder %s24, 1
      %p105 = scmp.ne.s32.totalorder %s100, %s102
      %p106 = scmp.eq.s32.totalorder %s24, 0
      %p107 = por %p105, %p106
      %p108 = scmp.ne.s32.totalorder %s100, %s102
      %p109 = scmp.eq.s32.totalorder %s29, 1
      %p110 = por %p108, %p109
      %p111 = scmp.ne.s32.totalorder %s102, %s103
      %p112 = scmp.eq.s32.totalorder %s29, 0
      %p113 = por %p111, %p112
      %p114 = scmp.ne.s32.totalorder %s102, %s103
      %p115 = scmp.eq.s32.totalorder %s30, 1
      %p116 = por %p114, %p115
      %p118 = scmp.ne.s32.totalorder %s103, %s117
      %p119 = scmp.eq.s32.totalorder %s30, 0
      %p120 = por %p118, %p119
      %s122 = sadd.s32 %s121, 1
      %p125 = scmp.eq.s32.totalorder %s24, 1
      %p126 = scmp.ne.s32.totalorder %s121, %s123
      %p127 = scmp.eq.s32.totalorder %s24, 0
      %p128 = por %p126, %p127
      %p129 = scmp.ne.s32.totalorder %s121, %s123
      %p130 = scmp.eq.s32.totalorder %s29, 1
      %p131 = por %p129, %p130
      %p132 = scmp.ne.s32.totalorder %s123, %s124
      %p133 = scmp.eq.s32.totalorder %s29, 0
      %p134 = por %p132, %p133
      %p135 = scmp.ne.s32.totalorder %s123, %s124
      %p136 = scmp.eq.s32.totalorder %s30, 1
      %p137 = por %p135, %p136
      %p139 = scmp.ne.s32.totalorder %s124, %s138
      %p140 = scmp.eq.s32.totalorder %s30, 0
      %p141 = por %p139, %p140
      %s143 = sadd.s32 %s142, 1
      %p146 = scmp.eq.s32.totalorder %s24, 1
      %p147 = scmp.ne.s32.totalorder %s142, %s144
      %p148 = scmp.eq.s32.totalorder %s24, 0
      %p149 = por %p147, %p148
      %p150 = scmp.ne.s32.totalorder %s142, %s144
      %p151 = scmp.eq.s32.totalorder %s29, 1
      %p152 = por %p150, %p151
      %p153 = scmp.ne.s32.totalorder %s144, %s145
      %p154 = scmp.eq.s32.totalorder %s29, 0
      %p155 = por %p153, %p154
      %p156 = scmp.ne.s32.totalorder %s144, %s145
      %p157 = scmp.eq.s32.totalorder %s30, 1
      %p158 = por %p156, %p157
      %p160 = scmp.ne.s32.totalorder %s145, %s159
      %p161 = scmp.eq.s32.totalorder %s30, 0
      %p162 = por %p160, %p161
      %s164 = sadd.s32 %s163, 1
      %p167 = scmp.eq.s32.totalorder %s24, 1
      %p168 = scmp.ne.s32.totalorder %s163, %s165
      %p169 = scmp.eq.s32.totalorder %s24, 0
      %p170 = por %p168, %p169
      %p171 = scmp.ne.s32.totalorder %s163, %s165
      %p172 = scmp.eq.s32.totalorder %s29, 1
      %p173 = por %p171, %p172
      %p174 = scmp.ne.s32.totalorder %s165, %s166
      %p175 = scmp.eq.s32.totalorder %s29, 0
      %p176 = por %p174, %p175
      %p177 = scmp.ne.s32.totalorder %s165, %s166
      %p178 = scmp.eq.s32.totalorder %s30, 1
      %p179 = por %p177, %p178
      %p181 = scmp.ne.s32.totalorder %s166, %s180
      %p182 = scmp.eq.s32.totalorder %s30, 0
      %p183 = por %p181, %p182
      %s185 = sadd.s32 %s184, 1
      %p188 = scmp.eq.s32.totalorder %s24, 1
      %p189 = scmp.ne.s32.totalorder %s184, %s186
      %p190 = scmp.eq.s32.totalorder %s24, 0
      %p191 = por %p189, %p190
      %p192 = scmp.ne.s32.totalorder %s184, %s186
      %p193 = scmp.eq.s32.totalorder %s29, 1
      %p194 = por %p192, %p193
      %p195 = scmp.ne.s32.totalorder %s186, %s187
      %p196 = scmp.eq.s32.totalorder %s29, 0
      %p197 = por %p195, %p196
      %p198 = scmp.ne.s32.totalorder %s186, %s187
      %p199 = scmp.eq.s32.totalorder %s30, 1
      %p200 = por %p198, %p199
      %p202 = scmp.ne.s32.totalorder %s187, %s201
      %p203 = scmp.eq.s32.totalorder %s30, 0
      %p204 = por %p202, %p203
      %s206 = sadd.s32 %s205, 1
      %p209 = scmp.eq.s32.totalorder %s24, 1
      %p210 = scmp.ne.s32.totalorder %s205, %s207
      %p211 = scmp.eq.s32.totalorder %s24, 0
      %p212 = por %p210, %p211
      %p213 = scmp.ne.s32.totalorder %s205, %s207
      %p214 = scmp.eq.s32.totalorder %s29, 1
      %p215 = por %p213, %p214
      %p216 = scmp.ne.s32.totalorder %s207, %s208
      %p217 = scmp.eq.s32.totalorder %s29, 0
      %p218 = por %p216, %p217
      %p219 = scmp.ne.s32.totalorder %s207, %s208
      %p220 = scmp.eq.s32.totalorder %s30, 1
      %p221 = por %p219, %p220
      %p223 = scmp.ne.s32.totalorder %s208, %s222
      %p224 = scmp.eq.s32.totalorder %s30, 0
      %p225 = por %p223, %p224
      %s227 = sadd.s32 %s226, 1
      %p230 = scmp.eq.s32.totalorder %s24, 1
      %p231 = scmp.ne.s32.totalorder %s226, %s228
      %p232 = scmp.eq.s32.totalorder %s24, 0
      %p233 = por %p231, %p232
      %p234 = scmp.ne.s32.totalorder %s226, %s228
      %p235 = scmp.eq.s32.totalorder %s29, 1
      %p236 = por %p234, %p235
      %p237 = scmp.ne.s32.totalorder %s228, %s229
      %p238 = scmp.eq.s32.totalorder %s29, 0
      %p239 = por %p237, %p238
      %p240 = scmp.ne.s32.totalorder %s228, %s229
      %p241 = scmp.eq.s32.totalorder %s30, 1
      %p242 = por %p240, %p241
      %p244 = scmp.ne.s32.totalorder %s229, %s243
      %p245 = scmp.eq.s32.totalorder %s30, 0
      %p246 = por %p244, %p245
      %s248 = sadd.s32 %s247, 1
      %p251 = scmp.eq.s32.totalorder %s24, 1
      %p252 = scmp.ne.s32.totalorder %s247, %s249
      %p253 = scmp.eq.s32.totalorder %s24, 0
      %p254 = por %p252, %p253
      %p255 = scmp.ne.s32.totalorder %s247, %s249
      %p256 = scmp.eq.s32.totalorder %s29, 1
      %p257 = por %p255, %p256
      %p258 = scmp.ne.s32.totalorder %s249, %s250
      %p259 = scmp.eq.s32.totalorder %s29, 0
      %p260 = por %p258, %p259
      %p261 = scmp.ne.s32.totalorder %s249, %s250
      %p262 = scmp.eq.s32.totalorder %s30, 1
      %p263 = por %p261, %p262
      %p265 = scmp.ne.s32.totalorder %s250, %s264
      %p266 = scmp.eq.s32.totalorder %s30, 0
      %p267 = por %p265, %p266
      %s269 = sadd.s32 %s268, 1
      %p272 = scmp.eq.s32.totalorder %s24, 1
      %p273 = scmp.ne.s32.totalorder %s268, %s270
      %p274 = scmp.eq.s32.totalorder %s24, 0
      %p275 = por %p273, %p274
      %p276 = scmp.ne.s32.totalorder %s268, %s270
      %p277 = scmp.eq.s32.totalorder %s29, 1
      %p278 = por %p276, %p277
      %p279 = scmp.ne.s32.totalorder %s270, %s271
      %p280 = scmp.eq.s32.totalorder %s29, 0
      %p281 = por %p279, %p280
      %p282 = scmp.ne.s32.totalorder %s270, %s271
      %p283 = scmp.eq.s32.totalorder %s30, 1
      %p284 = por %p282, %p283
      %p286 = scmp.ne.s32.totalorder %s271, %s285
      %p287 = scmp.eq.s32.totalorder %s30, 0
      %p288 = por %p286, %p287
      %s289 = ssub.s32 %s24, %s31
      %p290 = scmp.eq.s32.totalorder %s289, 0
      %s292 = sadd.s32 %s291, 1
      %s293 = scalar_select %p290, %s291, %s292
      %p296 = pneg %p290
      %p297 = scmp.eq.s32.totalorder %s24, 1
      %p298 = por %p296, %p297
      %p299 = scmp.ne.s32.totalorder %s291, %s294
      %p300 = scmp.eq.s32.totalorder %s24, 0
      %p301 = por %p299, %p300
      %p302 = scmp.ne.s32.totalorder %s291, %s294
      %p303 = scmp.eq.s32.totalorder %s29, 1
      %p304 = por %p302, %p303
      %p305 = scmp.ne.s32.totalorder %s294, %s295
      %p306 = scmp.eq.s32.totalorder %s29, 0
      %p307 = por %p305, %p306
      %p308 = scmp.ne.s32.totalorder %s294, %s295
      %p309 = scmp.eq.s32.totalorder %s30, 1
      %p310 = por %p308, %p309
      %p312 = scmp.ne.s32.totalorder %s295, %s311
      %p313 = scmp.eq.s32.totalorder %s30, 0
      %p314 = por %p312, %p313
      %p315 = scmp.le.s32.totalorder 1, %s24
      %p316 = scmp.lt.s32.totalorder %s24, 3
      %p317 = pnand %p315, %p316
      %p318 = pneg %p317
      // Predicated region
      $region9: #{tpu_custom_call.1} parent=5 // pred_check
        _
      $region10: #{tpu_custom_call.1} parent=5 // pred_check_branch
        %320 = sbr.rel (%p317) target = $region12
      $region11: #{tpu_custom_call.1} parent=5 // pred_region
        %s321 = ssub.s32 %s24, 1
        // Predicated region
        $region13: #{tpu_custom_call.1} parent=11 // pred_check
          %p322 = pneg %p71
        $region14: #{tpu_custom_call.1} parent=11 // pred_check_branch
          %324 = sbr.rel (%p322) target = $region16
        $region15: #{tpu_custom_call.1} parent=11 // pred_region
          _
        $region16: #{tpu_custom_call.1} parent=11 // pred_fallthru
          _
        // Predicated region
        $region17: #{tpu_custom_call.1} parent=11 // pred_check
          %p325 = pneg %p92
        $region18: #{tpu_custom_call.1} parent=11 // pred_check_branch
          %327 = sbr.rel (%p325) target = $region20
        $region19: #{tpu_custom_call.1} parent=11 // pred_region
          _
        $region20: #{tpu_custom_call.1} parent=11 // pred_fallthru
          _
        // Predicated region
        $region21: #{tpu_custom_call.1} parent=11 // pred_check
          %p328 = pneg %p113
        $region22: #{tpu_custom_call.1} parent=11 // pred_check_branch
          %330 = sbr.rel (%p328) target = $region24
        $region23: #{tpu_custom_call.1} parent=11 // pred_region
          _
        $region24: #{tpu_custom_call.1} parent=11 // pred_fallthru
          _
        // Predicated region
        $region25: #{tpu_custom_call.1} parent=11 // pred_check
          %p331 = pneg %p134
        $region26: #{tpu_custom_call.1} parent=11 // pred_check_branch
          %333 = sbr.rel (%p331) target = $region28
        $region27: #{tpu_custom_call.1} parent=11 // pred_region
          _
        $region28: #{tpu_custom_call.1} parent=11 // pred_fallthru
          _
        // Predicated region
        $region29: #{tpu_custom_call.1} parent=11 // pred_check
          %p334 = pneg %p155
        $region30: #{tpu_custom_call.1} parent=11 // pred_check_branch
          %336 = sbr.rel (%p334) target = $region32
        $region31: #{tpu_custom_call.1} parent=11 // pred_region
          _
        $region32: #{tpu_custom_call.1} parent=11 // pred_fallthru
          _
        // Predicated region
        $region33: #{tpu_custom_call.1} parent=11 // pred_check
          %p337 = pneg %p176
        $region34: #{tpu_custom_call.1} parent=11 // pred_check_branch
          %339 = sbr.rel (%p337) target = $region36
        $region35: #{tpu_custom_call.1} parent=11 // pred_region
          _
        $region36: #{tpu_custom_call.1} parent=11 // pred_fallthru
          _
        // Predicated region
        $region37: #{tpu_custom_call.1} parent=11 // pred_check
          %p340 = pneg %p197
        $region38: #{tpu_custom_call.1} parent=11 // pred_check_branch
          %342 = sbr.rel (%p340) target = $region40
        $region39: #{tpu_custom_call.1} parent=11 // pred_region
          _
        $region40: #{tpu_custom_call.1} parent=11 // pred_fallthru
          _
        // Predicated region
        $region41: #{tpu_custom_call.1} parent=11 // pred_check
          %p343 = pneg %p218
        $region42: #{tpu_custom_call.1} parent=11 // pred_check_branch
          %345 = sbr.rel (%p343) target = $region44
        $region43: #{tpu_custom_call.1} parent=11 // pred_region
          _
        $region44: #{tpu_custom_call.1} parent=11 // pred_fallthru
          _
        // Predicated region
        $region45: #{tpu_custom_call.1} parent=11 // pred_check
          %p346 = pneg %p239
        $region46: #{tpu_custom_call.1} parent=11 // pred_check_branch
          %348 = sbr.rel (%p346) target = $region48
        $region47: #{tpu_custom_call.1} parent=11 // pred_region
          _
        $region48: #{tpu_custom_call.1} parent=11 // pred_fallthru
          _
        // Predicated region
        $region49: #{tpu_custom_call.1} parent=11 // pred_check
          %p349 = pneg %p260
        $region50: #{tpu_custom_call.1} parent=11 // pred_check_branch
          %351 = sbr.rel (%p349) target = $region52
        $region51: #{tpu_custom_call.1} parent=11 // pred_region
          _
        $region52: #{tpu_custom_call.1} parent=11 // pred_fallthru
          _
        // Predicated region
        $region53: #{tpu_custom_call.1} parent=11 // pred_check
          %p352 = pneg %p281
        $region54: #{tpu_custom_call.1} parent=11 // pred_check_branch
          %354 = sbr.rel (%p352) target = $region56
        $region55: #{tpu_custom_call.1} parent=11 // pred_region
          _
        $region56: #{tpu_custom_call.1} parent=11 // pred_fallthru
          _
      $region12: #{tpu_custom_call.1} parent=5 // pred_fallthru
        _
      %p355 = scmp.lt.s32.totalorder %s24, 2
      // Predicated region
      $region57: #{tpu_custom_call.1} parent=5 // pred_check
        %p356 = pneg %p355
      $region58: #{tpu_custom_call.1} parent=5 // pred_check_branch
        %358 = sbr.rel (%p356) target = $region60
      $region59: #{tpu_custom_call.1} parent=5 // pred_region
        // Predicated region
        $region61: #{tpu_custom_call.1} parent=59 // pred_check
          %p359 = pneg %p44
        $region62: #{tpu_custom_call.1} parent=59 // pred_check_branch
          %361 = sbr.rel (%p359) target = $region64
        $region63: #{tpu_custom_call.1} parent=59 // pred_region
          %s362 = sand.u32 %s34, 1
          %s363 = scalar_lea.sflag [#allocation3], %s362
          %s364 = sand.u32 %s34, 1
          %s365 = smul.addr %s364, 8
          %s366 = scalar_lea.vmem [#allocation2], %s365
          %s368 = ssub.s32 128, 128
          %369 = vsyncadd %s363, %s368
          %s370 = smul.addr %s24, 128
          %s371 = scalar_lea.hbm %s0, %s370
          %s373 = sshll.u32 %s366, 4
          %s374 = int_to_ptr.vmem [resolvable:$true] %s373
          %376 = dma.hbm_to_vmem [thread:$0]  %s371, 128, %s374, %s363
        $region64: #{tpu_custom_call.1} parent=59 // pred_fallthru
          _
      $region60: #{tpu_custom_call.1} parent=5 // pred_fallthru
        _
      %p377 = scmp.le.s32.totalorder 1, %s24
      %p378 = scmp.lt.s32.totalorder %s24, 3
      %p379 = pnand %p377, %p378
      %p380 = pneg %p379
      // Predicated region
      $region65: #{tpu_custom_call.1} parent=5 // pred_check
        _
      $region66: #{tpu_custom_call.1} parent=5 // pred_check_branch
        %382 = sbr.rel (%p379) target = $region68
      $region67: #{tpu_custom_call.1} parent=5 // pred_region
        %s383 = ssub.s32 %s24, 1
        %s384 = sand.u32 %s37, 1
        %s385 = scalar_lea.sflag [#allocation3], %s384
        %s386 = sand.u32 %s37, 1
        %s387 = smul.addr %s386, 8
        %s388 = scalar_lea.vmem [#allocation2], %s387
        // Predicated region
        $region69: #{tpu_custom_call.1} parent=67 // pred_check
          %p389 = pneg %p50
        $region70: #{tpu_custom_call.1} parent=67 // pred_check_branch
          %391 = sbr.rel (%p389) target = $region72
        $region71: #{tpu_custom_call.1} parent=67 // pred_region
          %392 = dma.done %s385, 128
        $region72: #{tpu_custom_call.1} parent=67 // pred_fallthru
          _
        %s393 = sand.u32 %s37, 1
        %s394 = scalar_lea.sflag [#allocation3], %s393
        %s395 = sand.u32 %s37, 1
        %s396 = smul.addr %s395, 8
        %s397 = scalar_lea.vmem [#allocation2], %s396
        %p398 = pneg %p50
        %p399 = pneg %p47
        %p400 = pneg %p71
        %p401 = pneg %p68
        %p402 = pneg %p92
        %p403 = pneg %p89
        %p404 = pneg %p113
        %p405 = pneg %p110
        %p406 = pneg %p134
        %p407 = pneg %p131
        %p408 = pneg %p155
        %p409 = pneg %p152
        %p410 = pneg %p176
        %p411 = pneg %p173
        %p412 = pneg %p197
        %p413 = pneg %p194
        %p414 = pneg %p218
        %p415 = pneg %p215
        %p416 = pneg %p239
        %p417 = pneg %p236
        %p418 = pneg %p260
        %p419 = pneg %p257
        %p420 = pneg %p281
        %p421 = pneg %p278
        %p422 = pneg %p307
        %p423 = pneg %p304
        %s424 = sand.u32 %s294, 1
        %s425 = scalar_lea.sflag [#allocation4], %s424
        %s426 = sand.u32 %s294, 1
        %s427 = smul.addr %s426, 8
        %s428 = scalar_lea.vmem [#allocation5], %s427
        %v429 = vld [vmem:[%s388] sm:$0xff]
        %v430 = vld [vmem:[%s1] sm:$0x1]
        %v431 = vld [vmem:[%s2] sm:$0x1]
        %vm432 = vcmask 261120
        %v433 = vsel %vm432, %v429, 0.0
        %434 = vadd.xlane.f32.xlu0 %v433
        %v435 = vpop.xlane.xlu0 %434
        %v436 = vrcp.pop 32.0
        %v437 = vmul.f32 %v435, %v436
        %v438 = vsub.f32 %v429, %v437
        %v439 = vmul.f32 %v438, %v438
        %v440 = vsel %vm432, %v439, 0.0
        %441 = vadd.xlane.f32.xlu0 %v440
        %v442 = vpop.xlane.xlu0 %441
        %v443 = vmul.f32 %v442, %v436
        %v444 = vadd.f32 %v443, 1e-05
        %v445 = vrsqrt.pop %v444
        %v446 = vmul.f32 %v438, %v445
        %v448 = vlaneseq
        %v449 = vshrl.u32 %v448, 7
        %v450 = vsub.s32 0, %v449
        %v451 = vrot.slane %v430, %v450
        %v453 = vmul.f32 %v446, %v451
        %v455 = vlaneseq
        %v456 = vshrl.u32 %v455, 7
        %v457 = vsub.s32 0, %v456
        %v458 = vrot.slane %v431, %v457
        %v460 = vadd.f32 %v453, %v458
        %v461 = vld [vmem:[%s3] sm:$0xff]
        %v462 = vld [vmem:[%s3 + $0x8] sm:$0xff]
        %v463 = vld [vmem:[%s3 + $0x10] sm:$0xff]
        %v464 = vld [vmem:[%s3 + $0x18] sm:$0xff]
        %v466 = vsel %vm432, %v460, 0
        %468 = vmatprep.subr.mxu0 0.0
        %469 = vmatpush1.msra.mxu0 %v461
        %470 = vmatprep.subr.mxu0 0.0
        %471 = vmatpush1.msra.mxu0 %v462
        %472 = vmatprep.subr.mxu0 0.0
        %473 = vmatpush1.msra.mxu0 %v463
        %474 = vmatprep.subr.mxu0 0.0
        %475 = vmatpush1.msra.mxu0 %v464
        %476 = vmatprep.subr.mxu0 0.0
        %477 = vmatpush1.msra.mxu0 0.0
        %478 = vmatprep.subr.mxu0 0.0
        %479 = vmatpush1.msra.mxu0 0.0
        %480 = vmatprep.subr.mxu0 0.0
        %481 = vmatpush1.msra.mxu0 0.0
        %482 = vmatprep.subr.mxu0 0.0
        %483 = vmatpush1.msra.mxu0 0.0
        %484 = vmatprep.subr.mxu0 0.0
        %485 = vmatpush1.msra.mxu0 0.0
        %486 = vmatprep.subr.mxu0 0.0
        %487 = vmatpush1.msra.mxu0 0.0
        %488 = vmatprep.subr.mxu0 0.0
        %489 = vmatpush1.msra.mxu0 0.0
        %490 = vmatprep.subr.mxu0 0.0
        %491 = vmatpush1.msra.mxu0 0.0
        %492 = vmatprep.subr.mxu0 0.0
        %493 = vmatpush1.msra.mxu0 0.0
        %494 = vmatprep.subr.mxu0 0.0
        %495 = vmatpush1.msra.mxu0 0.0
        %496 = vmatprep.subr.mxu0 0.0
        %497 = vmatpush1.msra.mxu0 0.0
        %498 = vmatprep.subr.mxu0 0.0
        %499 = vmatpush1.msra.mxu0 0.0
        %500 = vmatprep.subr.mxu0 0.0
        %501 = vmatpush1.msra.mxu0 0.0
        %502 = vmatprep.subr.mxu0 0.0
        %503 = vmatpush1.msra.mxu0 0.0
        %504 = vmatprep.subr.mxu0 0.0
        %505 = vmatpush1.msra.mxu0 0.0
        %506 = vmatprep.subr.mxu0 0.0
        %507 = vmatpush1.msra.mxu0 0.0
        %508 = vmatprep.subr.mxu0 0.0
        %509 = vmatpush1.msra.mxu0 0.0
        %510 = vmatprep.subr.mxu0 0.0
        %511 = vmatpush1.msra.mxu0 0.0
        %512 = vmatprep.subr.mxu0 0.0
        %513 = vmatpush1.msra.mxu0 0.0
        %514 = vmatprep.subr.mxu0 0.0
        %515 = vmatpush1.msra.mxu0 0.0
        %516 = vmatprep.subr.mxu0 0.0
        %517 = vmatpush1.msra.mxu0 0.0
        %518 = vmatprep.subr.mxu0 0.0
        %519 = vmatpush1.msra.mxu0 0.0
        %520 = vmatprep.subr.mxu0 0.0
        %521 = vmatpush1.msra.mxu0 0.0
        %522 = vmatprep.subr.mxu0 0.0
        %523 = vmatpush1.msra.mxu0 0.0
        %524 = vmatprep.subr.mxu0 0.0
        %525 = vmatpush1.msra.mxu0 0.0
        %526 = vmatprep.subr.mxu0 0.0
        %527 = vmatpush1.msra.mxu0 0.0
        %528 = vmatprep.subr.mxu0 0.0
        %529 = vmatpush1.msra.mxu0 0.0
        %530 = vmatprep.subr.mxu0 0.0
        %531 = vmatpush1.msra.mxu0 0.0
        %532 = vmatprep.mubr.f32.mxu0 0.0
        %533 = vmatmul.mubr.f32.gmra.mrb[0].mxu0 %v466
        %v534 = vpop.f32.mrb[0].mxu0
        %v535 = vadd.f32 0.0, %v534
        %v536 = vpop.f32.mrb[0].mxu0
        %537 = vdwg.mxu0
        %539 = vrot.lane.b32.xlu0 %v535, 96
        %v540 = vpop.permute.xlu0 %539
        %vm541 = vcmask 64512
        %v542 = vsel %vm541, %v535, 0
        %v544 = vsel %vm541, %v540, 0
        %546 = vmatprep.subr.mxu0 0.0
        %547 = vmatpush1.xpose.msra.mxu0 %v544
        %548 = vmatprep.subr.mxu0 0.0
        %549 = vmatpush1.xpose.msra.mxu0 0.0
        %550 = vmatprep.subr.mxu0 0.0
        %551 = vmatpush1.xpose.msra.mxu0 0.0
        %552 = vmatprep.subr.mxu0 0.0
        %553 = vmatpush1.xpose.msra.mxu0 0.0
        %554 = vmatprep.subr.mxu0 0.0
        %555 = vmatpush1.xpose.msra.mxu0 0.0
        %556 = vmatprep.subr.mxu0 0.0
        %557 = vmatpush1.xpose.msra.mxu0 0.0
        %558 = vmatprep.subr.mxu0 0.0
        %559 = vmatpush1.xpose.msra.mxu0 0.0
        %560 = vmatprep.subr.mxu0 0.0
        %561 = vmatpush1.xpose.msra.mxu0 0.0
        %562 = vmatprep.subr.mxu0 0.0
        %563 = vmatpush1.xpose.msra.mxu0 0.0
        %564 = vmatprep.subr.mxu0 0.0
        %565 = vmatpush1.xpose.msra.mxu0 0.0
        %566 = vmatprep.subr.mxu0 0.0
        %567 = vmatpush1.xpose.msra.mxu0 0.0
        %568 = vmatprep.subr.mxu0 0.0
        %569 = vmatpush1.xpose.msra.mxu0 0.0
        %570 = vmatprep.subr.mxu0 0.0
        %571 = vmatpush1.xpose.msra.mxu0 0.0
        %572 = vmatprep.subr.mxu0 0.0
        %573 = vmatpush1.xpose.msra.mxu0 0.0
        %574 = vmatprep.subr.mxu0 0.0
        %575 = vmatpush1.xpose.msra.mxu0 0.0
        %576 = vmatprep.subr.mxu0 0.0
        %577 = vmatpush1.xpose.msra.mxu0 0.0
        %578 = vmatprep.subr.mxu0 0.0
        %579 = vmatpush1.xpose.msra.mxu0 0.0
        %580 = vmatprep.subr.mxu0 0.0
        %581 = vmatpush1.xpose.msra.mxu0 0.0
        %582 = vmatprep.subr.mxu0 0.0
        %583 = vmatpush1.xpose.msra.mxu0 0.0
        %584 = vmatprep.subr.mxu0 0.0
        %585 = vmatpush1.xpose.msra.mxu0 0.0
        %586 = vmatprep.subr.mxu0 0.0
        %587 = vmatpush1.xpose.msra.mxu0 0.0
        %588 = vmatprep.subr.mxu0 0.0
        %589 = vmatpush1.xpose.msra.mxu0 0.0
        %590 = vmatprep.subr.mxu0 0.0
        %591 = vmatpush1.xpose.msra.mxu0 0.0
        %592 = vmatprep.subr.mxu0 0.0
        %593 = vmatpush1.xpose.msra.mxu0 0.0
        %594 = vmatprep.subr.mxu0 0.0
        %595 = vmatpush1.xpose.msra.mxu0 0.0
        %596 = vmatprep.subr.mxu0 0.0
        %597 = vmatpush1.xpose.msra.mxu0 0.0
        %598 = vmatprep.subr.mxu0 0.0
        %599 = vmatpush1.xpose.msra.mxu0 0.0
        %600 = vmatprep.subr.mxu0 0.0
        %601 = vmatpush1.xpose.msra.mxu0 0.0
        %602 = vmatprep.subr.mxu0 0.0
        %603 = vmatpush1.xpose.msra.mxu0 0.0
        %604 = vmatprep.subr.mxu0 0.0
        %605 = vmatpush1.xpose.msra.mxu0 0.0
        %606 = vmatprep.subr.mxu0 0.0
        %607 = vmatpush1.xpose.msra.mxu0 0.0
        %608 = vmatprep.subr.mxu0 0.0
        %609 = vmatpush1.xpose.msra.mxu0 0.0
        %610 = vmatprep.mubr.f32.mxu0 0.0
        %611 = vmatmul.mubr.f32.gmra.mrb[0].mxu0 %v542
        %v612 = vpop.f32.mrb[0].mxu0
        %v613 = vadd.f32 0.0, %v612
        %v614 = vpop.f32.mrb[0].mxu0
        %615 = vdwg.mxu0
        %v616 = vsel %vm541, %v613, -inf
        %617 = vmax.xlane.f32.xlu0 %v616
        %v618 = vpop.xlane.xlu0 %617
        %v619 = vsub.f32 %v613, %v618
        %v620 = vmul.f32 %v619, 1.442695
        %v621 = vpow.pop %v620
        %v622 = vsel %vm541, %v621, 0.0
        %623 = vadd.xlane.f32.xlu0 %v622
        %v624 = vpop.xlane.xlu0 %623
        %v625 = vrcp.pop %v624
        %v626 = vmul.f32 %v621, %v625
        %627 = vrot.lane.b32.xlu0 %v535, 64
        %v628 = vpop.permute.xlu0 %627
        %v631 = vsel %vm541, %v626, 0
        %633 = vmatprep.subr.mxu0 0.0
        %634 = vmatpush1.msra.mxu0 %v628
        %635 = vmatprep.subr.mxu0 0.0
        %636 = vmatpush1.msra.mxu0 0.0
        %637 = vmatprep.subr.mxu0 0.0
        %638 = vmatpush1.msra.mxu0 0.0
        %639 = vmatprep.subr.mxu0 0.0
        %640 = vmatpush1.msra.mxu0 0.0
        %641 = vmatprep.subr.mxu0 0.0
        %642 = vmatpush1.msra.mxu0 0.0
        %643 = vmatprep.subr.mxu0 0.0
        %644 = vmatpush1.msra.mxu0 0.0
        %645 = vmatprep.subr.mxu0 0.0
        %646 = vmatpush1.msra.mxu0 0.0
        %647 = vmatprep.subr.mxu0 0.0
        %648 = vmatpush1.msra.mxu0 0.0
        %649 = vmatprep.subr.mxu0 0.0
        %650 = vmatpush1.msra.mxu0 0.0
        %651 = vmatprep.subr.mxu0 0.0
        %652 = vmatpush1.msra.mxu0 0.0
        %653 = vmatprep.subr.mxu0 0.0
        %654 = vmatpush1.msra.mxu0 0.0
        %655 = vmatprep.subr.mxu0 0.0
        %656 = vmatpush1.msra.mxu0 0.0
        %657 = vmatprep.subr.mxu0 0.0
        %658 = vmatpush1.msra.mxu0 0.0
        %659 = vmatprep.subr.mxu0 0.0
        %660 = vmatpush1.msra.mxu0 0.0
        %661 = vmatprep.subr.mxu0 0.0
        %662 = vmatpush1.msra.mxu0 0.0
        %663 = vmatprep.subr.mxu0 0.0
        %664 = vmatpush1.msra.mxu0 0.0
        %665 = vmatprep.subr.mxu0 0.0
        %666 = vmatpush1.msra.mxu0 0.0
        %667 = vmatprep.subr.mxu0 0.0
        %668 = vmatpush1.msra.mxu0 0.0
        %669 = vmatprep.subr.mxu0 0.0
        %670 = vmatpush1.msra.mxu0 0.0
        %671 = vmatprep.subr.mxu0 0.0
        %672 = vmatpush1.msra.mxu0 0.0
        %673 = vmatprep.subr.mxu0 0.0
        %674 = vmatpush1.msra.mxu0 0.0
        %675 = vmatprep.subr.mxu0 0.0
        %676 = vmatpush1.msra.mxu0 0.0
        %677 = vmatprep.subr.mxu0 0.0
        %678 = vmatpush1.msra.mxu0 0.0
        %679 = vmatprep.subr.mxu0 0.0
        %680 = vmatpush1.msra.mxu0 0.0
        %681 = vmatprep.subr.mxu0 0.0
        %682 = vmatpush1.msra.mxu0 0.0
        %683 = vmatprep.subr.mxu0 0.0
        %684 = vmatpush1.msra.mxu0 0.0
        %685 = vmatprep.subr.mxu0 0.0
        %686 = vmatpush1.msra.mxu0 0.0
        %687 = vmatprep.subr.mxu0 0.0
        %688 = vmatpush1.msra.mxu0 0.0
        %689 = vmatprep.subr.mxu0 0.0
        %690 = vmatpush1.msra.mxu0 0.0
        %691 = vmatprep.subr.mxu0 0.0
        %692 = vmatpush1.msra.mxu0 0.0
        %693 = vmatprep.subr.mxu0 0.0
        %694 = vmatpush1.msra.mxu0 0.0
        %695 = vmatprep.subr.mxu0 0.0
        %696 = vmatpush1.msra.mxu0 0.0
        %697 = vmatprep.mubr.f32.mxu0 0.0
        %698 = vmatmul.mubr.f32.gmra.mrb[0].mxu0 %v631
        %v699 = vpop.f32.mrb[0].mxu0
        %v700 = vadd.f32 0.0, %v699
        %v701 = vpop.f32.mrb[0].mxu0
        %702 = vdwg.mxu0
        %703 = vrot.lane.b32.xlu0 %v535, 120
        %v704 = vpop.permute.xlu0 %703
        %705 = vrot.lane.b32.xlu0 %v535, 88
        %v706 = vpop.permute.xlu0 %705
        %v707 = vsel %vm541, %v704, 0
        %v709 = vsel %vm541, %v706, 0
        %711 = vmatprep.subr.mxu0 0.0
        %712 = vmatpush1.xpose.msra.mxu0 %v709
        %713 = vmatprep.subr.mxu0 0.0
        %714 = vmatpush1.xpose.msra.mxu0 0.0
        %715 = vmatprep.subr.mxu0 0.0
        %716 = vmatpush1.xpose.msra.mxu0 0.0
        %717 = vmatprep.subr.mxu0 0.0
        %718 = vmatpush1.xpose.msra.mxu0 0.0
        %719 = vmatprep.subr.mxu0 0.0
        %720 = vmatpush1.xpose.msra.mxu0 0.0
        %721 = vmatprep.subr.mxu0 0.0
        %722 = vmatpush1.xpose.msra.mxu0 0.0
        %723 = vmatprep.subr.mxu0 0.0
        %724 = vmatpush1.xpose.msra.mxu0 0.0
        %725 = vmatprep.subr.mxu0 0.0
        %726 = vmatpush1.xpose.msra.mxu0 0.0
        %727 = vmatprep.subr.mxu0 0.0
        %728 = vmatpush1.xpose.msra.mxu0 0.0
        %729 = vmatprep.subr.mxu0 0.0
        %730 = vmatpush1.xpose.msra.mxu0 0.0
        %731 = vmatprep.subr.mxu0 0.0
        %732 = vmatpush1.xpose.msra.mxu0 0.0
        %733 = vmatprep.subr.mxu0 0.0
        %734 = vmatpush1.xpose.msra.mxu0 0.0
        %735 = vmatprep.subr.mxu0 0.0
        %736 = vmatpush1.xpose.msra.mxu0 0.0
        %737 = vmatprep.subr.mxu0 0.0
        %738 = vmatpush1.xpose.msra.mxu0 0.0
        %739 = vmatprep.subr.mxu0 0.0
        %740 = vmatpush1.xpose.msra.mxu0 0.0
        %741 = vmatprep.subr.mxu0 0.0
        %742 = vmatpush1.xpose.msra.mxu0 0.0
        %743 = vmatprep.subr.mxu0 0.0
        %744 = vmatpush1.xpose.msra.mxu0 0.0
        %745 = vmatprep.subr.mxu0 0.0
        %746 = vmatpush1.xpose.msra.mxu0 0.0
        %747 = vmatprep.subr.mxu0 0.0
        %748 = vmatpush1.xpose.msra.mxu0 0.0
        %749 = vmatprep.subr.mxu0 0.0
        %750 = vmatpush1.xpose.msra.mxu0 0.0
        %751 = vmatprep.subr.mxu0 0.0
        %752 = vmatpush1.xpose.msra.mxu0 0.0
        %753 = vmatprep.subr.mxu0 0.0
        %754 = vmatpush1.xpose.msra.mxu0 0.0
        %755 = vmatprep.subr.mxu0 0.0
        %756 = vmatpush1.xpose.msra.mxu0 0.0
        %757 = vmatprep.subr.mxu0 0.0
        %758 = vmatpush1.xpose.msra.mxu0 0.0
        %759 = vmatprep.subr.mxu0 0.0
        %760 = vmatpush1.xpose.msra.mxu0 0.0
        %761 = vmatprep.subr.mxu0 0.0
        %762 = vmatpush1.xpose.msra.mxu0 0.0
        %763 = vmatprep.subr.mxu0 0.0
        %764 = vmatpush1.xpose.msra.mxu0 0.0
        %765 = vmatprep.subr.mxu0 0.0
        %766 = vmatpush1.xpose.msra.mxu0 0.0
        %767 = vmatprep.subr.mxu0 0.0
        %768 = vmatpush1.xpose.msra.mxu0 0.0
        %769 = vmatprep.subr.mxu0 0.0
        %770 = vmatpush1.xpose.msra.mxu0 0.0
        %771 = vmatprep.subr.mxu0 0.0
        %772 = vmatpush1.xpose.msra.mxu0 0.0
        %773 = vmatprep.subr.mxu0 0.0
        %774 = vmatpush1.xpose.msra.mxu0 0.0
        %775 = vmatprep.mubr.f32.mxu0 0.0
        %776 = vmatmul.mubr.f32.gmra.mrb[0].mxu0 %v707
        %v777 = vpop.f32.mrb[0].mxu0
        %v778 = vadd.f32 0.0, %v777
        %v779 = vpop.f32.mrb[0].mxu0
        %780 = vdwg.mxu0
        %v781 = vsel %vm541, %v778, -inf
        %782 = vmax.xlane.f32.xlu0 %v781
        %v783 = vpop.xlane.xlu0 %782
        %v784 = vsub.f32 %v778, %v783
        %v785 = vmul.f32 %v784, 1.442695
        %v786 = vpow.pop %v785
        %v787 = vsel %vm541, %v786, 0.0
        %788 = vadd.xlane.f32.xlu0 %v787
        %v789 = vpop.xlane.xlu0 %788
        %v790 = vrcp.pop %v789
        %v791 = vmul.f32 %v786, %v790
        %792 = vrot.lane.b32.xlu0 %v535, 56
        %v793 = vpop.permute.xlu0 %792
        %v796 = vsel %vm541, %v791, 0
        %798 = vmatprep.subr.mxu0 0.0
        %799 = vmatpush1.msra.mxu0 %v793
        %800 = vmatprep.subr.mxu0 0.0
        %801 = vmatpush1.msra.mxu0 0.0
        %802 = vmatprep.subr.mxu0 0.0
        %803 = vmatpush1.msra.mxu0 0.0
        %804 = vmatprep.subr.mxu0 0.0
        %805 = vmatpush1.msra.mxu0 0.0
        %806 = vmatprep.subr.mxu0 0.0
        %807 = vmatpush1.msra.mxu0 0.0
        %808 = vmatprep.subr.mxu0 0.0
        %809 = vmatpush1.msra.mxu0 0.0
        %810 = vmatprep.subr.mxu0 0.0
        %811 = vmatpush1.msra.mxu0 0.0
        %812 = vmatprep.subr.mxu0 0.0
        %813 = vmatpush1.msra.mxu0 0.0
        %814 = vmatprep.subr.mxu0 0.0
        %815 = vmatpush1.msra.mxu0 0.0
        %816 = vmatprep.subr.mxu0 0.0
        %817 = vmatpush1.msra.mxu0 0.0
        %818 = vmatprep.subr.mxu0 0.0
        %819 = vmatpush1.msra.mxu0 0.0
        %820 = vmatprep.subr.mxu0 0.0
        %821 = vmatpush1.msra.mxu0 0.0
        %822 = vmatprep.subr.mxu0 0.0
        %823 = vmatpush1.msra.mxu0 0.0
        %824 = vmatprep.subr.mxu0 0.0
        %825 = vmatpush1.msra.mxu0 0.0
        %826 = vmatprep.subr.mxu0 0.0
        %827 = vmatpush1.msra.mxu0 0.0
        %828 = vmatprep.subr.mxu0 0.0
        %829 = vmatpush1.msra.mxu0 0.0
        %830 = vmatprep.subr.mxu0 0.0
        %831 = vmatpush1.msra.mxu0 0.0
        %832 = vmatprep.subr.mxu0 0.0
        %833 = vmatpush1.msra.mxu0 0.0
        %834 = vmatprep.subr.mxu0 0.0
        %835 = vmatpush1.msra.mxu0 0.0
        %836 = vmatprep.subr.mxu0 0.0
        %837 = vmatpush1.msra.mxu0 0.0
        %838 = vmatprep.subr.mxu0 0.0
        %839 = vmatpush1.msra.mxu0 0.0
        %840 = vmatprep.subr.mxu0 0.0
        %841 = vmatpush1.msra.mxu0 0.0
        %842 = vmatprep.subr.mxu0 0.0
        %843 = vmatpush1.msra.mxu0 0.0
        %844 = vmatprep.subr.mxu0 0.0
        %845 = vmatpush1.msra.mxu0 0.0
        %846 = vmatprep.subr.mxu0 0.0
        %847 = vmatpush1.msra.mxu0 0.0
        %848 = vmatprep.subr.mxu0 0.0
        %849 = vmatpush1.msra.mxu0 0.0
        %850 = vmatprep.subr.mxu0 0.0
        %851 = vmatpush1.msra.mxu0 0.0
        %852 = vmatprep.subr.mxu0 0.0
        %853 = vmatpush1.msra.mxu0 0.0
        %854 = vmatprep.subr.mxu0 0.0
        %855 = vmatpush1.msra.mxu0 0.0
        %856 = vmatprep.subr.mxu0 0.0
        %857 = vmatpush1.msra.mxu0 0.0
        %858 = vmatprep.subr.mxu0 0.0
        %859 = vmatpush1.msra.mxu0 0.0
        %860 = vmatprep.subr.mxu0 0.0
        %861 = vmatpush1.msra.mxu0 0.0
        %862 = vmatprep.mubr.f32.mxu0 0.0
        %863 = vmatmul.mubr.f32.gmra.mrb[0].mxu0 %v796
        %v864 = vpop.f32.mrb[0].mxu0
        %v865 = vadd.f32 0.0, %v864
        %v866 = vpop.f32.mrb[0].mxu0
        %867 = vdwg.mxu0
        %868 = vrot.lane.b32.xlu0 %v535, 112
        %v869 = vpop.permute.xlu0 %868
        %870 = vrot.lane.b32.xlu0 %v535, 80
        %v871 = vpop.permute.xlu0 %870
        %v872 = vsel %vm541, %v869, 0
        %v874 = vsel %vm541, %v871, 0
        %876 = vmatprep.subr.mxu0 0.0
        %877 = vmatpush1.xpose.msra.mxu0 %v874
        %878 = vmatprep.subr.mxu0 0.0
        %879 = vmatpush1.xpose.msra.mxu0 0.0
        %880 = vmatprep.subr.mxu0 0.0
        %881 = vmatpush1.xpose.msra.mxu0 0.0
        %882 = vmatprep.subr.mxu0 0.0
        %883 = vmatpush1.xpose.msra.mxu0 0.0
        %884 = vmatprep.subr.mxu0 0.0
        %885 = vmatpush1.xpose.msra.mxu0 0.0
        %886 = vmatprep.subr.mxu0 0.0
        %887 = vmatpush1.xpose.msra.mxu0 0.0
        %888 = vmatprep.subr.mxu0 0.0
        %889 = vmatpush1.xpose.msra.mxu0 0.0
        %890 = vmatprep.subr.mxu0 0.0
        %891 = vmatpush1.xpose.msra.mxu0 0.0
        %892 = vmatprep.subr.mxu0 0.0
        %893 = vmatpush1.xpose.msra.mxu0 0.0
        %894 = vmatprep.subr.mxu0 0.0
        %895 = vmatpush1.xpose.msra.mxu0 0.0
        %896 = vmatprep.subr.mxu0 0.0
        %897 = vmatpush1.xpose.msra.mxu0 0.0
        %898 = vmatprep.subr.mxu0 0.0
        %899 = vmatpush1.xpose.msra.mxu0 0.0
        %900 = vmatprep.subr.mxu0 0.0
        %901 = vmatpush1.xpose.msra.mxu0 0.0
        %902 = vmatprep.subr.mxu0 0.0
        %903 = vmatpush1.xpose.msra.mxu0 0.0
        %904 = vmatprep.subr.mxu0 0.0
        %905 = vmatpush1.xpose.msra.mxu0 0.0
        %906 = vmatprep.subr.mxu0 0.0
        %907 = vmatpush1.xpose.msra.mxu0 0.0
        %908 = vmatprep.subr.mxu0 0.0
        %909 = vmatpush1.xpose.msra.mxu0 0.0
        %910 = vmatprep.subr.mxu0 0.0
        %911 = vmatpush1.xpose.msra.mxu0 0.0
        %912 = vmatprep.subr.mxu0 0.0
        %913 = vmatpush1.xpose.msra.mxu0 0.0
        %914 = vmatprep.subr.mxu0 0.0
        %915 = vmatpush1.xpose.msra.mxu0 0.0
        %916 = vmatprep.subr.mxu0 0.0
        %917 = vmatpush1.xpose.msra.mxu0 0.0
        %918 = vmatprep.subr.mxu0 0.0
        %919 = vmatpush1.xpose.msra.mxu0 0.0
        %920 = vmatprep.subr.mxu0 0.0
        %921 = vmatpush1.xpose.msra.mxu0 0.0
        %922 = vmatprep.subr.mxu0 0.0
        %923 = vmatpush1.xpose.msra.mxu0 0.0
        %924 = vmatprep.subr.mxu0 0.0
        %925 = vmatpush1.xpose.msra.mxu0 0.0
        %926 = vmatprep.subr.mxu0 0.0
        %927 = vmatpush1.xpose.msra.mxu0 0.0
        %928 = vmatprep.subr.mxu0 0.0
        %929 = vmatpush1.xpose.msra.mxu0 0.0
        %930 = vmatprep.subr.mxu0 0.0
        %931 = vmatpush1.xpose.msra.mxu0 0.0
        %932 = vmatprep.subr.mxu0 0.0
        %933 = vmatpush1.xpose.msra.mxu0 0.0
        %934 = vmatprep.subr.mxu0 0.0
        %935 = vmatpush1.xpose.msra.mxu0 0.0
        %936 = vmatprep.subr.mxu0 0.0
        %937 = vmatpush1.xpose.msra.mxu0 0.0
        %938 = vmatprep.subr.mxu0 0.0
        %939 = vmatpush1.xpose.msra.mxu0 0.0
        %940 = vmatprep.mubr.f32.mxu0 0.0
        %941 = vmatmul.mubr.f32.gmra.mrb[0].mxu0 %v872
        %v942 = vpop.f32.mrb[0].mxu0
        %v943 = vadd.f32 0.0, %v942
        %v944 = vpop.f32.mrb[0].mxu0
        %945 = vdwg.mxu0
        %v946 = vsel %vm541, %v943, -inf
        %947 = vmax.xlane.f32.xlu0 %v946
        %v948 = vpop.xlane.xlu0 %947
        %v949 = vsub.f32 %v943, %v948
        %v950 = vmul.f32 %v949, 1.442695
        %v951 = vpow.pop %v950
        %v952 = vsel %vm541, %v951, 0.0
        %953 = vadd.xlane.f32.xlu0 %v952
        %v954 = vpop.xlane.xlu0 %953
        %v955 = vrcp.pop %v954
        %v956 = vmul.f32 %v951, %v955
        %957 = vrot.lane.b32.xlu0 %v535, 48
        %v958 = vpop.permute.xlu0 %957
        %v961 = vsel %vm541, %v956, 0
        %963 = vmatprep.subr.mxu0 0.0
        %964 = vmatpush1.msra.mxu0 %v958
        %965 = vmatprep.subr.mxu0 0.0
        %966 = vmatpush1.msra.mxu0 0.0
        %967 = vmatprep.subr.mxu0 0.0
        %968 = vmatpush1.msra.mxu0 0.0
        %969 = vmatprep.subr.mxu0 0.0
        %970 = vmatpush1.msra.mxu0 0.0
        %971 = vmatprep.subr.mxu0 0.0
        %972 = vmatpush1.msra.mxu0 0.0
        %973 = vmatprep.subr.mxu0 0.0
        %974 = vmatpush1.msra.mxu0 0.0
        %975 = vmatprep.subr.mxu0 0.0
        %976 = vmatpush1.msra.mxu0 0.0
        %977 = vmatprep.subr.mxu0 0.0
        %978 = vmatpush1.msra.mxu0 0.0
        %979 = vmatprep.subr.mxu0 0.0
        %980 = vmatpush1.msra.mxu0 0.0
        %981 = vmatprep.subr.mxu0 0.0
        %982 = vmatpush1.msra.mxu0 0.0
        %983 = vmatprep.subr.mxu0 0.0
        %984 = vmatpush1.msra.mxu0 0.0
        %985 = vmatprep.subr.mxu0 0.0
        %986 = vmatpush1.msra.mxu0 0.0
        %987 = vmatprep.subr.mxu0 0.0
        %988 = vmatpush1.msra.mxu0 0.0
        %989 = vmatprep.subr.mxu0 0.0
        %990 = vmatpush1.msra.mxu0 0.0
        %991 = vmatprep.subr.mxu0 0.0
        %992 = vmatpush1.msra.mxu0 0.0
        %993 = vmatprep.subr.mxu0 0.0
        %994 = vmatpush1.msra.mxu0 0.0
        %995 = vmatprep.subr.mxu0 0.0
        %996 = vmatpush1.msra.mxu0 0.0
        %997 = vmatprep.subr.mxu0 0.0
        %998 = vmatpush1.msra.mxu0 0.0
        %999 = vmatprep.subr.mxu0 0.0
        %1000 = vmatpush1.msra.mxu0 0.0
        %1001 = vmatprep.subr.mxu0 0.0
        %1002 = vmatpush1.msra.mxu0 0.0
        %1003 = vmatprep.subr.mxu0 0.0
        %1004 = vmatpush1.msra.mxu0 0.0
        %1005 = vmatprep.subr.mxu0 0.0
        %1006 = vmatpush1.msra.mxu0 0.0
        %1007 = vmatprep.subr.mxu0 0.0
        %1008 = vmatpush1.msra.mxu0 0.0
        %1009 = vmatprep.subr.mxu0 0.0
        %1010 = vmatpush1.msra.mxu0 0.0
        %1011 = vmatprep.subr.mxu0 0.0
        %1012 = vmatpush1.msra.mxu0 0.0
        %1013 = vmatprep.subr.mxu0 0.0
        %1014 = vmatpush1.msra.mxu0 0.0
        %1015 = vmatprep.subr.mxu0 0.0
        %1016 = vmatpush1.msra.mxu0 0.0
        %1017 = vmatprep.subr.mxu0 0.0
        %1018 = vmatpush1.msra.mxu0 0.0
        %1019 = vmatprep.subr.mxu0 0.0
        %1020 = vmatpush1.msra.mxu0 0.0
        %1021 = vmatprep.subr.mxu0 0.0
        %1022 = vmatpush1.msra.mxu0 0.0
        %1023 = vmatprep.subr.mxu0 0.0
        %1024 = vmatpush1.msra.mxu0 0.0
        %1025 = vmatprep.subr.mxu0 0.0
        %1026 = vmatpush1.msra.mxu0 0.0
        %1027 = vmatprep.mubr.f32.mxu0 0.0
        %1028 = vmatmul.mubr.f32.gmra.mrb[0].mxu0 %v961
        %v1029 = vpop.f32.mrb[0].mxu0
        %v1030 = vadd.f32 0.0, %v1029
        %v1031 = vpop.f32.mrb[0].mxu0
        %1032 = vdwg.mxu0
        %1033 = vrot.lane.b32.xlu0 %v535, 104
        %v1034 = vpop.permute.xlu0 %1033
        %1035 = vrot.lane.b32.xlu0 %v535, 72
        %v1036 = vpop.permute.xlu0 %1035
        %v1037 = vsel %vm541, %v1034, 0
        %v1039 = vsel %vm541, %v1036, 0
        %1041 = vmatprep.subr.mxu0 0.0
        %1042 = vmatpush1.xpose.msra.mxu0 %v1039
        %1043 = vmatprep.subr.mxu0 0.0
        %1044 = vmatpush1.xpose.msra.mxu0 0.0
        %1045 = vmatprep.subr.mxu0 0.0
        %1046 = vmatpush1.xpose.msra.mxu0 0.0
        %1047 = vmatprep.subr.mxu0 0.0
        %1048 = vmatpush1.xpose.msra.mxu0 0.0
        %1049 = vmatprep.subr.mxu0 0.0
        %1050 = vmatpush1.xpose.msra.mxu0 0.0
        %1051 = vmatprep.subr.mxu0 0.0
        %1052 = vmatpush1.xpose.msra.mxu0 0.0
        %1053 = vmatprep.subr.mxu0 0.0
        %1054 = vmatpush1.xpose.msra.mxu0 0.0
        %1055 = vmatprep.subr.mxu0 0.0
        %1056 = vmatpush1.xpose.msra.mxu0 0.0
        %1057 = vmatprep.subr.mxu0 0.0
        %1058 = vmatpush1.xpose.msra.mxu0 0.0
        %1059 = vmatprep.subr.mxu0 0.0
        %1060 = vmatpush1.xpose.msra.mxu0 0.0
        %1061 = vmatprep.subr.mxu0 0.0
        %1062 = vmatpush1.xpose.msra.mxu0 0.0
        %1063 = vmatprep.subr.mxu0 0.0
        %1064 = vmatpush1.xpose.msra.mxu0 0.0
        %1065 = vmatprep.subr.mxu0 0.0
        %1066 = vmatpush1.xpose.msra.mxu0 0.0
        %1067 = vmatprep.subr.mxu0 0.0
        %1068 = vmatpush1.xpose.msra.mxu0 0.0
        %1069 = vmatprep.subr.mxu0 0.0
        %1070 = vmatpush1.xpose.msra.mxu0 0.0
        %1071 = vmatprep.subr.mxu0 0.0
        %1072 = vmatpush1.xpose.msra.mxu0 0.0
        %1073 = vmatprep.subr.mxu0 0.0
        %1074 = vmatpush1.xpose.msra.mxu0 0.0
        %1075 = vmatprep.subr.mxu0 0.0
        %1076 = vmatpush1.xpose.msra.mxu0 0.0
        %1077 = vmatprep.subr.mxu0 0.0
        %1078 = vmatpush1.xpose.msra.mxu0 0.0
        %1079 = vmatprep.subr.mxu0 0.0
        %1080 = vmatpush1.xpose.msra.mxu0 0.0
        %1081 = vmatprep.subr.mxu0 0.0
        %1082 = vmatpush1.xpose.msra.mxu0 0.0
        %1083 = vmatprep.subr.mxu0 0.0
        %1084 = vmatpush1.xpose.msra.mxu0 0.0
        %1085 = vmatprep.subr.mxu0 0.0
        %1086 = vmatpush1.xpose.msra.mxu0 0.0
        %1087 = vmatprep.subr.mxu0 0.0
        %1088 = vmatpush1.xpose.msra.mxu0 0.0
        %1089 = vmatprep.subr.mxu0 0.0
        %1090 = vmatpush1.xpose.msra.mxu0 0.0
        %1091 = vmatprep.subr.mxu0 0.0
        %1092 = vmatpush1.xpose.msra.mxu0 0.0
        %1093 = vmatprep.subr.mxu0 0.0
        %1094 = vmatpush1.xpose.msra.mxu0 0.0
        %1095 = vmatprep.subr.mxu0 0.0
        %1096 = vmatpush1.xpose.msra.mxu0 0.0
        %1097 = vmatprep.subr.mxu0 0.0
        %1098 = vmatpush1.xpose.msra.mxu0 0.0
        %1099 = vmatprep.subr.mxu0 0.0
        %1100 = vmatpush1.xpose.msra.mxu0 0.0
        %1101 = vmatprep.subr.mxu0 0.0
        %1102 = vmatpush1.xpose.msra.mxu0 0.0
        %1103 = vmatprep.subr.mxu0 0.0
        %1104 = vmatpush1.xpose.msra.mxu0 0.0
        %1105 = vmatprep.mubr.f32.mxu0 0.0
        %1106 = vmatmul.mubr.f32.gmra.mrb[0].mxu0 %v1037
        %v1107 = vpop.f32.mrb[0].mxu0
        %v1108 = vadd.f32 0.0, %v1107
        %v1109 = vpop.f32.mrb[0].mxu0
        %1110 = vdwg.mxu0
        %v1111 = vsel %vm541, %v1108, -inf
        %1112 = vmax.xlane.f32.xlu0 %v1111
        %v1113 = vpop.xlane.xlu0 %1112
        %v1114 = vsub.f32 %v1108, %v1113
        %v1115 = vmul.f32 %v1114, 1.442695
        %v1116 = vpow.pop %v1115
        %v1117 = vsel %vm541, %v1116, 0.0
        %1118 = vadd.xlane.f32.xlu0 %v1117
        %v1119 = vpop.xlane.xlu0 %1118
        %v1120 = vrcp.pop %v1119
        %v1121 = vmul.f32 %v1116, %v1120
        %1122 = vrot.lane.b32.xlu0 %v535, 40
        %v1123 = vpop.permute.xlu0 %1122
        %v1126 = vsel %vm541, %v1121, 0
        %1128 = vmatprep.subr.mxu0 0.0
        %1129 = vmatpush1.msra.mxu0 %v1123
        %1130 = vmatprep.subr.mxu0 0.0
        %1131 = vmatpush1.msra.mxu0 0.0
        %1132 = vmatprep.subr.mxu0 0.0
        %1133 = vmatpush1.msra.mxu0 0.0
        %1134 = vmatprep.subr.mxu0 0.0
        %1135 = vmatpush1.msra.mxu0 0.0
        %1136 = vmatprep.subr.mxu0 0.0
        %1137 = vmatpush1.msra.mxu0 0.0
        %1138 = vmatprep.subr.mxu0 0.0
        %1139 = vmatpush1.msra.mxu0 0.0
        %1140 = vmatprep.subr.mxu0 0.0
        %1141 = vmatpush1.msra.mxu0 0.0
        %1142 = vmatprep.subr.mxu0 0.0
        %1143 = vmatpush1.msra.mxu0 0.0
        %1144 = vmatprep.subr.mxu0 0.0
        %1145 = vmatpush1.msra.mxu0 0.0
        %1146 = vmatprep.subr.mxu0 0.0
        %1147 = vmatpush1.msra.mxu0 0.0
        %1148 = vmatprep.subr.mxu0 0.0
        %1149 = vmatpush1.msra.mxu0 0.0
        %1150 = vmatprep.subr.mxu0 0.0
        %1151 = vmatpush1.msra.mxu0 0.0
        %1152 = vmatprep.subr.mxu0 0.0
        %1153 = vmatpush1.msra.mxu0 0.0
        %1154 = vmatprep.subr.mxu0 0.0
        %1155 = vmatpush1.msra.mxu0 0.0
        %1156 = vmatprep.subr.mxu0 0.0
        %1157 = vmatpush1.msra.mxu0 0.0
        %1158 = vmatprep.subr.mxu0 0.0
        %1159 = vmatpush1.msra.mxu0 0.0
        %1160 = vmatprep.subr.mxu0 0.0
        %1161 = vmatpush1.msra.mxu0 0.0
        %1162 = vmatprep.subr.mxu0 0.0
        %1163 = vmatpush1.msra.mxu0 0.0
        %1164 = vmatprep.subr.mxu0 0.0
        %1165 = vmatpush1.msra.mxu0 0.0
        %1166 = vmatprep.subr.mxu0 0.0
        %1167 = vmatpush1.msra.mxu0 0.0
        %1168 = vmatprep.subr.mxu0 0.0
        %1169 = vmatpush1.msra.mxu0 0.0
        %1170 = vmatprep.subr.mxu0 0.0
        %1171 = vmatpush1.msra.mxu0 0.0
        %1172 = vmatprep.subr.mxu0 0.0
        %1173 = vmatpush1.msra.mxu0 0.0
        %1174 = vmatprep.subr.mxu0 0.0
        %1175 = vmatpush1.msra.mxu0 0.0
        %1176 = vmatprep.subr.mxu0 0.0
        %1177 = vmatpush1.msra.mxu0 0.0
        %1178 = vmatprep.subr.mxu0 0.0
        %1179 = vmatpush1.msra.mxu0 0.0
        %1180 = vmatprep.subr.mxu0 0.0
        %1181 = vmatpush1.msra.mxu0 0.0
        %1182 = vmatprep.subr.mxu0 0.0
        %1183 = vmatpush1.msra.mxu0 0.0
        %1184 = vmatprep.subr.mxu0 0.0
        %1185 = vmatpush1.msra.mxu0 0.0
        %1186 = vmatprep.subr.mxu0 0.0
        %1187 = vmatpush1.msra.mxu0 0.0
        %1188 = vmatprep.subr.mxu0 0.0
        %1189 = vmatpush1.msra.mxu0 0.0
        %1190 = vmatprep.subr.mxu0 0.0
        %1191 = vmatpush1.msra.mxu0 0.0
        %1192 = vmatprep.mubr.f32.mxu0 0.0
        %1193 = vmatmul.mubr.f32.gmra.mrb[0].mxu0 %v1126
        %v1194 = vpop.f32.mrb[0].mxu0
        %v1195 = vadd.f32 0.0, %v1194
        %v1196 = vpop.f32.mrb[0].mxu0
        %1197 = vdwg.mxu0
        %1199 = vrot.lane.b32.xlu0 %v865, 8
        %v1200 = vpop.permute.xlu0 %1199
        %1203 = vrot.lane.b32.xlu0 %v1030, 16
        %v1204 = vpop.permute.xlu0 %1203
        %1207 = vrot.lane.b32.xlu0 %v1195, 24
        %v1208 = vpop.permute.xlu0 %1207
        %v1210 = vsel %vm541, %v700, %v1200
        %vm1211 = vcmask 130048
        %v1212 = vsel %vm1211, %v1210, %v1204
        %vm1213 = vcmask 195584
        %v1214 = vsel %vm1213, %v1212, %v1208
        %v1215 = vld [vmem:[%s4] sm:$0xff]
        %v1216 = vld [vmem:[%s4 + $0x8] sm:$0xff]
        %v1217 = vld [vmem:[%s4 + $0x10] sm:$0xff]
        %v1218 = vld [vmem:[%s4 + $0x18] sm:$0xff]
        %v1220 = vsel %vm432, %v1214, 0
        %1222 = vmatprep.subr.mxu0 0.0
        %1223 = vmatpush1.msra.mxu0 %v1215
        %1224 = vmatprep.subr.mxu0 0.0
        %1225 = vmatpush1.msra.mxu0 %v1216
        %1226 = vmatprep.subr.mxu0 0.0
        %1227 = vmatpush1.msra.mxu0 %v1217
        %1228 = vmatprep.subr.mxu0 0.0
        %1229 = vmatpush1.msra.mxu0 %v1218
        %1230 = vmatprep.subr.mxu0 0.0
        %1231 = vmatpush1.msra.mxu0 0.0
        %1232 = vmatprep.subr.mxu0 0.0
        %1233 = vmatpush1.msra.mxu0 0.0
        %1234 = vmatprep.subr.mxu0 0.0
        %1235 = vmatpush1.msra.mxu0 0.0
        %1236 = vmatprep.subr.mxu0 0.0
        %1237 = vmatpush1.msra.mxu0 0.0
        %1238 = vmatprep.subr.mxu0 0.0
        %1239 = vmatpush1.msra.mxu0 0.0
        %1240 = vmatprep.subr.mxu0 0.0
        %1241 = vmatpush1.msra.mxu0 0.0
        %1242 = vmatprep.subr.mxu0 0.0
        %1243 = vmatpush1.msra.mxu0 0.0
        %1244 = vmatprep.subr.mxu0 0.0
        %1245 = vmatpush1.msra.mxu0 0.0
        %1246 = vmatprep.subr.mxu0 0.0
        %1247 = vmatpush1.msra.mxu0 0.0
        %1248 = vmatprep.subr.mxu0 0.0
        %1249 = vmatpush1.msra.mxu0 0.0
        %1250 = vmatprep.subr.mxu0 0.0
        %1251 = vmatpush1.msra.mxu0 0.0
        %1252 = vmatprep.subr.mxu0 0.0
        %1253 = vmatpush1.msra.mxu0 0.0
        %1254 = vmatprep.subr.mxu0 0.0
        %1255 = vmatpush1.msra.mxu0 0.0
        %1256 = vmatprep.subr.mxu0 0.0
        %1257 = vmatpush1.msra.mxu0 0.0
        %1258 = vmatprep.subr.mxu0 0.0
        %1259 = vmatpush1.msra.mxu0 0.0
        %1260 = vmatprep.subr.mxu0 0.0
        %1261 = vmatpush1.msra.mxu0 0.0
        %1262 = vmatprep.subr.mxu0 0.0
        %1263 = vmatpush1.msra.mxu0 0.0
        %1264 = vmatprep.subr.mxu0 0.0
        %1265 = vmatpush1.msra.mxu0 0.0
        %1266 = vmatprep.subr.mxu0 0.0
        %1267 = vmatpush1.msra.mxu0 0.0
        %1268 = vmatprep.subr.mxu0 0.0
        %1269 = vmatpush1.msra.mxu0 0.0
        %1270 = vmatprep.subr.mxu0 0.0
        %1271 = vmatpush1.msra.mxu0 0.0
        %1272 = vmatprep.subr.mxu0 0.0
        %1273 = vmatpush1.msra.mxu0 0.0
        %1274 = vmatprep.subr.mxu0 0.0
        %1275 = vmatpush1.msra.mxu0 0.0
        %1276 = vmatprep.subr.mxu0 0.0
        %1277 = vmatpush1.msra.mxu0 0.0
        %1278 = vmatprep.subr.mxu0 0.0
        %1279 = vmatpush1.msra.mxu0 0.0
        %1280 = vmatprep.subr.mxu0 0.0
        %1281 = vmatpush1.msra.mxu0 0.0
        %1282 = vmatprep.subr.mxu0 0.0
        %1283 = vmatpush1.msra.mxu0 0.0
        %1284 = vmatprep.subr.mxu0 0.0
        %1285 = vmatpush1.msra.mxu0 0.0
        %1286 = vmatprep.mubr.f32.mxu0 0.0
        %1287 = vmatmul.mubr.f32.gmra.mrb[0].mxu0 %v1220
        %v1288 = vpop.f32.mrb[0].mxu0
        %v1289 = vadd.f32 0.0, %v1288
        %v1290 = vpop.f32.mrb[0].mxu0
        %1291 = vdwg.mxu0
        %v1292 = vadd.f32 %v429, %v1289
        %v1293 = vld [vmem:[%s5] sm:$0x1]
        %v1295 = vlaneseq
        %v1296 = vshrl.u32 %v1295, 7
        %v1297 = vsub.s32 0, %v1296
        %v1298 = vrot.slane %v1293, %v1297
        %v1300 = vadd.f32 %v1292, %v1298
        %v1301 = vld [vmem:[%s6] sm:$0x1]
        %v1302 = vld [vmem:[%s7] sm:$0x1]
        %v1303 = vsel %vm432, %v1300, 0.0
        %1304 = vadd.xlane.f32.xlu0 %v1303
        %v1305 = vpop.xlane.xlu0 %1304
        %v1306 = vmul.f32 %v1305, %v436
        %v1307 = vsub.f32 %v1300, %v1306
        %v1308 = vmul.f32 %v1307, %v1307
        %v1309 = vsel %vm432, %v1308, 0.0
        %1310 = vadd.xlane.f32.xlu0 %v1309
        %v1311 = vpop.xlane.xlu0 %1310
        %v1312 = vmul.f32 %v1311, %v436
        %v1313 = vadd.f32 %v1312, 1e-05
        %v1314 = vrsqrt.pop %v1313
        %v1315 = vmul.f32 %v1307, %v1314
        %v1317 = vlaneseq
        %v1318 = vshrl.u32 %v1317, 7
        %v1319 = vsub.s32 0, %v1318
        %v1320 = vrot.slane %v1301, %v1319
        %v1322 = vmul.f32 %v1315, %v1320
        %v1324 = vlaneseq
        %v1325 = vshrl.u32 %v1324, 7
        %v1326 = vsub.s32 0, %v1325
        %v1327 = vrot.slane %v1302, %v1326
        %v1329 = vadd.f32 %v1322, %v1327
        %v1330 = vld [vmem:[%s8] sm:$0xff]
        %v1331 = vld [vmem:[%s8 + $0x8] sm:$0xff]
        %v1332 = vld [vmem:[%s8 + $0x10] sm:$0xff]
        %v1333 = vld [vmem:[%s8 + $0x18] sm:$0xff]
        %v1334 = vld [vmem:[%s9] sm:$0x1]
        %v1336 = vlaneseq
        %v1337 = vshrl.u32 %v1336, 7
        %v1338 = vsub.s32 0, %v1337
        %v1339 = vrot.slane %v1334, %v1338
        %v1342 = vsel %vm432, %v1329, 0
        %1344 = vmatprep.subr.mxu0 0.0
        %1345 = vmatpush1.msra.mxu0 %v1330
        %1346 = vmatprep.subr.mxu0 0.0
        %1347 = vmatpush1.msra.mxu0 %v1331
        %1348 = vmatprep.subr.mxu0 0.0
        %1349 = vmatpush1.msra.mxu0 %v1332
        %1350 = vmatprep.subr.mxu0 0.0
        %1351 = vmatpush1.msra.mxu0 %v1333
        %1352 = vmatprep.subr.mxu0 0.0
        %1353 = vmatpush1.msra.mxu0 0.0
        %1354 = vmatprep.subr.mxu0 0.0
        %1355 = vmatpush1.msra.mxu0 0.0
        %1356 = vmatprep.subr.mxu0 0.0
        %1357 = vmatpush1.msra.mxu0 0.0
        %1358 = vmatprep.subr.mxu0 0.0
        %1359 = vmatpush1.msra.mxu0 0.0
        %1360 = vmatprep.subr.mxu0 0.0
        %1361 = vmatpush1.msra.mxu0 0.0
        %1362 = vmatprep.subr.mxu0 0.0
        %1363 = vmatpush1.msra.mxu0 0.0
        %1364 = vmatprep.subr.mxu0 0.0
        %1365 = vmatpush1.msra.mxu0 0.0
        %1366 = vmatprep.subr.mxu0 0.0
        %1367 = vmatpush1.msra.mxu0 0.0
        %1368 = vmatprep.subr.mxu0 0.0
        %1369 = vmatpush1.msra.mxu0 0.0
        %1370 = vmatprep.subr.mxu0 0.0
        %1371 = vmatpush1.msra.mxu0 0.0
        %1372 = vmatprep.subr.mxu0 0.0
        %1373 = vmatpush1.msra.mxu0 0.0
        %1374 = vmatprep.subr.mxu0 0.0
        %1375 = vmatpush1.msra.mxu0 0.0
        %1376 = vmatprep.subr.mxu0 0.0
        %1377 = vmatpush1.msra.mxu0 0.0
        %1378 = vmatprep.subr.mxu0 0.0
        %1379 = vmatpush1.msra.mxu0 0.0
        %1380 = vmatprep.subr.mxu0 0.0
        %1381 = vmatpush1.msra.mxu0 0.0
        %1382 = vmatprep.subr.mxu0 0.0
        %1383 = vmatpush1.msra.mxu0 0.0
        %1384 = vmatprep.subr.mxu0 0.0
        %1385 = vmatpush1.msra.mxu0 0.0
        %1386 = vmatprep.subr.mxu0 0.0
        %1387 = vmatpush1.msra.mxu0 0.0
        %1388 = vmatprep.subr.mxu0 0.0
        %1389 = vmatpush1.msra.mxu0 0.0
        %1390 = vmatprep.subr.mxu0 0.0
        %1391 = vmatpush1.msra.mxu0 0.0
        %1392 = vmatprep.subr.mxu0 0.0
        %1393 = vmatpush1.msra.mxu0 0.0
        %1394 = vmatprep.subr.mxu0 0.0
        %1395 = vmatpush1.msra.mxu0 0.0
        %1396 = vmatprep.subr.mxu0 0.0
        %1397 = vmatpush1.msra.mxu0 0.0
        %1398 = vmatprep.subr.mxu0 0.0
        %1399 = vmatpush1.msra.mxu0 0.0
        %1400 = vmatprep.subr.mxu0 0.0
        %1401 = vmatpush1.msra.mxu0 0.0
        %1402 = vmatprep.subr.mxu0 0.0
        %1403 = vmatpush1.msra.mxu0 0.0
        %1404 = vmatprep.subr.mxu0 0.0
        %1405 = vmatpush1.msra.mxu0 0.0
        %1406 = vmatprep.subr.mxu0 0.0
        %1407 = vmatpush1.msra.mxu0 0.0
        %1408 = vmatprep.mubr.f32.mxu0 0.0
        %1409 = vmatmul.mubr.f32.gmra.mrb[0].mxu0 %v1342
        %v1410 = vpop.f32.mrb[0].mxu0
        %v1411 = vadd.f32 %v1339, %v1410
        %v1412 = vpop.f32.mrb[0].mxu0
        %1413 = vdwg.mxu0
        %v1414 = vmul.f32 %v1411, 0.5
        %v1415 = vmul.f32 %v1411, 0.70710677
        %v1416 = vand.u32 2147483647, %v1415
        %v1417 = vmul.f32 %v1416, 0.3275911
        %v1418 = vadd.f32 %v1417, 1.0
        %v1419 = vrcp.pop %v1418
        %v1420 = vmul.f32 1.0, %v1419
        %v1421 = vmul.f32 %v1420, 1.0614054
        %v1422 = vadd.f32 %v1421, -1.4531521
        %v1423 = vmul.f32 %v1422, %v1420
        %v1424 = vadd.f32 %v1423, 1.4214138
        %v1425 = vmul.f32 %v1424, %v1420
        %v1426 = vadd.f32 %v1425, -0.28449672
        %v1427 = vmul.f32 %v1426, %v1420
        %v1428 = vadd.f32 %v1427, 0.2548296
        %v1429 = vmul.f32 %v1428, %v1420
        %v1430 = vsub.f32 0.0, %v1416
        %v1431 = vmul.f32 %v1430, %v1416
        %v1432 = vmul.f32 %v1431, 1.442695
        %v1433 = vpow.pop %v1432
        %v1434 = vmul.f32 %v1429, %v1433
        %v1435 = vsub.f32 1.0, %v1434
        %vm1436 = vcmp.lt.f32.partialorder %v1415, 0.0
        %v1437 = vsub.f32 0.0, %v1435
        %v1438 = vsel %vm1436, %v1437, %v1435
        %v1439 = vadd.f32 %v1438, 1.0
        %v1440 = vmul.f32 %v1414, %v1439
        %v1441 = vld [vmem:[%s10] sm:$0xff]
        %v1442 = vld [vmem:[%s10 + $0x8] sm:$0xff]
        %v1443 = vld [vmem:[%s10 + $0x10] sm:$0xff]
        %v1444 = vld [vmem:[%s10 + $0x18] sm:$0xff]
        %v1445 = vld [vmem:[%s10 + $0x20] sm:$0xff]
        %v1446 = vld [vmem:[%s10 + $0x28] sm:$0xff]
        %v1447 = vld [vmem:[%s10 + $0x30] sm:$0xff]
        %v1448 = vld [vmem:[%s10 + $0x38] sm:$0xff]
        %v1449 = vld [vmem:[%s11] sm:$0x1]
        %v1451 = vlaneseq
        %v1452 = vshrl.u32 %v1451, 7
        %v1453 = vsub.s32 0, %v1452
        %v1454 = vrot.slane %v1449, %v1453
        %vm1456 = vcmask 523264
        %v1458 = vsel %vm1456, %v1440, 0
        %1460 = vmatprep.subr.mxu0 0.0
        %1461 = vmatpush1.msra.mxu0 %v1441
        %1462 = vmatprep.subr.mxu0 0.0
        %1463 = vmatpush1.msra.mxu0 %v1442
        %1464 = vmatprep.subr.mxu0 0.0
        %1465 = vmatpush1.msra.mxu0 %v1443
        %1466 = vmatprep.subr.mxu0 0.0
        %1467 = vmatpush1.msra.mxu0 %v1444
        %1468 = vmatprep.subr.mxu0 0.0
        %1469 = vmatpush1.msra.mxu0 %v1445
        %1470 = vmatprep.subr.mxu0 0.0
        %1471 = vmatpush1.msra.mxu0 %v1446
        %1472 = vmatprep.subr.mxu0 0.0
        %1473 = vmatpush1.msra.mxu0 %v1447
        %1474 = vmatprep.subr.mxu0 0.0
        %1475 = vmatpush1.msra.mxu0 %v1448
        %1476 = vmatprep.subr.mxu0 0.0
        %1477 = vmatpush1.msra.mxu0 0.0
        %1478 = vmatprep.subr.mxu0 0.0
        %1479 = vmatpush1.msra.mxu0 0.0
        %1480 = vmatprep.subr.mxu0 0.0
        %1481 = vmatpush1.msra.mxu0 0.0
        %1482 = vmatprep.subr.mxu0 0.0
        %1483 = vmatpush1.msra.mxu0 0.0
        %1484 = vmatprep.subr.mxu0 0.0
        %1485 = vmatpush1.msra.mxu0 0.0
        %1486 = vmatprep.subr.mxu0 0.0
        %1487 = vmatpush1.msra.mxu0 0.0
        %1488 = vmatprep.subr.mxu0 0.0
        %1489 = vmatpush1.msra.mxu0 0.0
        %1490 = vmatprep.subr.mxu0 0.0
        %1491 = vmatpush1.msra.mxu0 0.0
        %1492 = vmatprep.subr.mxu0 0.0
        %1493 = vmatpush1.msra.mxu0 0.0
        %1494 = vmatprep.subr.mxu0 0.0
        %1495 = vmatpush1.msra.mxu0 0.0
        %1496 = vmatprep.subr.mxu0 0.0
        %1497 = vmatpush1.msra.mxu0 0.0
        %1498 = vmatprep.subr.mxu0 0.0
        %1499 = vmatpush1.msra.mxu0 0.0
        %1500 = vmatprep.subr.mxu0 0.0
        %1501 = vmatpush1.msra.mxu0 0.0
        %1502 = vmatprep.subr.mxu0 0.0
        %1503 = vmatpush1.msra.mxu0 0.0
        %1504 = vmatprep.subr.mxu0 0.0
        %1505 = vmatpush1.msra.mxu0 0.0
        %1506 = vmatprep.subr.mxu0 0.0
        %1507 = vmatpush1.msra.mxu0 0.0
        %1508 = vmatprep.subr.mxu0 0.0
        %1509 = vmatpush1.msra.mxu0 0.0
        %1510 = vmatprep.subr.mxu0 0.0
        %1511 = vmatpush1.msra.mxu0 0.0
        %1512 = vmatprep.subr.mxu0 0.0
        %1513 = vmatpush1.msra.mxu0 0.0
        %1514 = vmatprep.subr.mxu0 0.0
        %1515 = vmatpush1.msra.mxu0 0.0
        %1516 = vmatprep.subr.mxu0 0.0
        %1517 = vmatpush1.msra.mxu0 0.0
        %1518 = vmatprep.subr.mxu0 0.0
        %1519 = vmatpush1.msra.mxu0 0.0
        %1520 = vmatprep.subr.mxu0 0.0
        %1521 = vmatpush1.msra.mxu0 0.0
        %1522 = vmatprep.subr.mxu0 0.0
        %1523 = vmatpush1.msra.mxu0 0.0
        %1524 = vmatprep.mubr.f32.mxu0 0.0
        %1525 = vmatmul.mubr.f32.gmra.mrb[0].mxu0 %v1458
        %v1526 = vpop.f32.mrb[0].mxu0
        %v1527 = vadd.f32 %v1454, %v1526
        %v1528 = vpop.f32.mrb[0].mxu0
        %1529 = vdwg.mxu0
        %v1530 = vadd.f32 %v1300, %v1527
        %s1531 = scalar_lea.vmem %s1, 1
        %v1532 = vld [vmem:[%s1531] sm:$0x1]
        %s1533 = scalar_lea.vmem %s2, 1
        %v1534 = vld [vmem:[%s1533] sm:$0x1]
        %v1535 = vsel %vm432, %v1530, 0.0
        %1536 = vadd.xlane.f32.xlu0 %v1535
        %v1537 = vpop.xlane.xlu0 %1536
        %v1538 = vmul.f32 %v1537, %v436
        %v1539 = vsub.f32 %v1530, %v1538
        %v1540 = vmul.f32 %v1539, %v1539
        %v1541 = vsel %vm432, %v1540, 0.0
        %1542 = vadd.xlane.f32.xlu0 %v1541
        %v1543 = vpop.xlane.xlu0 %1542
        %v1544 = vmul.f32 %v1543, %v436
        %v1545 = vadd.f32 %v1544, 1e-05
        %v1546 = vrsqrt.pop %v1545
        %v1547 = vmul.f32 %v1539, %v1546
        %v1549 = vlaneseq
        %v1550 = vshrl.u32 %v1549, 7
        %v1551 = vsub.s32 0, %v1550
        %v1552 = vrot.slane %v1532, %v1551
        %v1554 = vmul.f32 %v1547, %v1552
        %v1556 = vlaneseq
        %v1557 = vshrl.u32 %v1556, 7
        %v1558 = vsub.s32 0, %v1557
        %v1559 = vrot.slane %v1534, %v1558
        %v1561 = vadd.f32 %v1554, %v1559
        %s1562 = scalar_lea.vmem %s3, 32
        %v1563 = vld [vmem:[%s1562] sm:$0xff]
        %v1564 = vld [vmem:[%s1562 + $0x8] sm:$0xff]
        %v1565 = vld [vmem:[%s1562 + $0x10] sm:$0xff]
        %v1566 = vld [vmem:[%s1562 + $0x18] sm:$0xff]
        %v1568 = vsel %vm432, %v1561, 0
        %1570 = vmatprep.subr.mxu0 0.0
        %1571 = vmatpush1.msra.mxu0 %v1563
        %1572 = vmatprep.subr.mxu0 0.0
        %1573 = vmatpush1.msra.mxu0 %v1564
        %1574 = vmatprep.subr.mxu0 0.0
        %1575 = vmatpush1.msra.mxu0 %v1565
        %1576 = vmatprep.subr.mxu0 0.0
        %1577 = vmatpush1.msra.mxu0 %v1566
        %1578 = vmatprep.subr.mxu0 0.0
        %1579 = vmatpush1.msra.mxu0 0.0
        %1580 = vmatprep.subr.mxu0 0.0
        %1581 = vmatpush1.msra.mxu0 0.0
        %1582 = vmatprep.subr.mxu0 0.0
        %1583 = vmatpush1.msra.mxu0 0.0
        %1584 = vmatprep.subr.mxu0 0.0
        %1585 = vmatpush1.msra.mxu0 0.0
        %1586 = vmatprep.subr.mxu0 0.0
        %1587 = vmatpush1.msra.mxu0 0.0
        %1588 = vmatprep.subr.mxu0 0.0
        %1589 = vmatpush1.msra.mxu0 0.0
        %1590 = vmatprep.subr.mxu0 0.0
        %1591 = vmatpush1.msra.mxu0 0.0
        %1592 = vmatprep.subr.mxu0 0.0
        %1593 = vmatpush1.msra.mxu0 0.0
        %1594 = vmatprep.subr.mxu0 0.0
        %1595 = vmatpush1.msra.mxu0 0.0
        %1596 = vmatprep.subr.mxu0 0.0
        %1597 = vmatpush1.msra.mxu0 0.0
        %1598 = vmatprep.subr.mxu0 0.0
        %1599 = vmatpush1.msra.mxu0 0.0
        %1600 = vmatprep.subr.mxu0 0.0
        %1601 = vmatpush1.msra.mxu0 0.0
        %1602 = vmatprep.subr.mxu0 0.0
        %1603 = vmatpush1.msra.mxu0 0.0
        %1604 = vmatprep.subr.mxu0 0.0
        %1605 = vmatpush1.msra.mxu0 0.0
        %1606 = vmatprep.subr.mxu0 0.0
        %1607 = vmatpush1.msra.mxu0 0.0
        %1608 = vmatprep.subr.mxu0 0.0
        %1609 = vmatpush1.msra.mxu0 0.0
        %1610 = vmatprep.subr.mxu0 0.0
        %1611 = vmatpush1.msra.mxu0 0.0
        %1612 = vmatprep.subr.mxu0 0.0
        %1613 = vmatpush1.msra.mxu0 0.0
        %1614 = vmatprep.subr.mxu0 0.0
        %1615 = vmatpush1.msra.mxu0 0.0
        %1616 = vmatprep.subr.mxu0 0.0
        %1617 = vmatpush1.msra.mxu0 0.0
        %1618 = vmatprep.subr.mxu0 0.0
        %1619 = vmatpush1.msra.mxu0 0.0
        %1620 = vmatprep.subr.mxu0 0.0
        %1621 = vmatpush1.msra.mxu0 0.0
        %1622 = vmatprep.subr.mxu0 0.0
        %1623 = vmatpush1.msra.mxu0 0.0
        %1624 = vmatprep.subr.mxu0 0.0
        %1625 = vmatpush1.msra.mxu0 0.0
        %1626 = vmatprep.subr.mxu0 0.0
        %1627 = vmatpush1.msra.mxu0 0.0
        %1628 = vmatprep.subr.mxu0 0.0
        %1629 = vmatpush1.msra.mxu0 0.0
        %1630 = vmatprep.subr.mxu0 0.0
        %1631 = vmatpush1.msra.mxu0 0.0
        %1632 = vmatprep.subr.mxu0 0.0
        %1633 = vmatpush1.msra.mxu0 0.0
        %1634 = vmatprep.mubr.f32.mxu0 0.0
        %1635 = vmatmul.mubr.f32.gmra.mrb[0].mxu0 %v1568
        %v1636 = vpop.f32.mrb[0].mxu0
        %v1637 = vadd.f32 0.0, %v1636
        %v1638 = vpop.f32.mrb[0].mxu0
        %1639 = vdwg.mxu0
        %1641 = vrot.lane.b32.xlu0 %v1637, 96
        %v1642 = vpop.permute.xlu0 %1641
        %v1643 = vsel %vm541, %v1637, 0
        %v1645 = vsel %vm541, %v1642, 0
        %1647 = vmatprep.subr.mxu0 0.0
        %1648 = vmatpush1.xpose.msra.mxu0 %v1645
        %1649 = vmatprep.subr.mxu0 0.0
        %1650 = vmatpush1.xpose.msra.mxu0 0.0
        %1651 = vmatprep.subr.mxu0 0.0
        %1652 = vmatpush1.xpose.msra.mxu0 0.0
        %1653 = vmatprep.subr.mxu0 0.0
        %1654 = vmatpush1.xpose.msra.mxu0 0.0
        %1655 = vmatprep.subr.mxu0 0.0
        %1656 = vmatpush1.xpose.msra.mxu0 0.0
        %1657 = vmatprep.subr.mxu0 0.0
        %1658 = vmatpush1.xpose.msra.mxu0 0.0
        %1659 = vmatprep.subr.mxu0 0.0
        %1660 = vmatpush1.xpose.msra.mxu0 0.0
        %1661 = vmatprep.subr.mxu0 0.0
        %1662 = vmatpush1.xpose.msra.mxu0 0.0
        %1663 = vmatprep.subr.mxu0 0.0
        %1664 = vmatpush1.xpose.msra.mxu0 0.0
        %1665 = vmatprep.subr.mxu0 0.0
        %1666 = vmatpush1.xpose.msra.mxu0 0.0
        %1667 = vmatprep.subr.mxu0 0.0
        %1668 = vmatpush1.xpose.msra.mxu0 0.0
        %1669 = vmatprep.subr.mxu0 0.0
        %1670 = vmatpush1.xpose.msra.mxu0 0.0
        %1671 = vmatprep.subr.mxu0 0.0
        %1672 = vmatpush1.xpose.msra.mxu0 0.0
        %1673 = vmatprep.subr.mxu0 0.0
        %1674 = vmatpush1.xpose.msra.mxu0 0.0
        %1675 = vmatprep.subr.mxu0 0.0
        %1676 = vmatpush1.xpose.msra.mxu0 0.0
        %1677 = vmatprep.subr.mxu0 0.0
        %1678 = vmatpush1.xpose.msra.mxu0 0.0
        %1679 = vmatprep.subr.mxu0 0.0
        %1680 = vmatpush1.xpose.msra.mxu0 0.0
        %1681 = vmatprep.subr.mxu0 0.0
        %1682 = vmatpush1.xpose.msra.mxu0 0.0
        %1683 = vmatprep.subr.mxu0 0.0
        %1684 = vmatpush1.xpose.msra.mxu0 0.0
        %1685 = vmatprep.subr.mxu0 0.0
        %1686 = vmatpush1.xpose.msra.mxu0 0.0
        %1687 = vmatprep.subr.mxu0 0.0
        %1688 = vmatpush1.xpose.msra.mxu0 0.0
        %1689 = vmatprep.subr.mxu0 0.0
        %1690 = vmatpush1.xpose.msra.mxu0 0.0
        %1691 = vmatprep.subr.mxu0 0.0
        %1692 = vmatpush1.xpose.msra.mxu0 0.0
        %1693 = vmatprep.subr.mxu0 0.0
        %1694 = vmatpush1.xpose.msra.mxu0 0.0
        %1695 = vmatprep.subr.mxu0 0.0
        %1696 = vmatpush1.xpose.msra.mxu0 0.0
        %1697 = vmatprep.subr.mxu0 0.0
        %1698 = vmatpush1.xpose.msra.mxu0 0.0
        %1699 = vmatprep.subr.mxu0 0.0
        %1700 = vmatpush1.xpose.msra.mxu0 0.0
        %1701 = vmatprep.subr.mxu0 0.0
        %1702 = vmatpush1.xpose.msra.mxu0 0.0
        %1703 = vmatprep.subr.mxu0 0.0
        %1704 = vmatpush1.xpose.msra.mxu0 0.0
        %1705 = vmatprep.subr.mxu0 0.0
        %1706 = vmatpush1.xpose.msra.mxu0 0.0
        %1707 = vmatprep.subr.mxu0 0.0
        %1708 = vmatpush1.xpose.msra.mxu0 0.0
        %1709 = vmatprep.subr.mxu0 0.0
        %1710 = vmatpush1.xpose.msra.mxu0 0.0
        %1711 = vmatprep.mubr.f32.mxu0 0.0
        %1712 = vmatmul.mubr.f32.gmra.mrb[0].mxu0 %v1643
        %v1713 = vpop.f32.mrb[0].mxu0
        %v1714 = vadd.f32 0.0, %v1713
        %v1715 = vpop.f32.mrb[0].mxu0
        %1716 = vdwg.mxu0
        %v1717 = vsel %vm541, %v1714, -inf
        %1718 = vmax.xlane.f32.xlu0 %v1717
        %v1719 = vpop.xlane.xlu0 %1718
        %v1720 = vsub.f32 %v1714, %v1719
        %v1721 = vmul.f32 %v1720, 1.442695
        %v1722 = vpow.pop %v1721
        %v1723 = vsel %vm541, %v1722, 0.0
        %1724 = vadd.xlane.f32.xlu0 %v1723
        %v1725 = vpop.xlane.xlu0 %1724
        %v1726 = vrcp.pop %v1725
        %v1727 = vmul.f32 %v1722, %v1726
        %1728 = vrot.lane.b32.xlu0 %v1637, 64
        %v1729 = vpop.permute.xlu0 %1728
        %v1732 = vsel %vm541, %v1727, 0
        %1734 = vmatprep.subr.mxu0 0.0
        %1735 = vmatpush1.msra.mxu0 %v1729
        %1736 = vmatprep.subr.mxu0 0.0
        %1737 = vmatpush1.msra.mxu0 0.0
        %1738 = vmatprep.subr.mxu0 0.0
        %1739 = vmatpush1.msra.mxu0 0.0
        %1740 = vmatprep.subr.mxu0 0.0
        %1741 = vmatpush1.msra.mxu0 0.0
        %1742 = vmatprep.subr.mxu0 0.0
        %1743 = vmatpush1.msra.mxu0 0.0
        %1744 = vmatprep.subr.mxu0 0.0
        %1745 = vmatpush1.msra.mxu0 0.0
        %1746 = vmatprep.subr.mxu0 0.0
        %1747 = vmatpush1.msra.mxu0 0.0
        %1748 = vmatprep.subr.mxu0 0.0
        %1749 = vmatpush1.msra.mxu0 0.0
        %1750 = vmatprep.subr.mxu0 0.0
        %1751 = vmatpush1.msra.mxu0 0.0
        %1752 = vmatprep.subr.mxu0 0.0
        %1753 = vmatpush1.msra.mxu0 0.0
        %1754 = vmatprep.subr.mxu0 0.0
        %1755 = vmatpush1.msra.mxu0 0.0
        %1756 = vmatprep.subr.mxu0 0.0
        %1757 = vmatpush1.msra.mxu0 0.0
        %1758 = vmatprep.subr.mxu0 0.0
        %1759 = vmatpush1.msra.mxu0 0.0
        %1760 = vmatprep.subr.mxu0 0.0
        %1761 = vmatpush1.msra.mxu0 0.0
        %1762 = vmatprep.subr.mxu0 0.0
        %1763 = vmatpush1.msra.mxu0 0.0
        %1764 = vmatprep.subr.mxu0 0.0
        %1765 = vmatpush1.msra.mxu0 0.0
        %1766 = vmatprep.subr.mxu0 0.0
        %1767 = vmatpush1.msra.mxu0 0.0
        %1768 = vmatprep.subr.mxu0 0.0
        %1769 = vmatpush1.msra.mxu0 0.0
        %1770 = vmatprep.subr.mxu0 0.0
        %1771 = vmatpush1.msra.mxu0 0.0
        %1772 = vmatprep.subr.mxu0 0.0
        %1773 = vmatpush1.msra.mxu0 0.0
        %1774 = vmatprep.subr.mxu0 0.0
        %1775 = vmatpush1.msra.mxu0 0.0
        %1776 = vmatprep.subr.mxu0 0.0
        %1777 = vmatpush1.msra.mxu0 0.0
        %1778 = vmatprep.subr.mxu0 0.0
        %1779 = vmatpush1.msra.mxu0 0.0
        %1780 = vmatprep.subr.mxu0 0.0
        %1781 = vmatpush1.msra.mxu0 0.0
        %1782 = vmatprep.subr.mxu0 0.0
        %1783 = vmatpush1.msra.mxu0 0.0
        %1784 = vmatprep.subr.mxu0 0.0
        %1785 = vmatpush1.msra.mxu0 0.0
        %1786 = vmatprep.subr.mxu0 0.0
        %1787 = vmatpush1.msra.mxu0 0.0
        %1788 = vmatprep.subr.mxu0 0.0
        %1789 = vmatpush1.msra.mxu0 0.0
        %1790 = vmatprep.subr.mxu0 0.0
        %1791 = vmatpush1.msra.mxu0 0.0
        %1792 = vmatprep.subr.mxu0 0.0
        %1793 = vmatpush1.msra.mxu0 0.0
        %1794 = vmatprep.subr.mxu0 0.0
        %1795 = vmatpush1.msra.mxu0 0.0
        %1796 = vmatprep.subr.mxu0 0.0
        %1797 = vmatpush1.msra.mxu0 0.0
        %1798 = vmatprep.mubr.f32.mxu0 0.0
        %1799 = vmatmul.mubr.f32.gmra.mrb[0].mxu0 %v1732
        %v1800 = vpop.f32.mrb[0].mxu0
        %v1801 = vadd.f32 0.0, %v1800
        %v1802 = vpop.f32.mrb[0].mxu0
        %1803 = vdwg.mxu0
        %1804 = vrot.lane.b32.xlu0 %v1637, 120
        %v1805 = vpop.permute.xlu0 %1804
        %1806 = vrot.lane.b32.xlu0 %v1637, 88
        %v1807 = vpop.permute.xlu0 %1806
        %v1808 = vsel %vm541, %v1805, 0
        %v1810 = vsel %vm541, %v1807, 0
        %1812 = vmatprep.subr.mxu0 0.0
        %1813 = vmatpush1.xpose.msra.mxu0 %v1810
        %1814 = vmatprep.subr.mxu0 0.0
        %1815 = vmatpush1.xpose.msra.mxu0 0.0
        %1816 = vmatprep.subr.mxu0 0.0
        %1817 = vmatpush1.xpose.msra.mxu0 0.0
        %1818 = vmatprep.subr.mxu0 0.0
        %1819 = vmatpush1.xpose.msra.mxu0 0.0
        %1820 = vmatprep.subr.mxu0 0.0
        %1821 = vmatpush1.xpose.msra.mxu0 0.0
        %1822 = vmatprep.subr.mxu0 0.0
        %1823 = vmatpush1.xpose.msra.mxu0 0.0
        %1824 = vmatprep.subr.mxu0 0.0
        %1825 = vmatpush1.xpose.msra.mxu0 0.0
        %1826 = vmatprep.subr.mxu0 0.0
        %1827 = vmatpush1.xpose.msra.mxu0 0.0
        %1828 = vmatprep.subr.mxu0 0.0
        %1829 = vmatpush1.xpose.msra.mxu0 0.0
        %1830 = vmatprep.subr.mxu0 0.0
        %1831 = vmatpush1.xpose.msra.mxu0 0.0
        %1832 = vmatprep.subr.mxu0 0.0
        %1833 = vmatpush1.xpose.msra.mxu0 0.0
        %1834 = vmatprep.subr.mxu0 0.0
        %1835 = vmatpush1.xpose.msra.mxu0 0.0
        %1836 = vmatprep.subr.mxu0 0.0
        %1837 = vmatpush1.xpose.msra.mxu0 0.0
        %1838 = vmatprep.subr.mxu0 0.0
        %1839 = vmatpush1.xpose.msra.mxu0 0.0
        %1840 = vmatprep.subr.mxu0 0.0
        %1841 = vmatpush1.xpose.msra.mxu0 0.0
        %1842 = vmatprep.subr.mxu0 0.0
        %1843 = vmatpush1.xpose.msra.mxu0 0.0
        %1844 = vmatprep.subr.mxu0 0.0
        %1845 = vmatpush1.xpose.msra.mxu0 0.0
        %1846 = vmatprep.subr.mxu0 0.0
        %1847 = vmatpush1.xpose.msra.mxu0 0.0
        %1848 = vmatprep.subr.mxu0 0.0
        %1849 = vmatpush1.xpose.msra.mxu0 0.0
        %1850 = vmatprep.subr.mxu0 0.0
        %1851 = vmatpush1.xpose.msra.mxu0 0.0
        %1852 = vmatprep.subr.mxu0 0.0
        %1853 = vmatpush1.xpose.msra.mxu0 0.0
        %1854 = vmatprep.subr.mxu0 0.0
        %1855 = vmatpush1.xpose.msra.mxu0 0.0
        %1856 = vmatprep.subr.mxu0 0.0
        %1857 = vmatpush1.xpose.msra.mxu0 0.0
        %1858 = vmatprep.subr.mxu0 0.0
        %1859 = vmatpush1.xpose.msra.mxu0 0.0
        %1860 = vmatprep.subr.mxu0 0.0
        %1861 = vmatpush1.xpose.msra.mxu0 0.0
        %1862 = vmatprep.subr.mxu0 0.0
        %1863 = vmatpush1.xpose.msra.mxu0 0.0
        %1864 = vmatprep.subr.mxu0 0.0
        %1865 = vmatpush1.xpose.msra.mxu0 0.0
        %1866 = vmatprep.subr.mxu0 0.0
        %1867 = vmatpush1.xpose.msra.mxu0 0.0
        %1868 = vmatprep.subr.mxu0 0.0
        %1869 = vmatpush1.xpose.msra.mxu0 0.0
        %1870 = vmatprep.subr.mxu0 0.0
        %1871 = vmatpush1.xpose.msra.mxu0 0.0
        %1872 = vmatprep.subr.mxu0 0.0
        %1873 = vmatpush1.xpose.msra.mxu0 0.0
        %1874 = vmatprep.subr.mxu0 0.0
        %1875 = vmatpush1.xpose.msra.mxu0 0.0
        %1876 = vmatprep.mubr.f32.mxu0 0.0
        %1877 = vmatmul.mubr.f32.gmra.mrb[0].mxu0 %v1808
        %v1878 = vpop.f32.mrb[0].mxu0
        %v1879 = vadd.f32 0.0, %v1878
        %v1880 = vpop.f32.mrb[0].mxu0
        %1881 = vdwg.mxu0
        %v1882 = vsel %vm541, %v1879, -inf
        %1883 = vmax.xlane.f32.xlu0 %v1882
        %v1884 = vpop.xlane.xlu0 %1883
        %v1885 = vsub.f32 %v1879, %v1884
        %v1886 = vmul.f32 %v1885, 1.442695
        %v1887 = vpow.pop %v1886
        %v1888 = vsel %vm541, %v1887, 0.0
        %1889 = vadd.xlane.f32.xlu0 %v1888
        %v1890 = vpop.xlane.xlu0 %1889
        %v1891 = vrcp.pop %v1890
        %v1892 = vmul.f32 %v1887, %v1891
        %1893 = vrot.lane.b32.xlu0 %v1637, 56
        %v1894 = vpop.permute.xlu0 %1893
        %v1897 = vsel %vm541, %v1892, 0
        %1899 = vmatprep.subr.mxu0 0.0
        %1900 = vmatpush1.msra.mxu0 %v1894
        %1901 = vmatprep.subr.mxu0 0.0
        %1902 = vmatpush1.msra.mxu0 0.0
        %1903 = vmatprep.subr.mxu0 0.0
        %1904 = vmatpush1.msra.mxu0 0.0
        %1905 = vmatprep.subr.mxu0 0.0
        %1906 = vmatpush1.msra.mxu0 0.0
        %1907 = vmatprep.subr.mxu0 0.0
        %1908 = vmatpush1.msra.mxu0 0.0
        %1909 = vmatprep.subr.mxu0 0.0
        %1910 = vmatpush1.msra.mxu0 0.0
        %1911 = vmatprep.subr.mxu0 0.0
        %1912 = vmatpush1.msra.mxu0 0.0
        %1913 = vmatprep.subr.mxu0 0.0
        %1914 = vmatpush1.msra.mxu0 0.0
        %1915 = vmatprep.subr.mxu0 0.0
        %1916 = vmatpush1.msra.mxu0 0.0
        %1917 = vmatprep.subr.mxu0 0.0
        %1918 = vmatpush1.msra.mxu0 0.0
        %1919 = vmatprep.subr.mxu0 0.0
        %1920 = vmatpush1.msra.mxu0 0.0
        %1921 = vmatprep.subr.mxu0 0.0
        %1922 = vmatpush1.msra.mxu0 0.0
        %1923 = vmatprep.subr.mxu0 0.0
        %1924 = vmatpush1.msra.mxu0 0.0
        %1925 = vmatprep.subr.mxu0 0.0
        %1926 = vmatpush1.msra.mxu0 0.0
        %1927 = vmatprep.subr.mxu0 0.0
        %1928 = vmatpush1.msra.mxu0 0.0
        %1929 = vmatprep.subr.mxu0 0.0
        %1930 = vmatpush1.msra.mxu0 0.0
        %1931 = vmatprep.subr.mxu0 0.0
        %1932 = vmatpush1.msra.mxu0 0.0
        %1933 = vmatprep.subr.mxu0 0.0
        %1934 = vmatpush1.msra.mxu0 0.0
        %1935 = vmatprep.subr.mxu0 0.0
        %1936 = vmatpush1.msra.mxu0 0.0
        %1937 = vmatprep.subr.mxu0 0.0
        %1938 = vmatpush1.msra.mxu0 0.0
        %1939 = vmatprep.subr.mxu0 0.0
        %1940 = vmatpush1.msra.mxu0 0.0
        %1941 = vmatprep.subr.mxu0 0.0
        %1942 = vmatpush1.msra.mxu0 0.0
        %1943 = vmatprep.subr.mxu0 0.0
        %1944 = vmatpush1.msra.mxu0 0.0
        %1945 = vmatprep.subr.mxu0 0.0
        %1946 = vmatpush1.msra.mxu0 0.0
        %1947 = vmatprep.subr.mxu0 0.0
        %1948 = vmatpush1.msra.mxu0 0.0
        %1949 = vmatprep.subr.mxu0 0.0
        %1950 = vmatpush1.msra.mxu0 0.0
        %1951 = vmatprep.subr.mxu0 0.0
        %1952 = vmatpush1.msra.mxu0 0.0
        %1953 = vmatprep.subr.mxu0 0.0
        %1954 = vmatpush1.msra.mxu0 0.0
        %1955 = vmatprep.subr.mxu0 0.0
        %1956 = vmatpush1.msra.mxu0 0.0
        %1957 = vmatprep.subr.mxu0 0.0
        %1958 = vmatpush1.msra.mxu0 0.0
        %1959 = vmatprep.subr.mxu0 0.0
        %1960 = vmatpush1.msra.mxu0 0.0
        %1961 = vmatprep.subr.mxu0 0.0
        %1962 = vmatpush1.msra.mxu0 0.0
        %1963 = vmatprep.mubr.f32.mxu0 0.0
        %1964 = vmatmul.mubr.f32.gmra.mrb[0].mxu0 %v1897
        %v1965 = vpop.f32.mrb[0].mxu0
        %v1966 = vadd.f32 0.0, %v1965
        %v1967 = vpop.f32.mrb[0].mxu0
        %1968 = vdwg.mxu0
        %1969 = vrot.lane.b32.xlu0 %v1637, 112
        %v1970 = vpop.permute.xlu0 %1969
        %1971 = vrot.lane.b32.xlu0 %v1637, 80
        %v1972 = vpop.permute.xlu0 %1971
        %v1973 = vsel %vm541, %v1970, 0
        %v1975 = vsel %vm541, %v1972, 0
        %1977 = vmatprep.subr.mxu0 0.0
        %1978 = vmatpush1.xpose.msra.mxu0 %v1975
        %1979 = vmatprep.subr.mxu0 0.0
        %1980 = vmatpush1.xpose.msra.mxu0 0.0
        %1981 = vmatprep.subr.mxu0 0.0
        %1982 = vmatpush1.xpose.msra.mxu0 0.0
        %1983 = vmatprep.subr.mxu0 0.0
        %1984 = vmatpush1.xpose.msra.mxu0 0.0
        %1985 = vmatprep.subr.mxu0 0.0
        %1986 = vmatpush1.xpose.msra.mxu0 0.0
        %1987 = vmatprep.subr.mxu0 0.0
        %1988 = vmatpush1.xpose.msra.mxu0 0.0
        %1989 = vmatprep.subr.mxu0 0.0
        %1990 = vmatpush1.xpose.msra.mxu0 0.0
        %1991 = vmatprep.subr.mxu0 0.0
        %1992 = vmatpush1.xpose.msra.mxu0 0.0
        %1993 = vmatprep.subr.mxu0 0.0
        %1994 = vmatpush1.xpose.msra.mxu0 0.0
        %1995 = vmatprep.subr.mxu0 0.0
        %1996 = vmatpush1.xpose.msra.mxu0 0.0
        %1997 = vmatprep.subr.mxu0 0.0
        %1998 = vmatpush1.xpose.msra.mxu0 0.0
        %1999 = vmatprep.subr.mxu0 0.0
        %2000 = vmatpush1.xpose.msra.mxu0 0.0
        %2001 = vmatprep.subr.mxu0 0.0
        %2002 = vmatpush1.xpose.msra.mxu0 0.0
        %2003 = vmatprep.subr.mxu0 0.0
        %2004 = vmatpush1.xpose.msra.mxu0 0.0
        %2005 = vmatprep.subr.mxu0 0.0
        %2006 = vmatpush1.xpose.msra.mxu0 0.0
        %2007 = vmatprep.subr.mxu0 0.0
        %2008 = vmatpush1.xpose.msra.mxu0 0.0
        %2009 = vmatprep.subr.mxu0 0.0
        %2010 = vmatpush1.xpose.msra.mxu0 0.0
        %2011 = vmatprep.subr.mxu0 0.0
        %2012 = vmatpush1.xpose.msra.mxu0 0.0
        %2013 = vmatprep.subr.mxu0 0.0
        %2014 = vmatpush1.xpose.msra.mxu0 0.0
        %2015 = vmatprep.subr.mxu0 0.0
        %2016 = vmatpush1.xpose.msra.mxu0 0.0
        %2017 = vmatprep.subr.mxu0 0.0
        %2018 = vmatpush1.xpose.msra.mxu0 0.0
        %2019 = vmatprep.subr.mxu0 0.0
        %2020 = vmatpush1.xpose.msra.mxu0 0.0
        %2021 = vmatprep.subr.mxu0 0.0
        %2022 = vmatpush1.xpose.msra.mxu0 0.0
        %2023 = vmatprep.subr.mxu0 0.0
        %2024 = vmatpush1.xpose.msra.mxu0 0.0
        %2025 = vmatprep.subr.mxu0 0.0
        %2026 = vmatpush1.xpose.msra.mxu0 0.0
        %2027 = vmatprep.subr.mxu0 0.0
        %2028 = vmatpush1.xpose.msra.mxu0 0.0
        %2029 = vmatprep.subr.mxu0 0.0
        %2030 = vmatpush1.xpose.msra.mxu0 0.0
        %2031 = vmatprep.subr.mxu0 0.0
        %2032 = vmatpush1.xpose.msra.mxu0 0.0
        %2033 = vmatprep.subr.mxu0 0.0
        %2034 = vmatpush1.xpose.msra.mxu0 0.0
        %2035 = vmatprep.subr.mxu0 0.0
        %2036 = vmatpush1.xpose.msra.mxu0 0.0
        %2037 = vmatprep.subr.mxu0 0.0
        %2038 = vmatpush1.xpose.msra.mxu0 0.0
        %2039 = vmatprep.subr.mxu0 0.0
        %2040 = vmatpush1.xpose.msra.mxu0 0.0
        %2041 = vmatprep.mubr.f32.mxu0 0.0
        %2042 = vmatmul.mubr.f32.gmra.mrb[0].mxu0 %v1973
        %v2043 = vpop.f32.mrb[0].mxu0
        %v2044 = vadd.f32 0.0, %v2043
        %v2045 = vpop.f32.mrb[0].mxu0
        %2046 = vdwg.mxu0
        %v2047 = vsel %vm541, %v2044, -inf
        %2048 = vmax.xlane.f32.xlu0 %v2047
        %v2049 = vpop.xlane.xlu0 %2048
        %v2050 = vsub.f32 %v2044, %v2049
        %v2051 = vmul.f32 %v2050, 1.442695
        %v2052 = vpow.pop %v2051
        %v2053 = vsel %vm541, %v2052, 0.0
        %2054 = vadd.xlane.f32.xlu0 %v2053
        %v2055 = vpop.xlane.xlu0 %2054
        %v2056 = vrcp.pop %v2055
        %v2057 = vmul.f32 %v2052, %v2056
        %2058 = vrot.lane.b32.xlu0 %v1637, 48
        %v2059 = vpop.permute.xlu0 %2058
        %v2062 = vsel %vm541, %v2057, 0
        %2064 = vmatprep.subr.mxu0 0.0
        %2065 = vmatpush1.msra.mxu0 %v2059
        %2066 = vmatprep.subr.mxu0 0.0
        %2067 = vmatpush1.msra.mxu0 0.0
        %2068 = vmatprep.subr.mxu0 0.0
        %2069 = vmatpush1.msra.mxu0 0.0
        %2070 = vmatprep.subr.mxu0 0.0
        %2071 = vmatpush1.msra.mxu0 0.0
        %2072 = vmatprep.subr.mxu0 0.0
        %2073 = vmatpush1.msra.mxu0 0.0
        %2074 = vmatprep.subr.mxu0 0.0
        %2075 = vmatpush1.msra.mxu0 0.0
        %2076 = vmatprep.subr.mxu0 0.0
        %2077 = vmatpush1.msra.mxu0 0.0
        %2078 = vmatprep.subr.mxu0 0.0
        %2079 = vmatpush1.msra.mxu0 0.0
        %2080 = vmatprep.subr.mxu0 0.0
        %2081 = vmatpush1.msra.mxu0 0.0
        %2082 = vmatprep.subr.mxu0 0.0
        %2083 = vmatpush1.msra.mxu0 0.0
        %2084 = vmatprep.subr.mxu0 0.0
        %2085 = vmatpush1.msra.mxu0 0.0
        %2086 = vmatprep.subr.mxu0 0.0
        %2087 = vmatpush1.msra.mxu0 0.0
        %2088 = vmatprep.subr.mxu0 0.0
        %2089 = vmatpush1.msra.mxu0 0.0
        %2090 = vmatprep.subr.mxu0 0.0
        %2091 = vmatpush1.msra.mxu0 0.0
        %2092 = vmatprep.subr.mxu0 0.0
        %2093 = vmatpush1.msra.mxu0 0.0
        %2094 = vmatprep.subr.mxu0 0.0
        %2095 = vmatpush1.msra.mxu0 0.0
        %2096 = vmatprep.subr.mxu0 0.0
        %2097 = vmatpush1.msra.mxu0 0.0
        %2098 = vmatprep.subr.mxu0 0.0
        %2099 = vmatpush1.msra.mxu0 0.0
        %2100 = vmatprep.subr.mxu0 0.0
        %2101 = vmatpush1.msra.mxu0 0.0
        %2102 = vmatprep.subr.mxu0 0.0
        %2103 = vmatpush1.msra.mxu0 0.0
        %2104 = vmatprep.subr.mxu0 0.0
        %2105 = vmatpush1.msra.mxu0 0.0
        %2106 = vmatprep.subr.mxu0 0.0
        %2107 = vmatpush1.msra.mxu0 0.0
        %2108 = vmatprep.subr.mxu0 0.0
        %2109 = vmatpush1.msra.mxu0 0.0
        %2110 = vmatprep.subr.mxu0 0.0
        %2111 = vmatpush1.msra.mxu0 0.0
        %2112 = vmatprep.subr.mxu0 0.0
        %2113 = vmatpush1.msra.mxu0 0.0
        %2114 = vmatprep.subr.mxu0 0.0
        %2115 = vmatpush1.msra.mxu0 0.0
        %2116 = vmatprep.subr.mxu0 0.0
        %2117 = vmatpush1.msra.mxu0 0.0
        %2118 = vmatprep.subr.mxu0 0.0
        %2119 = vmatpush1.msra.mxu0 0.0
        %2120 = vmatprep.subr.mxu0 0.0
        %2121 = vmatpush1.msra.mxu0 0.0
        %2122 = vmatprep.subr.mxu0 0.0
        %2123 = vmatpush1.msra.mxu0 0.0
        %2124 = vmatprep.subr.mxu0 0.0
        %2125 = vmatpush1.msra.mxu0 0.0
        %2126 = vmatprep.subr.mxu0 0.0
        %2127 = vmatpush1.msra.mxu0 0.0
        %2128 = vmatprep.mubr.f32.mxu0 0.0
        %2129 = vmatmul.mubr.f32.gmra.mrb[0].mxu0 %v2062
        %v2130 = vpop.f32.mrb[0].mxu0
        %v2131 = vadd.f32 0.0, %v2130
        %v2132 = vpop.f32.mrb[0].mxu0
        %2133 = vdwg.mxu0
        %2134 = vrot.lane.b32.xlu0 %v1637, 104
        %v2135 = vpop.permute.xlu0 %2134
        %2136 = vrot.lane.b32.xlu0 %v1637, 72
        %v2137 = vpop.permute.xlu0 %2136
        %v2138 = vsel %vm541, %v2135, 0
        %v2140 = vsel %vm541, %v2137, 0
        %2142 = vmatprep.subr.mxu0 0.0
        %2143 = vmatpush1.xpose.msra.mxu0 %v2140
        %2144 = vmatprep.subr.mxu0 0.0
        %2145 = vmatpush1.xpose.msra.mxu0 0.0
        %2146 = vmatprep.subr.mxu0 0.0
        %2147 = vmatpush1.xpose.msra.mxu0 0.0
        %2148 = vmatprep.subr.mxu0 0.0
        %2149 = vmatpush1.xpose.msra.mxu0 0.0
        %2150 = vmatprep.subr.mxu0 0.0
        %2151 = vmatpush1.xpose.msra.mxu0 0.0
        %2152 = vmatprep.subr.mxu0 0.0
        %2153 = vmatpush1.xpose.msra.mxu0 0.0
        %2154 = vmatprep.subr.mxu0 0.0
        %2155 = vmatpush1.xpose.msra.mxu0 0.0
        %2156 = vmatprep.subr.mxu0 0.0
        %2157 = vmatpush1.xpose.msra.mxu0 0.0
        %2158 = vmatprep.subr.mxu0 0.0
        %2159 = vmatpush1.xpose.msra.mxu0 0.0
        %2160 = vmatprep.subr.mxu0 0.0
        %2161 = vmatpush1.xpose.msra.mxu0 0.0
        %2162 = vmatprep.subr.mxu0 0.0
        %2163 = vmatpush1.xpose.msra.mxu0 0.0
        %2164 = vmatprep.subr.mxu0 0.0
        %2165 = vmatpush1.xpose.msra.mxu0 0.0
        %2166 = vmatprep.subr.mxu0 0.0
        %2167 = vmatpush1.xpose.msra.mxu0 0.0
        %2168 = vmatprep.subr.mxu0 0.0
        %2169 = vmatpush1.xpose.msra.mxu0 0.0
        %2170 = vmatprep.subr.mxu0 0.0
        %2171 = vmatpush1.xpose.msra.mxu0 0.0
        %2172 = vmatprep.subr.mxu0 0.0
        %2173 = vmatpush1.xpose.msra.mxu0 0.0
        %2174 = vmatprep.subr.mxu0 0.0
        %2175 = vmatpush1.xpose.msra.mxu0 0.0
        %2176 = vmatprep.subr.mxu0 0.0
        %2177 = vmatpush1.xpose.msra.mxu0 0.0
        %2178 = vmatprep.subr.mxu0 0.0
        %2179 = vmatpush1.xpose.msra.mxu0 0.0
        %2180 = vmatprep.subr.mxu0 0.0
        %2181 = vmatpush1.xpose.msra.mxu0 0.0
        %2182 = vmatprep.subr.mxu0 0.0
        %2183 = vmatpush1.xpose.msra.mxu0 0.0
        %2184 = vmatprep.subr.mxu0 0.0
        %2185 = vmatpush1.xpose.msra.mxu0 0.0
        %2186 = vmatprep.subr.mxu0 0.0
        %2187 = vmatpush1.xpose.msra.mxu0 0.0
        %2188 = vmatprep.subr.mxu0 0.0
        %2189 = vmatpush1.xpose.msra.mxu0 0.0
        %2190 = vmatprep.subr.mxu0 0.0
        %2191 = vmatpush1.xpose.msra.mxu0 0.0
        %2192 = vmatprep.subr.mxu0 0.0
        %2193 = vmatpush1.xpose.msra.mxu0 0.0
        %2194 = vmatprep.subr.mxu0 0.0
        %2195 = vmatpush1.xpose.msra.mxu0 0.0
        %2196 = vmatprep.subr.mxu0 0.0
        %2197 = vmatpush1.xpose.msra.mxu0 0.0
        %2198 = vmatprep.subr.mxu0 0.0
        %2199 = vmatpush1.xpose.msra.mxu0 0.0
        %2200 = vmatprep.subr.mxu0 0.0
        %2201 = vmatpush1.xpose.msra.mxu0 0.0
        %2202 = vmatprep.subr.mxu0 0.0
        %2203 = vmatpush1.xpose.msra.mxu0 0.0
        %2204 = vmatprep.subr.mxu0 0.0
        %2205 = vmatpush1.xpose.msra.mxu0 0.0
        %2206 = vmatprep.mubr.f32.mxu0 0.0
        %2207 = vmatmul.mubr.f32.gmra.mrb[0].mxu0 %v2138
        %v2208 = vpop.f32.mrb[0].mxu0
        %v2209 = vadd.f32 0.0, %v2208
        %v2210 = vpop.f32.mrb[0].mxu0
        %2211 = vdwg.mxu0
        %v2212 = vsel %vm541, %v2209, -inf
        %2213 = vmax.xlane.f32.xlu0 %v2212
        %v2214 = vpop.xlane.xlu0 %2213
        %v2215 = vsub.f32 %v2209, %v2214
        %v2216 = vmul.f32 %v2215, 1.442695
        %v2217 = vpow.pop %v2216
        %v2218 = vsel %vm541, %v2217, 0.0
        %2219 = vadd.xlane.f32.xlu0 %v2218
        %v2220 = vpop.xlane.xlu0 %2219
        %v2221 = vrcp.pop %v2220
        %v2222 = vmul.f32 %v2217, %v2221
        %2223 = vrot.lane.b32.xlu0 %v1637, 40
        %v2224 = vpop.permute.xlu0 %2223
        %v2227 = vsel %vm541, %v2222, 0
        %2229 = vmatprep.subr.mxu0 0.0
        %2230 = vmatpush1.msra.mxu0 %v2224
        %2231 = vmatprep.subr.mxu0 0.0
        %2232 = vmatpush1.msra.mxu0 0.0
        %2233 = vmatprep.subr.mxu0 0.0
        %2234 = vmatpush1.msra.mxu0 0.0
        %2235 = vmatprep.subr.mxu0 0.0
        %2236 = vmatpush1.msra.mxu0 0.0
        %2237 = vmatprep.subr.mxu0 0.0
        %2238 = vmatpush1.msra.mxu0 0.0
        %2239 = vmatprep.subr.mxu0 0.0
        %2240 = vmatpush1.msra.mxu0 0.0
        %2241 = vmatprep.subr.mxu0 0.0
        %2242 = vmatpush1.msra.mxu0 0.0
        %2243 = vmatprep.subr.mxu0 0.0
        %2244 = vmatpush1.msra.mxu0 0.0
        %2245 = vmatprep.subr.mxu0 0.0
        %2246 = vmatpush1.msra.mxu0 0.0
        %2247 = vmatprep.subr.mxu0 0.0
        %2248 = vmatpush1.msra.mxu0 0.0
        %2249 = vmatprep.subr.mxu0 0.0
        %2250 = vmatpush1.msra.mxu0 0.0
        %2251 = vmatprep.subr.mxu0 0.0
        %2252 = vmatpush1.msra.mxu0 0.0
        %2253 = vmatprep.subr.mxu0 0.0
        %2254 = vmatpush1.msra.mxu0 0.0
        %2255 = vmatprep.subr.mxu0 0.0
        %2256 = vmatpush1.msra.mxu0 0.0
        %2257 = vmatprep.subr.mxu0 0.0
        %2258 = vmatpush1.msra.mxu0 0.0
        %2259 = vmatprep.subr.mxu0 0.0
        %2260 = vmatpush1.msra.mxu0 0.0
        %2261 = vmatprep.subr.mxu0 0.0
        %2262 = vmatpush1.msra.mxu0 0.0
        %2263 = vmatprep.subr.mxu0 0.0
        %2264 = vmatpush1.msra.mxu0 0.0
        %2265 = vmatprep.subr.mxu0 0.0
        %2266 = vmatpush1.msra.mxu0 0.0
        %2267 = vmatprep.subr.mxu0 0.0
        %2268 = vmatpush1.msra.mxu0 0.0
        %2269 = vmatprep.subr.mxu0 0.0
        %2270 = vmatpush1.msra.mxu0 0.0
        %2271 = vmatprep.subr.mxu0 0.0
        %2272 = vmatpush1.msra.mxu0 0.0
        %2273 = vmatprep.subr.mxu0 0.0
        %2274 = vmatpush1.msra.mxu0 0.0
        %2275 = vmatprep.subr.mxu0 0.0
        %2276 = vmatpush1.msra.mxu0 0.0
        %2277 = vmatprep.subr.mxu0 0.0
        %2278 = vmatpush1.msra.mxu0 0.0
        %2279 = vmatprep.subr.mxu0 0.0
        %2280 = vmatpush1.msra.mxu0 0.0
        %2281 = vmatprep.subr.mxu0 0.0
        %2282 = vmatpush1.msra.mxu0 0.0
        %2283 = vmatprep.subr.mxu0 0.0
        %2284 = vmatpush1.msra.mxu0 0.0
        %2285 = vmatprep.subr.mxu0 0.0
        %2286 = vmatpush1.msra.mxu0 0.0
        %2287 = vmatprep.subr.mxu0 0.0
        %2288 = vmatpush1.msra.mxu0 0.0
        %2289 = vmatprep.subr.mxu0 0.0
        %2290 = vmatpush1.msra.mxu0 0.0
        %2291 = vmatprep.subr.mxu0 0.0
        %2292 = vmatpush1.msra.mxu0 0.0
        %2293 = vmatprep.mubr.f32.mxu0 0.0
        %2294 = vmatmul.mubr.f32.gmra.mrb[0].mxu0 %v2227
        %v2295 = vpop.f32.mrb[0].mxu0
        %v2296 = vadd.f32 0.0, %v2295
        %v2297 = vpop.f32.mrb[0].mxu0
        %2298 = vdwg.mxu0
        %2300 = vrot.lane.b32.xlu0 %v1966, 8
        %v2301 = vpop.permute.xlu0 %2300
        %2304 = vrot.lane.b32.xlu0 %v2131, 16
        %v2305 = vpop.permute.xlu0 %2304
        %2308 = vrot.lane.b32.xlu0 %v2296, 24
        %v2309 = vpop.permute.xlu0 %2308
        %v2311 = vsel %vm541, %v1801, %v2301
        %v2312 = vsel %vm1211, %v2311, %v2305
        %v2313 = vsel %vm1213, %v2312, %v2309
        %s2314 = scalar_lea.vmem %s4, 32
        %v2315 = vld [vmem:[%s2314] sm:$0xff]
        %v2316 = vld [vmem:[%s2314 + $0x8] sm:$0xff]
        %v2317 = vld [vmem:[%s2314 + $0x10] sm:$0xff]
        %v2318 = vld [vmem:[%s2314 + $0x18] sm:$0xff]
        %v2320 = vsel %vm432, %v2313, 0
        %2322 = vmatprep.subr.mxu0 0.0
        %2323 = vmatpush1.msra.mxu0 %v2315
        %2324 = vmatprep.subr.mxu0 0.0
        %2325 = vmatpush1.msra.mxu0 %v2316
        %2326 = vmatprep.subr.mxu0 0.0
        %2327 = vmatpush1.msra.mxu0 %v2317
        %2328 = vmatprep.subr.mxu0 0.0
        %2329 = vmatpush1.msra.mxu0 %v2318
        %2330 = vmatprep.subr.mxu0 0.0
        %2331 = vmatpush1.msra.mxu0 0.0
        %2332 = vmatprep.subr.mxu0 0.0
        %2333 = vmatpush1.msra.mxu0 0.0
        %2334 = vmatprep.subr.mxu0 0.0
        %2335 = vmatpush1.msra.mxu0 0.0
        %2336 = vmatprep.subr.mxu0 0.0
        %2337 = vmatpush1.msra.mxu0 0.0
        %2338 = vmatprep.subr.mxu0 0.0
        %2339 = vmatpush1.msra.mxu0 0.0
        %2340 = vmatprep.subr.mxu0 0.0
        %2341 = vmatpush1.msra.mxu0 0.0
        %2342 = vmatprep.subr.mxu0 0.0
        %2343 = vmatpush1.msra.mxu0 0.0
        %2344 = vmatprep.subr.mxu0 0.0
        %2345 = vmatpush1.msra.mxu0 0.0
        %2346 = vmatprep.subr.mxu0 0.0
        %2347 = vmatpush1.msra.mxu0 0.0
        %2348 = vmatprep.subr.mxu0 0.0
        %2349 = vmatpush1.msra.mxu0 0.0
        %2350 = vmatprep.subr.mxu0 0.0
        %2351 = vmatpush1.msra.mxu0 0.0
        %2352 = vmatprep.subr.mxu0 0.0
        %2353 = vmatpush1.msra.mxu0 0.0
        %2354 = vmatprep.subr.mxu0 0.0
        %2355 = vmatpush1.msra.mxu0 0.0
        %2356 = vmatprep.subr.mxu0 0.0
        %2357 = vmatpush1.msra.mxu0 0.0
        %2358 = vmatprep.subr.mxu0 0.0
        %2359 = vmatpush1.msra.mxu0 0.0
        %2360 = vmatprep.subr.mxu0 0.0
        %2361 = vmatpush1.msra.mxu0 0.0
        %2362 = vmatprep.subr.mxu0 0.0
        %2363 = vmatpush1.msra.mxu0 0.0
        %2364 = vmatprep.subr.mxu0 0.0
        %2365 = vmatpush1.msra.mxu0 0.0
        %2366 = vmatprep.subr.mxu0 0.0
        %2367 = vmatpush1.msra.mxu0 0.0
        %2368 = vmatprep.subr.mxu0 0.0
        %2369 = vmatpush1.msra.mxu0 0.0
        %2370 = vmatprep.subr.mxu0 0.0
        %2371 = vmatpush1.msra.mxu0 0.0
        %2372 = vmatprep.subr.mxu0 0.0
        %2373 = vmatpush1.msra.mxu0 0.0
        %2374 = vmatprep.subr.mxu0 0.0
        %2375 = vmatpush1.msra.mxu0 0.0
        %2376 = vmatprep.subr.mxu0 0.0
        %2377 = vmatpush1.msra.mxu0 0.0
        %2378 = vmatprep.subr.mxu0 0.0
        %2379 = vmatpush1.msra.mxu0 0.0
        %2380 = vmatprep.subr.mxu0 0.0
        %2381 = vmatpush1.msra.mxu0 0.0
        %2382 = vmatprep.subr.mxu0 0.0
        %2383 = vmatpush1.msra.mxu0 0.0
        %2384 = vmatprep.subr.mxu0 0.0
        %2385 = vmatpush1.msra.mxu0 0.0
        %2386 = vmatprep.mubr.f32.mxu0 0.0
        %2387 = vmatmul.mubr.f32.gmra.mrb[0].mxu0 %v2320
        %v2388 = vpop.f32.mrb[0].mxu0
        %v2389 = vadd.f32 0.0, %v2388
        %v2390 = vpop.f32.mrb[0].mxu0
        %2391 = vdwg.mxu0
        %v2392 = vadd.f32 %v1530, %v2389
        %s2393 = scalar_lea.vmem %s5, 1
        %v2394 = vld [vmem:[%s2393] sm:$0x1]
        %v2396 = vlaneseq
        %v2397 = vshrl.u32 %v2396, 7
        %v2398 = vsub.s32 0, %v2397
        %v2399 = vrot.slane %v2394, %v2398
        %v2401 = vadd.f32 %v2392, %v2399
        %s2402 = scalar_lea.vmem %s6, 1
        %v2403 = vld [vmem:[%s2402] sm:$0x1]
        %s2404 = scalar_lea.vmem %s7, 1
        %v2405 = vld [vmem:[%s2404] sm:$0x1]
        %v2406 = vsel %vm432, %v2401, 0.0
        %2407 = vadd.xlane.f32.xlu0 %v2406
        %v2408 = vpop.xlane.xlu0 %2407
        %v2409 = vmul.f32 %v2408, %v436
        %v2410 = vsub.f32 %v2401, %v2409
        %v2411 = vmul.f32 %v2410, %v2410
        %v2412 = vsel %vm432, %v2411, 0.0
        %2413 = vadd.xlane.f32.xlu0 %v2412
        %v2414 = vpop.xlane.xlu0 %2413
        %v2415 = vmul.f32 %v2414, %v436
        %v2416 = vadd.f32 %v2415, 1e-05
        %v2417 = vrsqrt.pop %v2416
        %v2418 = vmul.f32 %v2410, %v2417
        %v2420 = vlaneseq
        %v2421 = vshrl.u32 %v2420, 7
        %v2422 = vsub.s32 0, %v2421
        %v2423 = vrot.slane %v2403, %v2422
        %v2425 = vmul.f32 %v2418, %v2423
        %v2427 = vlaneseq
        %v2428 = vshrl.u32 %v2427, 7
        %v2429 = vsub.s32 0, %v2428
        %v2430 = vrot.slane %v2405, %v2429
        %v2432 = vadd.f32 %v2425, %v2430
        %s2433 = scalar_lea.vmem %s8, 32
        %v2434 = vld [vmem:[%s2433] sm:$0xff]
        %v2435 = vld [vmem:[%s2433 + $0x8] sm:$0xff]
        %v2436 = vld [vmem:[%s2433 + $0x10] sm:$0xff]
        %v2437 = vld [vmem:[%s2433 + $0x18] sm:$0xff]
        %s2438 = scalar_lea.vmem %s9, 1
        %v2439 = vld [vmem:[%s2438] sm:$0x1]
        %v2441 = vlaneseq
        %v2442 = vshrl.u32 %v2441, 7
        %v2443 = vsub.s32 0, %v2442
        %v2444 = vrot.slane %v2439, %v2443
        %v2447 = vsel %vm432, %v2432, 0
        %2449 = vmatprep.subr.mxu0 0.0
        %2450 = vmatpush1.msra.mxu0 %v2434
        %2451 = vmatprep.subr.mxu0 0.0
        %2452 = vmatpush1.msra.mxu0 %v2435
        %2453 = vmatprep.subr.mxu0 0.0
        %2454 = vmatpush1.msra.mxu0 %v2436
        %2455 = vmatprep.subr.mxu0 0.0
        %2456 = vmatpush1.msra.mxu0 %v2437
        %2457 = vmatprep.subr.mxu0 0.0
        %2458 = vmatpush1.msra.mxu0 0.0
        %2459 = vmatprep.subr.mxu0 0.0
        %2460 = vmatpush1.msra.mxu0 0.0
        %2461 = vmatprep.subr.mxu0 0.0
        %2462 = vmatpush1.msra.mxu0 0.0
        %2463 = vmatprep.subr.mxu0 0.0
        %2464 = vmatpush1.msra.mxu0 0.0
        %2465 = vmatprep.subr.mxu0 0.0
        %2466 = vmatpush1.msra.mxu0 0.0
        %2467 = vmatprep.subr.mxu0 0.0
        %2468 = vmatpush1.msra.mxu0 0.0
        %2469 = vmatprep.subr.mxu0 0.0
        %2470 = vmatpush1.msra.mxu0 0.0
        %2471 = vmatprep.subr.mxu0 0.0
        %2472 = vmatpush1.msra.mxu0 0.0
        %2473 = vmatprep.subr.mxu0 0.0
        %2474 = vmatpush1.msra.mxu0 0.0
        %2475 = vmatprep.subr.mxu0 0.0
        %2476 = vmatpush1.msra.mxu0 0.0
        %2477 = vmatprep.subr.mxu0 0.0
        %2478 = vmatpush1.msra.mxu0 0.0
        %2479 = vmatprep.subr.mxu0 0.0
        %2480 = vmatpush1.msra.mxu0 0.0
        %2481 = vmatprep.subr.mxu0 0.0
        %2482 = vmatpush1.msra.mxu0 0.0
        %2483 = vmatprep.subr.mxu0 0.0
        %2484 = vmatpush1.msra.mxu0 0.0
        %2485 = vmatprep.subr.mxu0 0.0
        %2486 = vmatpush1.msra.mxu0 0.0
        %2487 = vmatprep.subr.mxu0 0.0
        %2488 = vmatpush1.msra.mxu0 0.0
        %2489 = vmatprep.subr.mxu0 0.0
        %2490 = vmatpush1.msra.mxu0 0.0
        %2491 = vmatprep.subr.mxu0 0.0
        %2492 = vmatpush1.msra.mxu0 0.0
        %2493 = vmatprep.subr.mxu0 0.0
        %2494 = vmatpush1.msra.mxu0 0.0
        %2495 = vmatprep.subr.mxu0 0.0
        %2496 = vmatpush1.msra.mxu0 0.0
        %2497 = vmatprep.subr.mxu0 0.0
        %2498 = vmatpush1.msra.mxu0 0.0
        %2499 = vmatprep.subr.mxu0 0.0
        %2500 = vmatpush1.msra.mxu0 0.0
        %2501 = vmatprep.subr.mxu0 0.0
        %2502 = vmatpush1.msra.mxu0 0.0
        %2503 = vmatprep.subr.mxu0 0.0
        %2504 = vmatpush1.msra.mxu0 0.0
        %2505 = vmatprep.subr.mxu0 0.0
        %2506 = vmatpush1.msra.mxu0 0.0
        %2507 = vmatprep.subr.mxu0 0.0
        %2508 = vmatpush1.msra.mxu0 0.0
        %2509 = vmatprep.subr.mxu0 0.0
        %2510 = vmatpush1.msra.mxu0 0.0
        %2511 = vmatprep.subr.mxu0 0.0
        %2512 = vmatpush1.msra.mxu0 0.0
        %2513 = vmatprep.mubr.f32.mxu0 0.0
        %2514 = vmatmul.mubr.f32.gmra.mrb[0].mxu0 %v2447
        %v2515 = vpop.f32.mrb[0].mxu0
        %v2516 = vadd.f32 %v2444, %v2515
        %v2517 = vpop.f32.mrb[0].mxu0
        %2518 = vdwg.mxu0
        %v2519 = vmul.f32 %v2516, 0.5
        %v2520 = vmul.f32 %v2516, 0.70710677
        %v2521 = vand.u32 2147483647, %v2520
        %v2522 = vmul.f32 %v2521, 0.3275911
        %v2523 = vadd.f32 %v2522, 1.0
        %v2524 = vrcp.pop %v2523
        %v2525 = vmul.f32 1.0, %v2524
        %v2526 = vmul.f32 %v2525, 1.0614054
        %v2527 = vadd.f32 %v2526, -1.4531521
        %v2528 = vmul.f32 %v2527, %v2525
        %v2529 = vadd.f32 %v2528, 1.4214138
        %v2530 = vmul.f32 %v2529, %v2525
        %v2531 = vadd.f32 %v2530, -0.28449672
        %v2532 = vmul.f32 %v2531, %v2525
        %v2533 = vadd.f32 %v2532, 0.2548296
        %v2534 = vmul.f32 %v2533, %v2525
        %v2535 = vsub.f32 0.0, %v2521
        %v2536 = vmul.f32 %v2535, %v2521
        %v2537 = vmul.f32 %v2536, 1.442695
        %v2538 = vpow.pop %v2537
        %v2539 = vmul.f32 %v2534, %v2538
        %v2540 = vsub.f32 1.0, %v2539
        %vm2541 = vcmp.lt.f32.partialorder %v2520, 0.0
        %v2542 = vsub.f32 0.0, %v2540
        %v2543 = vsel %vm2541, %v2542, %v2540
        %v2544 = vadd.f32 %v2543, 1.0
        %v2545 = vmul.f32 %v2519, %v2544
        %s2546 = scalar_lea.vmem %s10, 64
        %v2547 = vld [vmem:[%s2546] sm:$0xff]
        %v2548 = vld [vmem:[%s2546 + $0x8] sm:$0xff]
        %v2549 = vld [vmem:[%s2546 + $0x10] sm:$0xff]
        %v2550 = vld [vmem:[%s2546 + $0x18] sm:$0xff]
        %v2551 = vld [vmem:[%s2546 + $0x20] sm:$0xff]
        %v2552 = vld [vmem:[%s2546 + $0x28] sm:$0xff]
        %v2553 = vld [vmem:[%s2546 + $0x30] sm:$0xff]
        %v2554 = vld [vmem:[%s2546 + $0x38] sm:$0xff]
        %s2555 = scalar_lea.vmem %s11, 1
        %v2556 = vld [vmem:[%s2555] sm:$0x1]
        %v2558 = vlaneseq
        %v2559 = vshrl.u32 %v2558, 7
        %v2560 = vsub.s32 0, %v2559
        %v2561 = vrot.slane %v2556, %v2560
        %v2564 = vsel %vm1456, %v2545, 0
        %2566 = vmatprep.subr.mxu0 0.0
        %2567 = vmatpush1.msra.mxu0 %v2547
        %2568 = vmatprep.subr.mxu0 0.0
        %2569 = vmatpush1.msra.mxu0 %v2548
        %2570 = vmatprep.subr.mxu0 0.0
        %2571 = vmatpush1.msra.mxu0 %v2549
        %2572 = vmatprep.subr.mxu0 0.0
        %2573 = vmatpush1.msra.mxu0 %v2550
        %2574 = vmatprep.subr.mxu0 0.0
        %2575 = vmatpush1.msra.mxu0 %v2551
        %2576 = vmatprep.subr.mxu0 0.0
        %2577 = vmatpush1.msra.mxu0 %v2552
        %2578 = vmatprep.subr.mxu0 0.0
        %2579 = vmatpush1.msra.mxu0 %v2553
        %2580 = vmatprep.subr.mxu0 0.0
        %2581 = vmatpush1.msra.mxu0 %v2554
        %2582 = vmatprep.subr.mxu0 0.0
        %2583 = vmatpush1.msra.mxu0 0.0
        %2584 = vmatprep.subr.mxu0 0.0
        %2585 = vmatpush1.msra.mxu0 0.0
        %2586 = vmatprep.subr.mxu0 0.0
        %2587 = vmatpush1.msra.mxu0 0.0
        %2588 = vmatprep.subr.mxu0 0.0
        %2589 = vmatpush1.msra.mxu0 0.0
        %2590 = vmatprep.subr.mxu0 0.0
        %2591 = vmatpush1.msra.mxu0 0.0
        %2592 = vmatprep.subr.mxu0 0.0
        %2593 = vmatpush1.msra.mxu0 0.0
        %2594 = vmatprep.subr.mxu0 0.0
        %2595 = vmatpush1.msra.mxu0 0.0
        %2596 = vmatprep.subr.mxu0 0.0
        %2597 = vmatpush1.msra.mxu0 0.0
        %2598 = vmatprep.subr.mxu0 0.0
        %2599 = vmatpush1.msra.mxu0 0.0
        %2600 = vmatprep.subr.mxu0 0.0
        %2601 = vmatpush1.msra.mxu0 0.0
        %2602 = vmatprep.subr.mxu0 0.0
        %2603 = vmatpush1.msra.mxu0 0.0
        %2604 = vmatprep.subr.mxu0 0.0
        %2605 = vmatpush1.msra.mxu0 0.0
        %2606 = vmatprep.subr.mxu0 0.0
        %2607 = vmatpush1.msra.mxu0 0.0
        %2608 = vmatprep.subr.mxu0 0.0
        %2609 = vmatpush1.msra.mxu0 0.0
        %2610 = vmatprep.subr.mxu0 0.0
        %2611 = vmatpush1.msra.mxu0 0.0
        %2612 = vmatprep.subr.mxu0 0.0
        %2613 = vmatpush1.msra.mxu0 0.0
        %2614 = vmatprep.subr.mxu0 0.0
        %2615 = vmatpush1.msra.mxu0 0.0
        %2616 = vmatprep.subr.mxu0 0.0
        %2617 = vmatpush1.msra.mxu0 0.0
        %2618 = vmatprep.subr.mxu0 0.0
        %2619 = vmatpush1.msra.mxu0 0.0
        %2620 = vmatprep.subr.mxu0 0.0
        %2621 = vmatpush1.msra.mxu0 0.0
        %2622 = vmatprep.subr.mxu0 0.0
        %2623 = vmatpush1.msra.mxu0 0.0
        %2624 = vmatprep.subr.mxu0 0.0
        %2625 = vmatpush1.msra.mxu0 0.0
        %2626 = vmatprep.subr.mxu0 0.0
        %2627 = vmatpush1.msra.mxu0 0.0
        %2628 = vmatprep.subr.mxu0 0.0
        %2629 = vmatpush1.msra.mxu0 0.0
        %2630 = vmatprep.mubr.f32.mxu0 0.0
        %2631 = vmatmul.mubr.f32.gmra.mrb[0].mxu0 %v2564
        %v2632 = vpop.f32.mrb[0].mxu0
        %v2633 = vadd.f32 %v2561, %v2632
        %v2634 = vpop.f32.mrb[0].mxu0
        %2635 = vdwg.mxu0
        %v2636 = vadd.f32 %v2401, %v2633
        %s2637 = scalar_lea.vmem %s1, 2
        %v2638 = vld [vmem:[%s2637] sm:$0x1]
        %s2639 = scalar_lea.vmem %s2, 2
        %v2640 = vld [vmem:[%s2639] sm:$0x1]
        %v2641 = vsel %vm432, %v2636, 0.0
        %2642 = vadd.xlane.f32.xlu0 %v2641
        %v2643 = vpop.xlane.xlu0 %2642
        %v2644 = vmul.f32 %v2643, %v436
        %v2645 = vsub.f32 %v2636, %v2644
        %v2646 = vmul.f32 %v2645, %v2645
        %v2647 = vsel %vm432, %v2646, 0.0
        %2648 = vadd.xlane.f32.xlu0 %v2647
        %v2649 = vpop.xlane.xlu0 %2648
        %v2650 = vmul.f32 %v2649, %v436
        %v2651 = vadd.f32 %v2650, 1e-05
        %v2652 = vrsqrt.pop %v2651
        %v2653 = vmul.f32 %v2645, %v2652
        %v2655 = vlaneseq
        %v2656 = vshrl.u32 %v2655, 7
        %v2657 = vsub.s32 0, %v2656
        %v2658 = vrot.slane %v2638, %v2657
        %v2660 = vmul.f32 %v2653, %v2658
        %v2662 = vlaneseq
        %v2663 = vshrl.u32 %v2662, 7
        %v2664 = vsub.s32 0, %v2663
        %v2665 = vrot.slane %v2640, %v2664
        %v2667 = vadd.f32 %v2660, %v2665
        %s2668 = scalar_lea.vmem %s3, 64
        %v2669 = vld [vmem:[%s2668] sm:$0xff]
        %v2670 = vld [vmem:[%s2668 + $0x8] sm:$0xff]
        %v2671 = vld [vmem:[%s2668 + $0x10] sm:$0xff]
        %v2672 = vld [vmem:[%s2668 + $0x18] sm:$0xff]
        %v2674 = vsel %vm432, %v2667, 0
        %2676 = vmatprep.subr.mxu0 0.0
        %2677 = vmatpush1.msra.mxu0 %v2669
        %2678 = vmatprep.subr.mxu0 0.0
        %2679 = vmatpush1.msra.mxu0 %v2670
        %2680 = vmatprep.subr.mxu0 0.0
        %2681 = vmatpush1.msra.mxu0 %v2671
        %2682 = vmatprep.subr.mxu0 0.0
        %2683 = vmatpush1.msra.mxu0 %v2672
        %2684 = vmatprep.subr.mxu0 0.0
        %2685 = vmatpush1.msra.mxu0 0.0
        %2686 = vmatprep.subr.mxu0 0.0
        %2687 = vmatpush1.msra.mxu0 0.0
        %2688 = vmatprep.subr.mxu0 0.0
        %2689 = vmatpush1.msra.mxu0 0.0
        %2690 = vmatprep.subr.mxu0 0.0
        %2691 = vmatpush1.msra.mxu0 0.0
        %2692 = vmatprep.subr.mxu0 0.0
        %2693 = vmatpush1.msra.mxu0 0.0
        %2694 = vmatprep.subr.mxu0 0.0
        %2695 = vmatpush1.msra.mxu0 0.0
        %2696 = vmatprep.subr.mxu0 0.0
        %2697 = vmatpush1.msra.mxu0 0.0
        %2698 = vmatprep.subr.mxu0 0.0
        %2699 = vmatpush1.msra.mxu0 0.0
        %2700 = vmatprep.subr.mxu0 0.0
        %2701 = vmatpush1.msra.mxu0 0.0
        %2702 = vmatprep.subr.mxu0 0.0
        %2703 = vmatpush1.msra.mxu0 0.0
        %2704 = vmatprep.subr.mxu0 0.0
        %2705 = vmatpush1.msra.mxu0 0.0
        %2706 = vmatprep.subr.mxu0 0.0
        %2707 = vmatpush1.msra.mxu0 0.0
        %2708 = vmatprep.subr.mxu0 0.0
        %2709 = vmatpush1.msra.mxu0 0.0
        %2710 = vmatprep.subr.mxu0 0.0
        %2711 = vmatpush1.msra.mxu0 0.0
        %2712 = vmatprep.subr.mxu0 0.0
        %2713 = vmatpush1.msra.mxu0 0.0
        %2714 = vmatprep.subr.mxu0 0.0
        %2715 = vmatpush1.msra.mxu0 0.0
        %2716 = vmatprep.subr.mxu0 0.0
        %2717 = vmatpush1.msra.mxu0 0.0
        %2718 = vmatprep.subr.mxu0 0.0
        %2719 = vmatpush1.msra.mxu0 0.0
        %2720 = vmatprep.subr.mxu0 0.0
        %2721 = vmatpush1.msra.mxu0 0.0
        %2722 = vmatprep.subr.mxu0 0.0
        %2723 = vmatpush1.msra.mxu0 0.0
        %2724 = vmatprep.subr.mxu0 0.0
        %2725 = vmatpush1.msra.mxu0 0.0
        %2726 = vmatprep.subr.mxu0 0.0
        %2727 = vmatpush1.msra.mxu0 0.0
        %2728 = vmatprep.subr.mxu0 0.0
        %2729 = vmatpush1.msra.mxu0 0.0
        %2730 = vmatprep.subr.mxu0 0.0
        %2731 = vmatpush1.msra.mxu0 0.0
        %2732 = vmatprep.subr.mxu0 0.0
        %2733 = vmatpush1.msra.mxu0 0.0
        %2734 = vmatprep.subr.mxu0 0.0
        %2735 = vmatpush1.msra.mxu0 0.0
        %2736 = vmatprep.subr.mxu0 0.0
        %2737 = vmatpush1.msra.mxu0 0.0
        %2738 = vmatprep.subr.mxu0 0.0
        %2739 = vmatpush1.msra.mxu0 0.0
        %2740 = vmatprep.mubr.f32.mxu0 0.0
        %2741 = vmatmul.mubr.f32.gmra.mrb[0].mxu0 %v2674
        %v2742 = vpop.f32.mrb[0].mxu0
        %v2743 = vadd.f32 0.0, %v2742
        %v2744 = vpop.f32.mrb[0].mxu0
        %2745 = vdwg.mxu0
        %2747 = vrot.lane.b32.xlu0 %v2743, 96
        %v2748 = vpop.permute.xlu0 %2747
        %v2749 = vsel %vm541, %v2743, 0
        %v2751 = vsel %vm541, %v2748, 0
        %2753 = vmatprep.subr.mxu0 0.0
        %2754 = vmatpush1.xpose.msra.mxu0 %v2751
        %2755 = vmatprep.subr.mxu0 0.0
        %2756 = vmatpush1.xpose.msra.mxu0 0.0
        %2757 = vmatprep.subr.mxu0 0.0
        %2758 = vmatpush1.xpose.msra.mxu0 0.0
        %2759 = vmatprep.subr.mxu0 0.0
        %2760 = vmatpush1.xpose.msra.mxu0 0.0
        %2761 = vmatprep.subr.mxu0 0.0
        %2762 = vmatpush1.xpose.msra.mxu0 0.0
        %2763 = vmatprep.subr.mxu0 0.0
        %2764 = vmatpush1.xpose.msra.mxu0 0.0
        %2765 = vmatprep.subr.mxu0 0.0
        %2766 = vmatpush1.xpose.msra.mxu0 0.0
        %2767 = vmatprep.subr.mxu0 0.0
        %2768 = vmatpush1.xpose.msra.mxu0 0.0
        %2769 = vmatprep.subr.mxu0 0.0
        %2770 = vmatpush1.xpose.msra.mxu0 0.0
        %2771 = vmatprep.subr.mxu0 0.0
        %2772 = vmatpush1.xpose.msra.mxu0 0.0
        %2773 = vmatprep.subr.mxu0 0.0
        %2774 = vmatpush1.xpose.msra.mxu0 0.0
        %2775 = vmatprep.subr.mxu0 0.0
        %2776 = vmatpush1.xpose.msra.mxu0 0.0
        %2777 = vmatprep.subr.mxu0 0.0
        %2778 = vmatpush1.xpose.msra.mxu0 0.0
        %2779 = vmatprep.subr.mxu0 0.0
        %2780 = vmatpush1.xpose.msra.mxu0 0.0
        %2781 = vmatprep.subr.mxu0 0.0
        %2782 = vmatpush1.xpose.msra.mxu0 0.0
        %2783 = vmatprep.subr.mxu0 0.0
        %2784 = vmatpush1.xpose.msra.mxu0 0.0
        %2785 = vmatprep.subr.mxu0 0.0
        %2786 = vmatpush1.xpose.msra.mxu0 0.0
        %2787 = vmatprep.subr.mxu0 0.0
        %2788 = vmatpush1.xpose.msra.mxu0 0.0
        %2789 = vmatprep.subr.mxu0 0.0
        %2790 = vmatpush1.xpose.msra.mxu0 0.0
        %2791 = vmatprep.subr.mxu0 0.0
        %2792 = vmatpush1.xpose.msra.mxu0 0.0
        %2793 = vmatprep.subr.mxu0 0.0
        %2794 = vmatpush1.xpose.msra.mxu0 0.0
        %2795 = vmatprep.subr.mxu0 0.0
        %2796 = vmatpush1.xpose.msra.mxu0 0.0
        %2797 = vmatprep.subr.mxu0 0.0
        %2798 = vmatpush1.xpose.msra.mxu0 0.0
        %2799 = vmatprep.subr.mxu0 0.0
        %2800 = vmatpush1.xpose.msra.mxu0 0.0
        %2801 = vmatprep.subr.mxu0 0.0
        %2802 = vmatpush1.xpose.msra.mxu0 0.0
        %2803 = vmatprep.subr.mxu0 0.0
        %2804 = vmatpush1.xpose.msra.mxu0 0.0
        %2805 = vmatprep.subr.mxu0 0.0
        %2806 = vmatpush1.xpose.msra.mxu0 0.0
        %2807 = vmatprep.subr.mxu0 0.0
        %2808 = vmatpush1.xpose.msra.mxu0 0.0
        %2809 = vmatprep.subr.mxu0 0.0
        %2810 = vmatpush1.xpose.msra.mxu0 0.0
        %2811 = vmatprep.subr.mxu0 0.0
        %2812 = vmatpush1.xpose.msra.mxu0 0.0
        %2813 = vmatprep.subr.mxu0 0.0
        %2814 = vmatpush1.xpose.msra.mxu0 0.0
        %2815 = vmatprep.subr.mxu0 0.0
        %2816 = vmatpush1.xpose.msra.mxu0 0.0
        %2817 = vmatprep.mubr.f32.mxu0 0.0
        %2818 = vmatmul.mubr.f32.gmra.mrb[0].mxu0 %v2749
        %v2819 = vpop.f32.mrb[0].mxu0
        %v2820 = vadd.f32 0.0, %v2819
        %v2821 = vpop.f32.mrb[0].mxu0
        %2822 = vdwg.mxu0
        %v2823 = vsel %vm541, %v2820, -inf
        %2824 = vmax.xlane.f32.xlu0 %v2823
        %v2825 = vpop.xlane.xlu0 %2824
        %v2826 = vsub.f32 %v2820, %v2825
        %v2827 = vmul.f32 %v2826, 1.442695
        %v2828 = vpow.pop %v2827
        %v2829 = vsel %vm541, %v2828, 0.0
        %2830 = vadd.xlane.f32.xlu0 %v2829
        %v2831 = vpop.xlane.xlu0 %2830
        %v2832 = vrcp.pop %v2831
        %v2833 = vmul.f32 %v2828, %v2832
        %2834 = vrot.lane.b32.xlu0 %v2743, 64
        %v2835 = vpop.permute.xlu0 %2834
        %v2838 = vsel %vm541, %v2833, 0
        %2840 = vmatprep.subr.mxu0 0.0
        %2841 = vmatpush1.msra.mxu0 %v2835
        %2842 = vmatprep.subr.mxu0 0.0
        %2843 = vmatpush1.msra.mxu0 0.0
        %2844 = vmatprep.subr.mxu0 0.0
        %2845 = vmatpush1.msra.mxu0 0.0
        %2846 = vmatprep.subr.mxu0 0.0
        %2847 = vmatpush1.msra.mxu0 0.0
        %2848 = vmatprep.subr.mxu0 0.0
        %2849 = vmatpush1.msra.mxu0 0.0
        %2850 = vmatprep.subr.mxu0 0.0
        %2851 = vmatpush1.msra.mxu0 0.0
        %2852 = vmatprep.subr.mxu0 0.0
        %2853 = vmatpush1.msra.mxu0 0.0
        %2854 = vmatprep.subr.mxu0 0.0
        %2855 = vmatpush1.msra.mxu0 0.0
        %2856 = vmatprep.subr.mxu0 0.0
        %2857 = vmatpush1.msra.mxu0 0.0
        %2858 = vmatprep.subr.mxu0 0.0
        %2859 = vmatpush1.msra.mxu0 0.0
        %2860 = vmatprep.subr.mxu0 0.0
        %2861 = vmatpush1.msra.mxu0 0.0
        %2862 = vmatprep.subr.mxu0 0.0
        %2863 = vmatpush1.msra.mxu0 0.0
        %2864 = vmatprep.subr.mxu0 0.0
        %2865 = vmatpush1.msra.mxu0 0.0
        %2866 = vmatprep.subr.mxu0 0.0
        %2867 = vmatpush1.msra.mxu0 0.0
        %2868 = vmatprep.subr.mxu0 0.0
        %2869 = vmatpush1.msra.mxu0 0.0
        %2870 = vmatprep.subr.mxu0 0.0
        %2871 = vmatpush1.msra.mxu0 0.0
        %2872 = vmatprep.subr.mxu0 0.0
        %2873 = vmatpush1.msra.mxu0 0.0
        %2874 = vmatprep.subr.mxu0 0.0
        %2875 = vmatpush1.msra.mxu0 0.0
        %2876 = vmatprep.subr.mxu0 0.0
        %2877 = vmatpush1.msra.mxu0 0.0
        %2878 = vmatprep.subr.mxu0 0.0
        %2879 = vmatpush1.msra.mxu0 0.0
        %2880 = vmatprep.subr.mxu0 0.0
        %2881 = vmatpush1.msra.mxu0 0.0
        %2882 = vmatprep.subr.mxu0 0.0
        %2883 = vmatpush1.msra.mxu0 0.0
        %2884 = vmatprep.subr.mxu0 0.0
        %2885 = vmatpush1.msra.mxu0 0.0
        %2886 = vmatprep.subr.mxu0 0.0
        %2887 = vmatpush1.msra.mxu0 0.0
        %2888 = vmatprep.subr.mxu0 0.0
        %2889 = vmatpush1.msra.mxu0 0.0
        %2890 = vmatprep.subr.mxu0 0.0
        %2891 = vmatpush1.msra.mxu0 0.0
        %2892 = vmatprep.subr.mxu0 0.0
        %2893 = vmatpush1.msra.mxu0 0.0
        %2894 = vmatprep.subr.mxu0 0.0
        %2895 = vmatpush1.msra.mxu0 0.0
        %2896 = vmatprep.subr.mxu0 0.0
        %2897 = vmatpush1.msra.mxu0 0.0
        %2898 = vmatprep.subr.mxu0 0.0
        %2899 = vmatpush1.msra.mxu0 0.0
        %2900 = vmatprep.subr.mxu0 0.0
        %2901 = vmatpush1.msra.mxu0 0.0
        %2902 = vmatprep.subr.mxu0 0.0
        %2903 = vmatpush1.msra.mxu0 0.0
        %2904 = vmatprep.mubr.f32.mxu0 0.0
        %2905 = vmatmul.mubr.f32.gmra.mrb[0].mxu0 %v2838
        %v2906 = vpop.f32.mrb[0].mxu0
        %v2907 = vadd.f32 0.0, %v2906
        %v2908 = vpop.f32.mrb[0].mxu0
        %2909 = vdwg.mxu0
        %2910 = vrot.lane.b32.xlu0 %v2743, 120
        %v2911 = vpop.permute.xlu0 %2910
        %2912 = vrot.lane.b32.xlu0 %v2743, 88
        %v2913 = vpop.permute.xlu0 %2912
        %v2914 = vsel %vm541, %v2911, 0
        %v2916 = vsel %vm541, %v2913, 0
        %2918 = vmatprep.subr.mxu0 0.0
        %2919 = vmatpush1.xpose.msra.mxu0 %v2916
        %2920 = vmatprep.subr.mxu0 0.0
        %2921 = vmatpush1.xpose.msra.mxu0 0.0
        %2922 = vmatprep.subr.mxu0 0.0
        %2923 = vmatpush1.xpose.msra.mxu0 0.0
        %2924 = vmatprep.subr.mxu0 0.0
        %2925 = vmatpush1.xpose.msra.mxu0 0.0
        %2926 = vmatprep.subr.mxu0 0.0
        %2927 = vmatpush1.xpose.msra.mxu0 0.0
        %2928 = vmatprep.subr.mxu0 0.0
        %2929 = vmatpush1.xpose.msra.mxu0 0.0
        %2930 = vmatprep.subr.mxu0 0.0
        %2931 = vmatpush1.xpose.msra.mxu0 0.0
        %2932 = vmatprep.subr.mxu0 0.0
        %2933 = vmatpush1.xpose.msra.mxu0 0.0
        %2934 = vmatprep.subr.mxu0 0.0
        %2935 = vmatpush1.xpose.msra.mxu0 0.0
        %2936 = vmatprep.subr.mxu0 0.0
        %2937 = vmatpush1.xpose.msra.mxu0 0.0
        %2938 = vmatprep.subr.mxu0 0.0
        %2939 = vmatpush1.xpose.msra.mxu0 0.0
        %2940 = vmatprep.subr.mxu0 0.0
        %2941 = vmatpush1.xpose.msra.mxu0 0.0
        %2942 = vmatprep.subr.mxu0 0.0
        %2943 = vmatpush1.xpose.msra.mxu0 0.0
        %2944 = vmatprep.subr.mxu0 0.0
        %2945 = vmatpush1.xpose.msra.mxu0 0.0
        %2946 = vmatprep.subr.mxu0 0.0
        %2947 = vmatpush1.xpose.msra.mxu0 0.0
        %2948 = vmatprep.subr.mxu0 0.0
        %2949 = vmatpush1.xpose.msra.mxu0 0.0
        %2950 = vmatprep.subr.mxu0 0.0
        %2951 = vmatpush1.xpose.msra.mxu0 0.0
        %2952 = vmatprep.subr.mxu0 0.0
        %2953 = vmatpush1.xpose.msra.mxu0 0.0
        %2954 = vmatprep.subr.mxu0 0.0
        %2955 = vmatpush1.xpose.msra.mxu0 0.0
        %2956 = vmatprep.subr.mxu0 0.0
        %2957 = vmatpush1.xpose.msra.mxu0 0.0
        %2958 = vmatprep.subr.mxu0 0.0
        %2959 = vmatpush1.xpose.msra.mxu0 0.0
        %2960 = vmatprep.subr.mxu0 0.0
        %2961 = vmatpush1.xpose.msra.mxu0 0.0
        %2962 = vmatprep.subr.mxu0 0.0
        %2963 = vmatpush1.xpose.msra.mxu0 0.0
        %2964 = vmatprep.subr.mxu0 0.0
        %2965 = vmatpush1.xpose.msra.mxu0 0.0
        %2966 = vmatprep.subr.mxu0 0.0
        %2967 = vmatpush1.xpose.msra.mxu0 0.0
        %2968 = vmatprep.subr.mxu0 0.0
        %2969 = vmatpush1.xpose.msra.mxu0 0.0
        %2970 = vmatprep.subr.mxu0 0.0
        %2971 = vmatpush1.xpose.msra.mxu0 0.0
        %2972 = vmatprep.subr.mxu0 0.0
        %2973 = vmatpush1.xpose.msra.mxu0 0.0
        %2974 = vmatprep.subr.mxu0 0.0
        %2975 = vmatpush1.xpose.msra.mxu0 0.0
        %2976 = vmatprep.subr.mxu0 0.0
        %2977 = vmatpush1.xpose.msra.mxu0 0.0
        %2978 = vmatprep.subr.mxu0 0.0
        %2979 = vmatpush1.xpose.msra.mxu0 0.0
        %2980 = vmatprep.subr.mxu0 0.0
        %2981 = vmatpush1.xpose.msra.mxu0 0.0
        %2982 = vmatprep.mubr.f32.mxu0 0.0
        %2983 = vmatmul.mubr.f32.gmra.mrb[0].mxu0 %v2914
        %v2984 = vpop.f32.mrb[0].mxu0
        %v2985 = vadd.f32 0.0, %v2984
        %v2986 = vpop.f32.mrb[0].mxu0
        %2987 = vdwg.mxu0
        %v2988 = vsel %vm541, %v2985, -inf
        %2989 = vmax.xlane.f32.xlu0 %v2988
        %v2990 = vpop.xlane.xlu0 %2989
        %v2991 = vsub.f32 %v2985, %v2990
        %v2992 = vmul.f32 %v2991, 1.442695
        %v2993 = vpow.pop %v2992
        %v2994 = vsel %vm541, %v2993, 0.0
        %2995 = vadd.xlane.f32.xlu0 %v2994
        %v2996 = vpop.xlane.xlu0 %2995
        %v2997 = vrcp.pop %v2996
        %v2998 = vmul.f32 %v2993, %v2997
        %2999 = vrot.lane.b32.xlu0 %v2743, 56
        %v3000 = vpop.permute.xlu0 %2999
        %v3003 = vsel %vm541, %v2998, 0
        %3005 = vmatprep.subr.mxu0 0.0
        %3006 = vmatpush1.msra.mxu0 %v3000
        %3007 = vmatprep.subr.mxu0 0.0
        %3008 = vmatpush1.msra.mxu0 0.0
        %3009 = vmatprep.subr.mxu0 0.0
        %3010 = vmatpush1.msra.mxu0 0.0
        %3011 = vmatprep.subr.mxu0 0.0
        %3012 = vmatpush1.msra.mxu0 0.0
        %3013 = vmatprep.subr.mxu0 0.0
        %3014 = vmatpush1.msra.mxu0 0.0
        %3015 = vmatprep.subr.mxu0 0.0
        %3016 = vmatpush1.msra.mxu0 0.0
        %3017 = vmatprep.subr.mxu0 0.0
        %3018 = vmatpush1.msra.mxu0 0.0
        %3019 = vmatprep.subr.mxu0 0.0
        %3020 = vmatpush1.msra.mxu0 0.0
        %3021 = vmatprep.subr.mxu0 0.0
        %3022 = vmatpush1.msra.mxu0 0.0
        %3023 = vmatprep.subr.mxu0 0.0
        %3024 = vmatpush1.msra.mxu0 0.0
        %3025 = vmatprep.subr.mxu0 0.0
        %3026 = vmatpush1.msra.mxu0 0.0
        %3027 = vmatprep.subr.mxu0 0.0
        %3028 = vmatpush1.msra.mxu0 0.0
        %3029 = vmatprep.subr.mxu0 0.0
        %3030 = vmatpush1.msra.mxu0 0.0
        %3031 = vmatprep.subr.mxu0 0.0
        %3032 = vmatpush1.msra.mxu0 0.0
        %3033 = vmatprep.subr.mxu0 0.0
        %3034 = vmatpush1.msra.mxu0 0.0
        %3035 = vmatprep.subr.mxu0 0.0
        %3036 = vmatpush1.msra.mxu0 0.0
        %3037 = vmatprep.subr.mxu0 0.0
        %3038 = vmatpush1.msra.mxu0 0.0
        %3039 = vmatprep.subr.mxu0 0.0
        %3040 = vmatpush1.msra.mxu0 0.0
        %3041 = vmatprep.subr.mxu0 0.0
        %3042 = vmatpush1.msra.mxu0 0.0
        %3043 = vmatprep.subr.mxu0 0.0
        %3044 = vmatpush1.msra.mxu0 0.0
        %3045 = vmatprep.subr.mxu0 0.0
        %3046 = vmatpush1.msra.mxu0 0.0
        %3047 = vmatprep.subr.mxu0 0.0
        %3048 = vmatpush1.msra.mxu0 0.0
        %3049 = vmatprep.subr.mxu0 0.0
        %3050 = vmatpush1.msra.mxu0 0.0
        %3051 = vmatprep.subr.mxu0 0.0
        %3052 = vmatpush1.msra.mxu0 0.0
        %3053 = vmatprep.subr.mxu0 0.0
        %3054 = vmatpush1.msra.mxu0 0.0
        %3055 = vmatprep.subr.mxu0 0.0
        %3056 = vmatpush1.msra.mxu0 0.0
        %3057 = vmatprep.subr.mxu0 0.0
        %3058 = vmatpush1.msra.mxu0 0.0
        %3059 = vmatprep.subr.mxu0 0.0
        %3060 = vmatpush1.msra.mxu0 0.0
        %3061 = vmatprep.subr.mxu0 0.0
        %3062 = vmatpush1.msra.mxu0 0.0
        %3063 = vmatprep.subr.mxu0 0.0
        %3064 = vmatpush1.msra.mxu0 0.0
        %3065 = vmatprep.subr.mxu0 0.0
        %3066 = vmatpush1.msra.mxu0 0.0
        %3067 = vmatprep.subr.mxu0 0.0
        %3068 = vmatpush1.msra.mxu0 0.0
        %3069 = vmatprep.mubr.f32.mxu0 0.0
        %3070 = vmatmul.mubr.f32.gmra.mrb[0].mxu0 %v3003
        %v3071 = vpop.f32.mrb[0].mxu0
        %v3072 = vadd.f32 0.0, %v3071
        %v3073 = vpop.f32.mrb[0].mxu0
        %3074 = vdwg.mxu0
        %3075 = vrot.lane.b32.xlu0 %v2743, 112
        %v3076 = vpop.permute.xlu0 %3075
        %3077 = vrot.lane.b32.xlu0 %v2743, 80
        %v3078 = vpop.permute.xlu0 %3077
        %v3079 = vsel %vm541, %v3076, 0
        %v3081 = vsel %vm541, %v3078, 0
        %3083 = vmatprep.subr.mxu0 0.0
        %3084 = vmatpush1.xpose.msra.mxu0 %v3081
        %3085 = vmatprep.subr.mxu0 0.0
        %3086 = vmatpush1.xpose.msra.mxu0 0.0
        %3087 = vmatprep.subr.mxu0 0.0
        %3088 = vmatpush1.xpose.msra.mxu0 0.0
        %3089 = vmatprep.subr.mxu0 0.0
        %3090 = vmatpush1.xpose.msra.mxu0 0.0
        %3091 = vmatprep.subr.mxu0 0.0
        %3092 = vmatpush1.xpose.msra.mxu0 0.0
        %3093 = vmatprep.subr.mxu0 0.0
        %3094 = vmatpush1.xpose.msra.mxu0 0.0
        %3095 = vmatprep.subr.mxu0 0.0
        %3096 = vmatpush1.xpose.msra.mxu0 0.0
        %3097 = vmatprep.subr.mxu0 0.0
        %3098 = vmatpush1.xpose.msra.mxu0 0.0
        %3099 = vmatprep.subr.mxu0 0.0
        %3100 = vmatpush1.xpose.msra.mxu0 0.0
        %3101 = vmatprep.subr.mxu0 0.0
        %3102 = vmatpush1.xpose.msra.mxu0 0.0
        %3103 = vmatprep.subr.mxu0 0.0
        %3104 = vmatpush1.xpose.msra.mxu0 0.0
        %3105 = vmatprep.subr.mxu0 0.0
        %3106 = vmatpush1.xpose.msra.mxu0 0.0
        %3107 = vmatprep.subr.mxu0 0.0
        %3108 = vmatpush1.xpose.msra.mxu0 0.0
        %3109 = vmatprep.subr.mxu0 0.0
        %3110 = vmatpush1.xpose.msra.mxu0 0.0
        %3111 = vmatprep.subr.mxu0 0.0
        %3112 = vmatpush1.xpose.msra.mxu0 0.0
        %3113 = vmatprep.subr.mxu0 0.0
        %3114 = vmatpush1.xpose.msra.mxu0 0.0
        %3115 = vmatprep.subr.mxu0 0.0
        %3116 = vmatpush1.xpose.msra.mxu0 0.0
        %3117 = vmatprep.subr.mxu0 0.0
        %3118 = vmatpush1.xpose.msra.mxu0 0.0
        %3119 = vmatprep.subr.mxu0 0.0
        %3120 = vmatpush1.xpose.msra.mxu0 0.0
        %3121 = vmatprep.subr.mxu0 0.0
        %3122 = vmatpush1.xpose.msra.mxu0 0.0
        %3123 = vmatprep.subr.mxu0 0.0
        %3124 = vmatpush1.xpose.msra.mxu0 0.0
        %3125 = vmatprep.subr.mxu0 0.0
        %3126 = vmatpush1.xpose.msra.mxu0 0.0
        %3127 = vmatprep.subr.mxu0 0.0
        %3128 = vmatpush1.xpose.msra.mxu0 0.0
        %3129 = vmatprep.subr.mxu0 0.0
        %3130 = vmatpush1.xpose.msra.mxu0 0.0
        %3131 = vmatprep.subr.mxu0 0.0
        %3132 = vmatpush1.xpose.msra.mxu0 0.0
        %3133 = vmatprep.subr.mxu0 0.0
        %3134 = vmatpush1.xpose.msra.mxu0 0.0
        %3135 = vmatprep.subr.mxu0 0.0
        %3136 = vmatpush1.xpose.msra.mxu0 0.0
        %3137 = vmatprep.subr.mxu0 0.0
        %3138 = vmatpush1.xpose.msra.mxu0 0.0
        %3139 = vmatprep.subr.mxu0 0.0
        %3140 = vmatpush1.xpose.msra.mxu0 0.0
        %3141 = vmatprep.subr.mxu0 0.0
        %3142 = vmatpush1.xpose.msra.mxu0 0.0
        %3143 = vmatprep.subr.mxu0 0.0
        %3144 = vmatpush1.xpose.msra.mxu0 0.0
        %3145 = vmatprep.subr.mxu0 0.0
        %3146 = vmatpush1.xpose.msra.mxu0 0.0
        %3147 = vmatprep.mubr.f32.mxu0 0.0
        %3148 = vmatmul.mubr.f32.gmra.mrb[0].mxu0 %v3079
        %v3149 = vpop.f32.mrb[0].mxu0
        %v3150 = vadd.f32 0.0, %v3149
        %v3151 = vpop.f32.mrb[0].mxu0
        %3152 = vdwg.mxu0
        %v3153 = vsel %vm541, %v3150, -inf
        %3154 = vmax.xlane.f32.xlu0 %v3153
        %v3155 = vpop.xlane.xlu0 %3154
        %v3156 = vsub.f32 %v3150, %v3155
        %v3157 = vmul.f32 %v3156, 1.442695
        %v3158 = vpow.pop %v3157
        %v3159 = vsel %vm541, %v3158, 0.0
        %3160 = vadd.xlane.f32.xlu0 %v3159
        %v3161 = vpop.xlane.xlu0 %3160
        %v3162 = vrcp.pop %v3161
        %v3163 = vmul.f32 %v3158, %v3162
        %3164 = vrot.lane.b32.xlu0 %v2743, 48
        %v3165 = vpop.permute.xlu0 %3164
        %v3168 = vsel %vm541, %v3163, 0
        %3170 = vmatprep.subr.mxu0 0.0
        %3171 = vmatpush1.msra.mxu0 %v3165
        %3172 = vmatprep.subr.mxu0 0.0
        %3173 = vmatpush1.msra.mxu0 0.0
        %3174 = vmatprep.subr.mxu0 0.0
        %3175 = vmatpush1.msra.mxu0 0.0
        %3176 = vmatprep.subr.mxu0 0.0
        %3177 = vmatpush1.msra.mxu0 0.0
        %3178 = vmatprep.subr.mxu0 0.0
        %3179 = vmatpush1.msra.mxu0 0.0
        %3180 = vmatprep.subr.mxu0 0.0
        %3181 = vmatpush1.msra.mxu0 0.0
        %3182 = vmatprep.subr.mxu0 0.0
        %3183 = vmatpush1.msra.mxu0 0.0
        %3184 = vmatprep.subr.mxu0 0.0
        %3185 = vmatpush1.msra.mxu0 0.0
        %3186 = vmatprep.subr.mxu0 0.0
        %3187 = vmatpush1.msra.mxu0 0.0
        %3188 = vmatprep.subr.mxu0 0.0
        %3189 = vmatpush1.msra.mxu0 0.0
        %3190 = vmatprep.subr.mxu0 0.0
        %3191 = vmatpush1.msra.mxu0 0.0
        %3192 = vmatprep.subr.mxu0 0.0
        %3193 = vmatpush1.msra.mxu0 0.0
        %3194 = vmatprep.subr.mxu0 0.0
        %3195 = vmatpush1.msra.mxu0 0.0
        %3196 = vmatprep.subr.mxu0 0.0
        %3197 = vmatpush1.msra.mxu0 0.0
        %3198 = vmatprep.subr.mxu0 0.0
        %3199 = vmatpush1.msra.mxu0 0.0
        %3200 = vmatprep.subr.mxu0 0.0
        %3201 = vmatpush1.msra.mxu0 0.0
        %3202 = vmatprep.subr.mxu0 0.0
        %3203 = vmatpush1.msra.mxu0 0.0
        %3204 = vmatprep.subr.mxu0 0.0
        %3205 = vmatpush1.msra.mxu0 0.0
        %3206 = vmatprep.subr.mxu0 0.0
        %3207 = vmatpush1.msra.mxu0 0.0
        %3208 = vmatprep.subr.mxu0 0.0
        %3209 = vmatpush1.msra.mxu0 0.0
        %3210 = vmatprep.subr.mxu0 0.0
        %3211 = vmatpush1.msra.mxu0 0.0
        %3212 = vmatprep.subr.mxu0 0.0
        %3213 = vmatpush1.msra.mxu0 0.0
        %3214 = vmatprep.subr.mxu0 0.0
        %3215 = vmatpush1.msra.mxu0 0.0
        %3216 = vmatprep.subr.mxu0 0.0
        %3217 = vmatpush1.msra.mxu0 0.0
        %3218 = vmatprep.subr.mxu0 0.0
        %3219 = vmatpush1.msra.mxu0 0.0
        %3220 = vmatprep.subr.mxu0 0.0
        %3221 = vmatpush1.msra.mxu0 0.0
        %3222 = vmatprep.subr.mxu0 0.0
        %3223 = vmatpush1.msra.mxu0 0.0
        %3224 = vmatprep.subr.mxu0 0.0
        %3225 = vmatpush1.msra.mxu0 0.0
        %3226 = vmatprep.subr.mxu0 0.0
        %3227 = vmatpush1.msra.mxu0 0.0
        %3228 = vmatprep.subr.mxu0 0.0
        %3229 = vmatpush1.msra.mxu0 0.0
        %3230 = vmatprep.subr.mxu0 0.0
        %3231 = vmatpush1.msra.mxu0 0.0
        %3232 = vmatprep.subr.mxu0 0.0
        %3233 = vmatpush1.msra.mxu0 0.0
        %3234 = vmatprep.mubr.f32.mxu0 0.0
        %3235 = vmatmul.mubr.f32.gmra.mrb[0].mxu0 %v3168
        %v3236 = vpop.f32.mrb[0].mxu0
        %v3237 = vadd.f32 0.0, %v3236
        %v3238 = vpop.f32.mrb[0].mxu0
        %3239 = vdwg.mxu0
        %3240 = vrot.lane.b32.xlu0 %v2743, 104
        %v3241 = vpop.permute.xlu0 %3240
        %3242 = vrot.lane.b32.xlu0 %v2743, 72
        %v3243 = vpop.permute.xlu0 %3242
        %v3244 = vsel %vm541, %v3241, 0
        %v3246 = vsel %vm541, %v3243, 0
        %3248 = vmatprep.subr.mxu0 0.0
        %3249 = vmatpush1.xpose.msra.mxu0 %v3246
        %3250 = vmatprep.subr.mxu0 0.0
        %3251 = vmatpush1.xpose.msra.mxu0 0.0
        %3252 = vmatprep.subr.mxu0 0.0
        %3253 = vmatpush1.xpose.msra.mxu0 0.0
        %3254 = vmatprep.subr.mxu0 0.0
        %3255 = vmatpush1.xpose.msra.mxu0 0.0
        %3256 = vmatprep.subr.mxu0 0.0
        %3257 = vmatpush1.xpose.msra.mxu0 0.0
        %3258 = vmatprep.subr.mxu0 0.0
        %3259 = vmatpush1.xpose.msra.mxu0 0.0
        %3260 = vmatprep.subr.mxu0 0.0
        %3261 = vmatpush1.xpose.msra.mxu0 0.0
        %3262 = vmatprep.subr.mxu0 0.0
        %3263 = vmatpush1.xpose.msra.mxu0 0.0
        %3264 = vmatprep.subr.mxu0 0.0
        %3265 = vmatpush1.xpose.msra.mxu0 0.0
        %3266 = vmatprep.subr.mxu0 0.0
        %3267 = vmatpush1.xpose.msra.mxu0 0.0
        %3268 = vmatprep.subr.mxu0 0.0
        %3269 = vmatpush1.xpose.msra.mxu0 0.0
        %3270 = vmatprep.subr.mxu0 0.0
        %3271 = vmatpush1.xpose.msra.mxu0 0.0
        %3272 = vmatprep.subr.mxu0 0.0
        %3273 = vmatpush1.xpose.msra.mxu0 0.0
        %3274 = vmatprep.subr.mxu0 0.0
        %3275 = vmatpush1.xpose.msra.mxu0 0.0
        %3276 = vmatprep.subr.mxu0 0.0
        %3277 = vmatpush1.xpose.msra.mxu0 0.0
        %3278 = vmatprep.subr.mxu0 0.0
        %3279 = vmatpush1.xpose.msra.mxu0 0.0
        %3280 = vmatprep.subr.mxu0 0.0
        %3281 = vmatpush1.xpose.msra.mxu0 0.0
        %3282 = vmatprep.subr.mxu0 0.0
        %3283 = vmatpush1.xpose.msra.mxu0 0.0
        %3284 = vmatprep.subr.mxu0 0.0
        %3285 = vmatpush1.xpose.msra.mxu0 0.0
        %3286 = vmatprep.subr.mxu0 0.0
        %3287 = vmatpush1.xpose.msra.mxu0 0.0
        %3288 = vmatprep.subr.mxu0 0.0
        %3289 = vmatpush1.xpose.msra.mxu0 0.0
        %3290 = vmatprep.subr.mxu0 0.0
        %3291 = vmatpush1.xpose.msra.mxu0 0.0
        %3292 = vmatprep.subr.mxu0 0.0
        %3293 = vmatpush1.xpose.msra.mxu0 0.0
        %3294 = vmatprep.subr.mxu0 0.0
        %3295 = vmatpush1.xpose.msra.mxu0 0.0
        %3296 = vmatprep.subr.mxu0 0.0
        %3297 = vmatpush1.xpose.msra.mxu0 0.0
        %3298 = vmatprep.subr.mxu0 0.0
        %3299 = vmatpush1.xpose.msra.mxu0 0.0
        %3300 = vmatprep.subr.mxu0 0.0
        %3301 = vmatpush1.xpose.msra.mxu0 0.0
        %3302 = vmatprep.subr.mxu0 0.0
        %3303 = vmatpush1.xpose.msra.mxu0 0.0
        %3304 = vmatprep.subr.mxu0 0.0
        %3305 = vmatpush1.xpose.msra.mxu0 0.0
        %3306 = vmatprep.subr.mxu0 0.0
        %3307 = vmatpush1.xpose.msra.mxu0 0.0
        %3308 = vmatprep.subr.mxu0 0.0
        %3309 = vmatpush1.xpose.msra.mxu0 0.0
        %3310 = vmatprep.subr.mxu0 0.0
        %3311 = vmatpush1.xpose.msra.mxu0 0.0
        %3312 = vmatprep.mubr.f32.mxu0 0.0
        %3313 = vmatmul.mubr.f32.gmra.mrb[0].mxu0 %v3244
        %v3314 = vpop.f32.mrb[0].mxu0
        %v3315 = vadd.f32 0.0, %v3314
        %v3316 = vpop.f32.mrb[0].mxu0
        %3317 = vdwg.mxu0
        %v3318 = vsel %vm541, %v3315, -inf
        %3319 = vmax.xlane.f32.xlu0 %v3318
        %v3320 = vpop.xlane.xlu0 %3319
        %v3321 = vsub.f32 %v3315, %v3320
        %v3322 = vmul.f32 %v3321, 1.442695
        %v3323 = vpow.pop %v3322
        %v3324 = vsel %vm541, %v3323, 0.0
        %3325 = vadd.xlane.f32.xlu0 %v3324
        %v3326 = vpop.xlane.xlu0 %3325
        %v3327 = vrcp.pop %v3326
        %v3328 = vmul.f32 %v3323, %v3327
        %3329 = vrot.lane.b32.xlu0 %v2743, 40
        %v3330 = vpop.permute.xlu0 %3329
        %v3333 = vsel %vm541, %v3328, 0
        %3335 = vmatprep.subr.mxu0 0.0
        %3336 = vmatpush1.msra.mxu0 %v3330
        %3337 = vmatprep.subr.mxu0 0.0
        %3338 = vmatpush1.msra.mxu0 0.0
        %3339 = vmatprep.subr.mxu0 0.0
        %3340 = vmatpush1.msra.mxu0 0.0
        %3341 = vmatprep.subr.mxu0 0.0
        %3342 = vmatpush1.msra.mxu0 0.0
        %3343 = vmatprep.subr.mxu0 0.0
        %3344 = vmatpush1.msra.mxu0 0.0
        %3345 = vmatprep.subr.mxu0 0.0
        %3346 = vmatpush1.msra.mxu0 0.0
        %3347 = vmatprep.subr.mxu0 0.0
        %3348 = vmatpush1.msra.mxu0 0.0
        %3349 = vmatprep.subr.mxu0 0.0
        %3350 = vmatpush1.msra.mxu0 0.0
        %3351 = vmatprep.subr.mxu0 0.0
        %3352 = vmatpush1.msra.mxu0 0.0
        %3353 = vmatprep.subr.mxu0 0.0
        %3354 = vmatpush1.msra.mxu0 0.0
        %3355 = vmatprep.subr.mxu0 0.0
        %3356 = vmatpush1.msra.mxu0 0.0
        %3357 = vmatprep.subr.mxu0 0.0
        %3358 = vmatpush1.msra.mxu0 0.0
        %3359 = vmatprep.subr.mxu0 0.0
        %3360 = vmatpush1.msra.mxu0 0.0
        %3361 = vmatprep.subr.mxu0 0.0
        %3362 = vmatpush1.msra.mxu0 0.0
        %3363 = vmatprep.subr.mxu0 0.0
        %3364 = vmatpush1.msra.mxu0 0.0
        %3365 = vmatprep.subr.mxu0 0.0
        %3366 = vmatpush1.msra.mxu0 0.0
        %3367 = vmatprep.subr.mxu0 0.0
        %3368 = vmatpush1.msra.mxu0 0.0
        %3369 = vmatprep.subr.mxu0 0.0
        %3370 = vmatpush1.msra.mxu0 0.0
        %3371 = vmatprep.subr.mxu0 0.0
        %3372 = vmatpush1.msra.mxu0 0.0
        %3373 = vmatprep.subr.mxu0 0.0
        %3374 = vmatpush1.msra.mxu0 0.0
        %3375 = vmatprep.subr.mxu0 0.0
        %3376 = vmatpush1.msra.mxu0 0.0
        %3377 = vmatprep.subr.mxu0 0.0
        %3378 = vmatpush1.msra.mxu0 0.0
        %3379 = vmatprep.subr.mxu0 0.0
        %3380 = vmatpush1.msra.mxu0 0.0
        %3381 = vmatprep.subr.mxu0 0.0
        %3382 = vmatpush1.msra.mxu0 0.0
        %3383 = vmatprep.subr.mxu0 0.0
        %3384 = vmatpush1.msra.mxu0 0.0
        %3385 = vmatprep.subr.mxu0 0.0
        %3386 = vmatpush1.msra.mxu0 0.0
        %3387 = vmatprep.subr.mxu0 0.0
        %3388 = vmatpush1.msra.mxu0 0.0
        %3389 = vmatprep.subr.mxu0 0.0
        %3390 = vmatpush1.msra.mxu0 0.0
        %3391 = vmatprep.subr.mxu0 0.0
        %3392 = vmatpush1.msra.mxu0 0.0
        %3393 = vmatprep.subr.mxu0 0.0
        %3394 = vmatpush1.msra.mxu0 0.0
        %3395 = vmatprep.subr.mxu0 0.0
        %3396 = vmatpush1.msra.mxu0 0.0
        %3397 = vmatprep.subr.mxu0 0.0
        %3398 = vmatpush1.msra.mxu0 0.0
        %3399 = vmatprep.mubr.f32.mxu0 0.0
        %3400 = vmatmul.mubr.f32.gmra.mrb[0].mxu0 %v3333
        %v3401 = vpop.f32.mrb[0].mxu0
        %v3402 = vadd.f32 0.0, %v3401
        %v3403 = vpop.f32.mrb[0].mxu0
        %3404 = vdwg.mxu0
        %3406 = vrot.lane.b32.xlu0 %v3072, 8
        %v3407 = vpop.permute.xlu0 %3406
        %3410 = vrot.lane.b32.xlu0 %v3237, 16
        %v3411 = vpop.permute.xlu0 %3410
        %3414 = vrot.lane.b32.xlu0 %v3402, 24
        %v3415 = vpop.permute.xlu0 %3414
        %v3417 = vsel %vm541, %v2907, %v3407
        %v3418 = vsel %vm1211, %v3417, %v3411
        %v3419 = vsel %vm1213, %v3418, %v3415
        %s3420 = scalar_lea.vmem %s4, 64
        %v3421 = vld [vmem:[%s3420] sm:$0xff]
        %v3422 = vld [vmem:[%s3420 + $0x8] sm:$0xff]
        %v3423 = vld [vmem:[%s3420 + $0x10] sm:$0xff]
        %v3424 = vld [vmem:[%s3420 + $0x18] sm:$0xff]
        %v3426 = vsel %vm432, %v3419, 0
        %3428 = vmatprep.subr.mxu0 0.0
        %3429 = vmatpush1.msra.mxu0 %v3421
        %3430 = vmatprep.subr.mxu0 0.0
        %3431 = vmatpush1.msra.mxu0 %v3422
        %3432 = vmatprep.subr.mxu0 0.0
        %3433 = vmatpush1.msra.mxu0 %v3423
        %3434 = vmatprep.subr.mxu0 0.0
        %3435 = vmatpush1.msra.mxu0 %v3424
        %3436 = vmatprep.subr.mxu0 0.0
        %3437 = vmatpush1.msra.mxu0 0.0
        %3438 = vmatprep.subr.mxu0 0.0
        %3439 = vmatpush1.msra.mxu0 0.0
        %3440 = vmatprep.subr.mxu0 0.0
        %3441 = vmatpush1.msra.mxu0 0.0
        %3442 = vmatprep.subr.mxu0 0.0
        %3443 = vmatpush1.msra.mxu0 0.0
        %3444 = vmatprep.subr.mxu0 0.0
        %3445 = vmatpush1.msra.mxu0 0.0
        %3446 = vmatprep.subr.mxu0 0.0
        %3447 = vmatpush1.msra.mxu0 0.0
        %3448 = vmatprep.subr.mxu0 0.0
        %3449 = vmatpush1.msra.mxu0 0.0
        %3450 = vmatprep.subr.mxu0 0.0
        %3451 = vmatpush1.msra.mxu0 0.0
        %3452 = vmatprep.subr.mxu0 0.0
        %3453 = vmatpush1.msra.mxu0 0.0
        %3454 = vmatprep.subr.mxu0 0.0
        %3455 = vmatpush1.msra.mxu0 0.0
        %3456 = vmatprep.subr.mxu0 0.0
        %3457 = vmatpush1.msra.mxu0 0.0
        %3458 = vmatprep.subr.mxu0 0.0
        %3459 = vmatpush1.msra.mxu0 0.0
        %3460 = vmatprep.subr.mxu0 0.0
        %3461 = vmatpush1.msra.mxu0 0.0
        %3462 = vmatprep.subr.mxu0 0.0
        %3463 = vmatpush1.msra.mxu0 0.0
        %3464 = vmatprep.subr.mxu0 0.0
        %3465 = vmatpush1.msra.mxu0 0.0
        %3466 = vmatprep.subr.mxu0 0.0
        %3467 = vmatpush1.msra.mxu0 0.0
        %3468 = vmatprep.subr.mxu0 0.0
        %3469 = vmatpush1.msra.mxu0 0.0
        %3470 = vmatprep.subr.mxu0 0.0
        %3471 = vmatpush1.msra.mxu0 0.0
        %3472 = vmatprep.subr.mxu0 0.0
        %3473 = vmatpush1.msra.mxu0 0.0
        %3474 = vmatprep.subr.mxu0 0.0
        %3475 = vmatpush1.msra.mxu0 0.0
        %3476 = vmatprep.subr.mxu0 0.0
        %3477 = vmatpush1.msra.mxu0 0.0
        %3478 = vmatprep.subr.mxu0 0.0
        %3479 = vmatpush1.msra.mxu0 0.0
        %3480 = vmatprep.subr.mxu0 0.0
        %3481 = vmatpush1.msra.mxu0 0.0
        %3482 = vmatprep.subr.mxu0 0.0
        %3483 = vmatpush1.msra.mxu0 0.0
        %3484 = vmatprep.subr.mxu0 0.0
        %3485 = vmatpush1.msra.mxu0 0.0
        %3486 = vmatprep.subr.mxu0 0.0
        %3487 = vmatpush1.msra.mxu0 0.0
        %3488 = vmatprep.subr.mxu0 0.0
        %3489 = vmatpush1.msra.mxu0 0.0
        %3490 = vmatprep.subr.mxu0 0.0
        %3491 = vmatpush1.msra.mxu0 0.0
        %3492 = vmatprep.mubr.f32.mxu0 0.0
        %3493 = vmatmul.mubr.f32.gmra.mrb[0].mxu0 %v3426
        %v3494 = vpop.f32.mrb[0].mxu0
        %v3495 = vadd.f32 0.0, %v3494
        %v3496 = vpop.f32.mrb[0].mxu0
        %3497 = vdwg.mxu0
        %v3498 = vadd.f32 %v2636, %v3495
        %s3499 = scalar_lea.vmem %s5, 2
        %v3500 = vld [vmem:[%s3499] sm:$0x1]
        %v3502 = vlaneseq
        %v3503 = vshrl.u32 %v3502, 7
        %v3504 = vsub.s32 0, %v3503
        %v3505 = vrot.slane %v3500, %v3504
        %v3507 = vadd.f32 %v3498, %v3505
        %s3508 = scalar_lea.vmem %s6, 2
        %v3509 = vld [vmem:[%s3508] sm:$0x1]
        %s3510 = scalar_lea.vmem %s7, 2
        %v3511 = vld [vmem:[%s3510] sm:$0x1]
        %v3512 = vsel %vm432, %v3507, 0.0
        %3513 = vadd.xlane.f32.xlu0 %v3512
        %v3514 = vpop.xlane.xlu0 %3513
        %v3515 = vmul.f32 %v3514, %v436
        %v3516 = vsub.f32 %v3507, %v3515
        %v3517 = vmul.f32 %v3516, %v3516
        %v3518 = vsel %vm432, %v3517, 0.0
        %3519 = vadd.xlane.f32.xlu0 %v3518
        %v3520 = vpop.xlane.xlu0 %3519
        %v3521 = vmul.f32 %v3520, %v436
        %v3522 = vadd.f32 %v3521, 1e-05
        %v3523 = vrsqrt.pop %v3522
        %v3524 = vmul.f32 %v3516, %v3523
        %v3526 = vlaneseq
        %v3527 = vshrl.u32 %v3526, 7
        %v3528 = vsub.s32 0, %v3527
        %v3529 = vrot.slane %v3509, %v3528
        %v3531 = vmul.f32 %v3524, %v3529
        %v3533 = vlaneseq
        %v3534 = vshrl.u32 %v3533, 7
        %v3535 = vsub.s32 0, %v3534
        %v3536 = vrot.slane %v3511, %v3535
        %v3538 = vadd.f32 %v3531, %v3536
        %s3539 = scalar_lea.vmem %s8, 64
        %v3540 = vld [vmem:[%s3539] sm:$0xff]
        %v3541 = vld [vmem:[%s3539 + $0x8] sm:$0xff]
        %v3542 = vld [vmem:[%s3539 + $0x10] sm:$0xff]
        %v3543 = vld [vmem:[%s3539 + $0x18] sm:$0xff]
        %s3544 = scalar_lea.vmem %s9, 2
        %v3545 = vld [vmem:[%s3544] sm:$0x1]
        %v3547 = vlaneseq
        %v3548 = vshrl.u32 %v3547, 7
        %v3549 = vsub.s32 0, %v3548
        %v3550 = vrot.slane %v3545, %v3549
        %v3553 = vsel %vm432, %v3538, 0
        %3555 = vmatprep.subr.mxu0 0.0
        %3556 = vmatpush1.msra.mxu0 %v3540
        %3557 = vmatprep.subr.mxu0 0.0
        %3558 = vmatpush1.msra.mxu0 %v3541
        %3559 = vmatprep.subr.mxu0 0.0
        %3560 = vmatpush1.msra.mxu0 %v3542
        %3561 = vmatprep.subr.mxu0 0.0
        %3562 = vmatpush1.msra.mxu0 %v3543
        %3563 = vmatprep.subr.mxu0 0.0
        %3564 = vmatpush1.msra.mxu0 0.0
        %3565 = vmatprep.subr.mxu0 0.0
        %3566 = vmatpush1.msra.mxu0 0.0
        %3567 = vmatprep.subr.mxu0 0.0
        %3568 = vmatpush1.msra.mxu0 0.0
        %3569 = vmatprep.subr.mxu0 0.0
        %3570 = vmatpush1.msra.mxu0 0.0
        %3571 = vmatprep.subr.mxu0 0.0
        %3572 = vmatpush1.msra.mxu0 0.0
        %3573 = vmatprep.subr.mxu0 0.0
        %3574 = vmatpush1.msra.mxu0 0.0
        %3575 = vmatprep.subr.mxu0 0.0
        %3576 = vmatpush1.msra.mxu0 0.0
        %3577 = vmatprep.subr.mxu0 0.0
        %3578 = vmatpush1.msra.mxu0 0.0
        %3579 = vmatprep.subr.mxu0 0.0
        %3580 = vmatpush1.msra.mxu0 0.0
        %3581 = vmatprep.subr.mxu0 0.0
        %3582 = vmatpush1.msra.mxu0 0.0
        %3583 = vmatprep.subr.mxu0 0.0
        %3584 = vmatpush1.msra.mxu0 0.0
        %3585 = vmatprep.subr.mxu0 0.0
        %3586 = vmatpush1.msra.mxu0 0.0
        %3587 = vmatprep.subr.mxu0 0.0
        %3588 = vmatpush1.msra.mxu0 0.0
        %3589 = vmatprep.subr.mxu0 0.0
        %3590 = vmatpush1.msra.mxu0 0.0
        %3591 = vmatprep.subr.mxu0 0.0
        %3592 = vmatpush1.msra.mxu0 0.0
        %3593 = vmatprep.subr.mxu0 0.0
        %3594 = vmatpush1.msra.mxu0 0.0
        %3595 = vmatprep.subr.mxu0 0.0
        %3596 = vmatpush1.msra.mxu0 0.0
        %3597 = vmatprep.subr.mxu0 0.0
        %3598 = vmatpush1.msra.mxu0 0.0
        %3599 = vmatprep.subr.mxu0 0.0
        %3600 = vmatpush1.msra.mxu0 0.0
        %3601 = vmatprep.subr.mxu0 0.0
        %3602 = vmatpush1.msra.mxu0 0.0
        %3603 = vmatprep.subr.mxu0 0.0
        %3604 = vmatpush1.msra.mxu0 0.0
        %3605 = vmatprep.subr.mxu0 0.0
        %3606 = vmatpush1.msra.mxu0 0.0
        %3607 = vmatprep.subr.mxu0 0.0
        %3608 = vmatpush1.msra.mxu0 0.0
        %3609 = vmatprep.subr.mxu0 0.0
        %3610 = vmatpush1.msra.mxu0 0.0
        %3611 = vmatprep.subr.mxu0 0.0
        %3612 = vmatpush1.msra.mxu0 0.0
        %3613 = vmatprep.subr.mxu0 0.0
        %3614 = vmatpush1.msra.mxu0 0.0
        %3615 = vmatprep.subr.mxu0 0.0
        %3616 = vmatpush1.msra.mxu0 0.0
        %3617 = vmatprep.subr.mxu0 0.0
        %3618 = vmatpush1.msra.mxu0 0.0
        %3619 = vmatprep.mubr.f32.mxu0 0.0
        %3620 = vmatmul.mubr.f32.gmra.mrb[0].mxu0 %v3553
        %v3621 = vpop.f32.mrb[0].mxu0
        %v3622 = vadd.f32 %v3550, %v3621
        %v3623 = vpop.f32.mrb[0].mxu0
        %3624 = vdwg.mxu0
        %v3625 = vmul.f32 %v3622, 0.5
        %v3626 = vmul.f32 %v3622, 0.70710677
        %v3627 = vand.u32 2147483647, %v3626
        %v3628 = vmul.f32 %v3627, 0.3275911
        %v3629 = vadd.f32 %v3628, 1.0
        %v3630 = vrcp.pop %v3629
        %v3631 = vmul.f32 1.0, %v3630
        %v3632 = vmul.f32 %v3631, 1.0614054
        %v3633 = vadd.f32 %v3632, -1.4531521
        %v3634 = vmul.f32 %v3633, %v3631
        %v3635 = vadd.f32 %v3634, 1.4214138
        %v3636 = vmul.f32 %v3635, %v3631
        %v3637 = vadd.f32 %v3636, -0.28449672
        %v3638 = vmul.f32 %v3637, %v3631
        %v3639 = vadd.f32 %v3638, 0.2548296
        %v3640 = vmul.f32 %v3639, %v3631
        %v3641 = vsub.f32 0.0, %v3627
        %v3642 = vmul.f32 %v3641, %v3627
        %v3643 = vmul.f32 %v3642, 1.442695
        %v3644 = vpow.pop %v3643
        %v3645 = vmul.f32 %v3640, %v3644
        %v3646 = vsub.f32 1.0, %v3645
        %vm3647 = vcmp.lt.f32.partialorder %v3626, 0.0
        %v3648 = vsub.f32 0.0, %v3646
        %v3649 = vsel %vm3647, %v3648, %v3646
        %v3650 = vadd.f32 %v3649, 1.0
        %v3651 = vmul.f32 %v3625, %v3650
        %s3652 = scalar_lea.vmem %s10, 128
        %v3653 = vld [vmem:[%s3652] sm:$0xff]
        %v3654 = vld [vmem:[%s3652 + $0x8] sm:$0xff]
        %v3655 = vld [vmem:[%s3652 + $0x10] sm:$0xff]
        %v3656 = vld [vmem:[%s3652 + $0x18] sm:$0xff]
        %v3657 = vld [vmem:[%s3652 + $0x20] sm:$0xff]
        %v3658 = vld [vmem:[%s3652 + $0x28] sm:$0xff]
        %v3659 = vld [vmem:[%s3652 + $0x30] sm:$0xff]
        %v3660 = vld [vmem:[%s3652 + $0x38] sm:$0xff]
        %s3661 = scalar_lea.vmem %s11, 2
        %v3662 = vld [vmem:[%s3661] sm:$0x1]
        %v3664 = vlaneseq
        %v3665 = vshrl.u32 %v3664, 7
        %v3666 = vsub.s32 0, %v3665
        %v3667 = vrot.slane %v3662, %v3666
        %v3670 = vsel %vm1456, %v3651, 0
        %3672 = vmatprep.subr.mxu0 0.0
        %3673 = vmatpush1.msra.mxu0 %v3653
        %3674 = vmatprep.subr.mxu0 0.0
        %3675 = vmatpush1.msra.mxu0 %v3654
        %3676 = vmatprep.subr.mxu0 0.0
        %3677 = vmatpush1.msra.mxu0 %v3655
        %3678 = vmatprep.subr.mxu0 0.0
        %3679 = vmatpush1.msra.mxu0 %v3656
        %3680 = vmatprep.subr.mxu0 0.0
        %3681 = vmatpush1.msra.mxu0 %v3657
        %3682 = vmatprep.subr.mxu0 0.0
        %3683 = vmatpush1.msra.mxu0 %v3658
        %3684 = vmatprep.subr.mxu0 0.0
        %3685 = vmatpush1.msra.mxu0 %v3659
        %3686 = vmatprep.subr.mxu0 0.0
        %3687 = vmatpush1.msra.mxu0 %v3660
        %3688 = vmatprep.subr.mxu0 0.0
        %3689 = vmatpush1.msra.mxu0 0.0
        %3690 = vmatprep.subr.mxu0 0.0
        %3691 = vmatpush1.msra.mxu0 0.0
        %3692 = vmatprep.subr.mxu0 0.0
        %3693 = vmatpush1.msra.mxu0 0.0
        %3694 = vmatprep.subr.mxu0 0.0
        %3695 = vmatpush1.msra.mxu0 0.0
        %3696 = vmatprep.subr.mxu0 0.0
        %3697 = vmatpush1.msra.mxu0 0.0
        %3698 = vmatprep.subr.mxu0 0.0
        %3699 = vmatpush1.msra.mxu0 0.0
        %3700 = vmatprep.subr.mxu0 0.0
        %3701 = vmatpush1.msra.mxu0 0.0
        %3702 = vmatprep.subr.mxu0 0.0
        %3703 = vmatpush1.msra.mxu0 0.0
        %3704 = vmatprep.subr.mxu0 0.0
        %3705 = vmatpush1.msra.mxu0 0.0
        %3706 = vmatprep.subr.mxu0 0.0
        %3707 = vmatpush1.msra.mxu0 0.0
        %3708 = vmatprep.subr.mxu0 0.0
        %3709 = vmatpush1.msra.mxu0 0.0
        %3710 = vmatprep.subr.mxu0 0.0
        %3711 = vmatpush1.msra.mxu0 0.0
        %3712 = vmatprep.subr.mxu0 0.0
        %3713 = vmatpush1.msra.mxu0 0.0
        %3714 = vmatprep.subr.mxu0 0.0
        %3715 = vmatpush1.msra.mxu0 0.0
        %3716 = vmatprep.subr.mxu0 0.0
        %3717 = vmatpush1.msra.mxu0 0.0
        %3718 = vmatprep.subr.mxu0 0.0
        %3719 = vmatpush1.msra.mxu0 0.0
        %3720 = vmatprep.subr.mxu0 0.0
        %3721 = vmatpush1.msra.mxu0 0.0
        %3722 = vmatprep.subr.mxu0 0.0
        %3723 = vmatpush1.msra.mxu0 0.0
        %3724 = vmatprep.subr.mxu0 0.0
        %3725 = vmatpush1.msra.mxu0 0.0
        %3726 = vmatprep.subr.mxu0 0.0
        %3727 = vmatpush1.msra.mxu0 0.0
        %3728 = vmatprep.subr.mxu0 0.0
        %3729 = vmatpush1.msra.mxu0 0.0
        %3730 = vmatprep.subr.mxu0 0.0
        %3731 = vmatpush1.msra.mxu0 0.0
        %3732 = vmatprep.subr.mxu0 0.0
        %3733 = vmatpush1.msra.mxu0 0.0
        %3734 = vmatprep.subr.mxu0 0.0
        %3735 = vmatpush1.msra.mxu0 0.0
        %3736 = vmatprep.mubr.f32.mxu0 0.0
        %3737 = vmatmul.mubr.f32.gmra.mrb[0].mxu0 %v3670
        %v3738 = vpop.f32.mrb[0].mxu0
        %v3739 = vadd.f32 %v3667, %v3738
        %v3740 = vpop.f32.mrb[0].mxu0
        %3741 = vdwg.mxu0
        %v3742 = vadd.f32 %v3507, %v3739
        %3743 = vst.msk [vmem:[%s428] sm:$0xff] %vm432, %v3742
        %s3744 = sand.u32 %s294, 1
        %s3745 = scalar_lea.sflag [#allocation4], %s3744
        %s3746 = sand.u32 %s294, 1
        %s3747 = smul.addr %s3746, 8
        %s3748 = scalar_lea.vmem [#allocation5], %s3747
        // Predicated region
        $region73: #{tpu_custom_call.1} parent=67 // pred_check
          %p3749 = pneg %p304
        $region74: #{tpu_custom_call.1} parent=67 // pred_check_branch
          %3751 = sbr.rel (%p3749) target = $region76
        $region75: #{tpu_custom_call.1} parent=67 // pred_region
          %s3753 = ssub.s32 128, 128
          %3754 = vsyncadd %s3745, %s3753
          %s3755 = smul.addr %s29, 128
          %s3756 = scalar_lea.hbm %s12, %s3755
          %s3758 = sshll.u32 %s3748, 4
          %s3759 = int_to_ptr.vmem [resolvable:$true] %s3758
          %3761 = dma.vmem_to_hbm [thread:$0]  %s3759, 128, %s3756, %s3745
        $region76: #{tpu_custom_call.1} parent=67 // pred_fallthru
          _
      $region68: #{tpu_custom_call.1} parent=5 // pred_fallthru
        _
      %p3762 = scmp.le.s32.totalorder 2, %s24
      // Predicated region
      $region77: #{tpu_custom_call.1} parent=5 // pred_check
        %p3763 = pneg %p3762
      $region78: #{tpu_custom_call.1} parent=5 // pred_check_branch
        %3765 = sbr.rel (%p3763) target = $region80
      $region79: #{tpu_custom_call.1} parent=5 // pred_region
        %s3766 = ssub.s32 %s24, 2
        // Predicated region
        $region81: #{tpu_custom_call.1} parent=79 // pred_check
          %p3767 = pneg %p310
        $region82: #{tpu_custom_call.1} parent=79 // pred_check_branch
          %3769 = sbr.rel (%p3767) target = $region84
        $region83: #{tpu_custom_call.1} parent=79 // pred_region
          %s3770 = sand.u32 %s295, 1
          %s3771 = scalar_lea.sflag [#allocation4], %s3770
          %s3772 = sand.u32 %s295, 1
          %s3773 = smul.addr %s3772, 8
          %s3774 = scalar_lea.vmem [#allocation5], %s3773
          %3775 = dma.done %s3771, 128
        $region84: #{tpu_custom_call.1} parent=79 // pred_fallthru
          _
      $region80: #{tpu_custom_call.1} parent=5 // pred_fallthru
        _
    $region6: #{tpu_custom_call.1} parent=1 // loop_footer
      %s28 = sadd.s32 1, %s24
    $region7: #{tpu_custom_call.1} parent=1 // loop_footer_branch
      %23 = sbr.rel target = $region3
    $region8: #{tpu_custom_call.1} parent=1 // loop_exit
      _
    %3776 = vsyncpa [#allocation3], 1
    %s3777 = scalar_lea.sflag [#allocation3], 1
    %3778 = vsyncpa %s3777, 1
    %3779 = vsyncpa [#allocation4], 1
    %s3780 = scalar_lea.sflag [#allocation4], 1
    %3781 = vsyncpa %s3780, 1

</llo_original>
